<compile_context>
chip_gen: v6e
topology: v6e:2x2x1
jax: 0.10.0
libtpu: 0.0.40
codegen_flags: <defaults>
</compile_context>

<pallas_src>
import functools
import math

import jax
import jax.numpy as jnp
from jax.experimental import pallas as pl
from jax.experimental.pallas import tpu as pltpu  # noqa: F401  (TPU backend)


# -----------------------------------------------------------------------------
# Pallas kernel: embedding gather + 5 matmuls + 3 batch-norms + activations
# -----------------------------------------------------------------------------
def generator_mlp_kernel(
    labels_ref, z_ref, emb_ref,
    w1e_ref, w1z_ref, b1_ref,
    w2_ref, g2_ref, be2_ref,
    w3_ref, g3_ref, be3_ref,
    w4_ref, g4_ref, be4_ref,
    w5_ref, b5_ref,
    out_ref,
):
    f32 = jnp.float32
    eps = f32(1e-5)
    slope = f32(0.2)

    def leaky_relu(h):
        return jnp.where(h > 0, h, slope * h)

    def batch_norm(h, gamma, beta):
        # PyTorch BatchNorm1d (training mode): biased variance over the batch.
        mean = jnp.mean(h, axis=0, keepdims=True)
        var = jnp.mean(jnp.square(h - mean), axis=0, keepdims=True)
        scale = gamma * jax.lax.rsqrt(var + eps)   # gamma folded into the scale
        return (h - mean) * scale + beta

    def mm(a, w_ref):
        # bf16 operands on the MXU, f32 accumulation; activations stay f32.
        return jnp.dot(a.astype(jnp.bfloat16), w_ref[...],
                       preferred_element_type=jnp.float32)

    batch = z_ref.shape[0]
    classes = emb_ref.shape[0]

    # Embedding lookup as a one-hot matmul (gather done on the MXU).
    labels = labels_ref[...]                                        # (B, 1) i32
    class_ids = jax.lax.broadcasted_iota(jnp.int32, (batch, classes), 1)
    one_hot = (labels == class_ids).astype(f32)                     # (B, classes)
    emb = jnp.dot(one_hot, emb_ref[...], preferred_element_type=f32)

    # concat(emb, z) @ W1 == emb @ W1[:classes] + z @ W1[classes:]
    h = mm(emb, w1e_ref) + mm(z_ref[...], w1z_ref) + b1_ref[...]
    h = leaky_relu(h)

    # b2/b3/b4 omitted: exactly cancelled by the batch-mean subtraction in BN.
    h = leaky_relu(batch_norm(mm(h, w2_ref), g2_ref[...], be2_ref[...]))
    h = leaky_relu(batch_norm(mm(h, w3_ref), g3_ref[...], be3_ref[...]))
    h = leaky_relu(batch_norm(mm(h, w4_ref), g4_ref[...], be4_ref[...]))

    out_ref[...] = jnp.tanh(mm(h, w5_ref) + b5_ref[...])


# -----------------------------------------------------------------------------
# Parameter construction (deterministic, mirrors PyTorch default init)
# -----------------------------------------------------------------------------
def init_generator_params(key, classes, channels, img_size, latent_dim):
    img_flat = channels * img_size * img_size
    img_flat_padded = ((img_flat + 127) // 128) * 128   # lane-dense output stores

    sizes = [(latent_dim + classes, 128), (128, 256), (256, 512), (512, 1024),
             (1024, img_flat)]

    params = {}
    keys = jax.random.split(key, 1 + 2 * len(sizes))
    # nn.Embedding default init: N(0, 1).  Tiny (classes x classes): keep f32.
    params["emb"] = jax.random.normal(keys[0], (classes, classes), jnp.float32)

    weights, biases = [], []
    for idx, (fan_in, fan_out) in enumerate(sizes):
        bound = 1.0 / math.sqrt(fan_in)
        wk, bk = keys[1 + 2 * idx], keys[2 + 2 * idx]
        # Stored transposed as (in, out) so the kernel does x @ W on the MXU.
        weights.append(jax.random.uniform(
            wk, (fan_in, fan_out), jnp.float32, -bound, bound))
        biases.append(jax.random.uniform(
            bk, (1, fan_out), jnp.float32, -bound, bound))

    w1, w2, w3, w4, w5 = weights
    b1, _, _, _, b5 = biases   # b2/b3/b4 are exact no-ops under training-mode BN

    # Split W1 along its input rows: rows [0, classes) multiply the embedding,
    # rows [classes, ...) multiply z -> no in-kernel concat needed.
    params["w1e"] = w1[:classes].astype(jnp.bfloat16)
    params["w1z"] = w1[classes:].astype(jnp.bfloat16)
    params["b1"] = b1

    params["w2"] = w2.astype(jnp.bfloat16)
    params["w3"] = w3.astype(jnp.bfloat16)
    params["w4"] = w4.astype(jnp.bfloat16)

    # Pad final-layer output columns to a multiple of 128 (lane-dense stores);
    # padded columns produce tanh(0)=0 and are sliced away in the wrapper.
    pad = img_flat_padded - img_flat
    params["w5"] = jnp.pad(w5, ((0, 0), (0, pad))).astype(jnp.bfloat16)
    params["b5"] = jnp.pad(b5, ((0, 0), (0, pad)))

    # BatchNorm1d defaults: gamma=1, beta=0 (layers 2-4).
    for idx, (_, fan_out) in enumerate(sizes[1:4], start=2):
        params[f"g{idx}"] = jnp.ones((1, fan_out), jnp.float32)
        params[f"be{idx}"] = jnp.zeros((1, fan_out), jnp.float32)

    return params


# -----------------------------------------------------------------------------
# Wrapper: one pallas_call does the whole forward; only the NCHW view is glue.
# -----------------------------------------------------------------------------
def generator_forward(z, label, params, *, channels, img_size):
    batch, latent_dim = z.shape
    classes = params["emb"].shape[0]
    img_flat = channels * img_size * img_size
    img_flat_padded = params["w5"].shape[1]

    labels_2d = label.astype(jnp.int32).reshape(batch, 1)

    # Advisory cost hint for XLA's scheduler (tiny, memory-bound custom call).
    layer_dims = [(classes, classes), (classes, 128), (latent_dim, 128),
                  (128, 256), (256, 512), (512, 1024), (1024, img_flat_padded)]
    flops = 2 * batch * sum(k * n for k, n in layer_dims)
    weight_bytes = 2 * sum(k * n for k, n in layer_dims[1:]) + 4 * classes * classes
    act_bytes = 4 * batch * (1 + latent_dim + img_flat_padded)
    cost = pl.CostEstimate(flops=flops,
                           transcendentals=batch * img_flat_padded,
                           bytes_accessed=weight_bytes + act_bytes)

    # Whole problem (~2 MB of bf16 weights) fits in VMEM -> no grid / tiling.
    out_flat = pl.pallas_call(
        generator_mlp_kernel,
        out_shape=jax.ShapeDtypeStruct((batch, img_flat_padded), jnp.float32),
        cost_estimate=cost,
    )(labels_2d, z.astype(jnp.float32), params["emb"],
      params["w1e"], params["w1z"], params["b1"],
      params["w2"], params["g2"], params["be2"],
      params["w3"], params["g3"], params["be3"],
      params["w4"], params["g4"], params["be4"],
      params["w5"], params["b5"])

    return out_flat[:, :img_flat].reshape(batch, channels, img_size, img_size)


# -----------------------------------------------------------------------------
# Pure-JAX reference (same bf16-weight / f32-accumulate numerics)
# -----------------------------------------------------------------------------
def generator_reference(z, label, params, *, channels, img_size):
    classes = params["emb"].shape[0]
    img_flat = channels * img_size * img_size

    def mm(a, w):
        return jnp.dot(a.astype(jnp.bfloat16), w,
                       preferred_element_type=jnp.float32)

    def leaky(x):
        return jnp.where(x > 0, x, 0.2 * x)

    def bn(x, g, b):
        m = jnp.mean(x, axis=0, keepdims=True)
        v = jnp.mean((x - m) ** 2, axis=0, keepdims=True)
        return (x - m) * (g * jax.lax.rsqrt(v + jnp.float32(1e-5))) + b

    one_hot = jax.nn.one_hot(label, classes, dtype=jnp.float32)
    emb = jnp.dot(one_hot, params["emb"], preferred_element_type=jnp.float32)

    h = leaky(mm(emb, params["w1e"]) + mm(z, params["w1z"]) + params["b1"])
    h = leaky(bn(mm(h, params["w2"]), params["g2"], params["be2"]))
    h = leaky(bn(mm(h, params["w3"]), params["g3"], params["be3"]))
    h = leaky(bn(mm(h, params["w4"]), params["g4"], params["be4"]))
    h = jnp.tanh(mm(h, params["w5"]) + params["b5"])
    return h[:, :img_flat].reshape(z.shape[0], channels, img_size, img_size)


if __name__ == "__main__":
    # Small shapes consistent with the module's forward.
    CLASSES = 10
    CHANNELS = 1
    IMG_SIZE = 16
    LATENT_DIM = 32
    BATCH = 8

    key = jax.random.PRNGKey(0)
    k_param, k_z, k_lbl = jax.random.split(key, 3)

    params = init_generator_params(k_param, CLASSES, CHANNELS, IMG_SIZE, LATENT_DIM)
    z = jax.random.normal(k_z, (BATCH, LATENT_DIM), jnp.float32)
    label = jax.random.randint(k_lbl, (BATCH,), 0, CLASSES, jnp.int32)

    fwd = jax.jit(functools.partial(generator_forward,
                                    channels=CHANNELS, img_size=IMG_SIZE))
    out = jax.block_until_ready(fwd(z, label, params))

    ref = generator_reference(z, label, params, channels=CHANNELS, img_size=IMG_SIZE)
    assert out.shape == (BATCH, CHANNELS, IMG_SIZE, IMG_SIZE)
    err = float(jnp.max(jnp.abs(out - ref)))
    assert err < 2e-3, f"max abs error {err}"

    print("KERNEL_OK")
</pallas_src>

<mosaic_0001>
module attributes {stable_mosaic.version = 11 : i64} {
  func.func @generator_mlp_kernel(%arg0: memref<8x1xi32, #tpu.memory_space<vmem>>, %arg1: memref<8x32xf32, #tpu.memory_space<vmem>>, %arg2: memref<10x10xf32, #tpu.memory_space<vmem>>, %arg3: memref<10x128xbf16, #tpu.memory_space<vmem>>, %arg4: memref<32x128xbf16, #tpu.memory_space<vmem>>, %arg5: memref<1x128xf32, #tpu.memory_space<vmem>>, %arg6: memref<128x256xbf16, #tpu.memory_space<vmem>>, %arg7: memref<1x256xf32, #tpu.memory_space<vmem>>, %arg8: memref<1x256xf32, #tpu.memory_space<vmem>>, %arg9: memref<256x512xbf16, #tpu.memory_space<vmem>>, %arg10: memref<1x512xf32, #tpu.memory_space<vmem>>, %arg11: memref<1x512xf32, #tpu.memory_space<vmem>>, %arg12: memref<512x1024xbf16, #tpu.memory_space<vmem>>, %arg13: memref<1x1024xf32, #tpu.memory_space<vmem>>, %arg14: memref<1x1024xf32, #tpu.memory_space<vmem>>, %arg15: memref<1024x256xbf16, #tpu.memory_space<vmem>>, %arg16: memref<1x256xf32, #tpu.memory_space<vmem>>, %arg17: memref<8x256xf32, #tpu.memory_space<vmem>>) attributes {dimension_semantics = [], scalar_prefetch = 0 : i64, scratch_operands = 0 : i64, tpu.core_type = #tpu.core_type<tc>} {
    %c0 = arith.constant 0 : index
    %c0_0 = arith.constant 0 : index
    %0 = vector.load %arg0[%c0, %c0_0] : memref<8x1xi32, #tpu.memory_space<vmem>>, vector<8x1xi32>
    %1 = tpu.iota {dimensions = array<i32: 1>} : vector<8x10xi32>
    %2 = vector.broadcast %0 : vector<8x1xi32> to vector<8x10xi32>
    %3 = arith.cmpi eq, %2, %1 : vector<8x10xi32>
    %4 = arith.extui %3 : vector<8x10xi1> to vector<8x10xi32>
    %5 = arith.sitofp %4 : vector<8x10xi32> to vector<8x10xf32>
    %c0_1 = arith.constant 0 : index
    %c0_2 = arith.constant 0 : index
    %6 = vector.load %arg2[%c0_1, %c0_2] : memref<10x10xf32, #tpu.memory_space<vmem>>, vector<10x10xf32>
    %cst = arith.constant dense<0.000000e+00> : vector<8x10xf32>
    %7 = tpu.matmul %5, %6, %cst {dimension_numbers = #tpu.dot_dimension_numbers<[1], [0], [0], [1], [0, 0, 1, 1], [], []>} : vector<8x10xf32>, vector<10x10xf32>, vector<8x10xf32> -> vector<8x10xf32>
    %8 = arith.truncf %7 : vector<8x10xf32> to vector<8x10xbf16>
    %c0_3 = arith.constant 0 : index
    %c0_4 = arith.constant 0 : index
    %9 = vector.load %arg3[%c0_3, %c0_4] : memref<10x128xbf16, #tpu.memory_space<vmem>>, vector<10x128xbf16>
    %cst_5 = arith.constant dense<0.000000e+00> : vector<8x128xf32>
    %10 = tpu.matmul %8, %9, %cst_5 {dimension_numbers = #tpu.dot_dimension_numbers<[1], [0], [0], [1], [0, 0, 1, 1], [], []>} : vector<8x10xbf16>, vector<10x128xbf16>, vector<8x128xf32> -> vector<8x128xf32>
    %c0_6 = arith.constant 0 : index
    %c0_7 = arith.constant 0 : index
    %11 = vector.load %arg1[%c0_6, %c0_7] : memref<8x32xf32, #tpu.memory_space<vmem>>, vector<8x32xf32>
    %12 = arith.truncf %11 : vector<8x32xf32> to vector<8x32xbf16>
    %c0_8 = arith.constant 0 : index
    %c0_9 = arith.constant 0 : index
    %13 = vector.load %arg4[%c0_8, %c0_9] : memref<32x128xbf16, #tpu.memory_space<vmem>>, vector<32x128xbf16>
    %cst_10 = arith.constant dense<0.000000e+00> : vector<8x128xf32>
    %14 = tpu.matmul %12, %13, %cst_10 {dimension_numbers = #tpu.dot_dimension_numbers<[1], [0], [0], [1], [0, 0, 1, 1], [], []>} : vector<8x32xbf16>, vector<32x128xbf16>, vector<8x128xf32> -> vector<8x128xf32>
    %15 = arith.addf %10, %14 : vector<8x128xf32>
    %c0_11 = arith.constant 0 : index
    %c0_12 = arith.constant 0 : index
    %16 = vector.load %arg5[%c0_11, %c0_12] : memref<1x128xf32, #tpu.memory_space<vmem>>, vector<1x128xf32>
    %17 = vector.broadcast %16 : vector<1x128xf32> to vector<8x128xf32>
    %18 = arith.addf %15, %17 : vector<8x128xf32>
    %cst_13 = arith.constant 0.000000e+00 : f32
    %19 = vector.broadcast %cst_13 : f32 to vector<8x128xf32>
    %20 = arith.cmpf ogt, %18, %19 : vector<8x128xf32>
    %cst_14 = arith.constant 2.000000e-01 : f32
    %21 = vector.broadcast %cst_14 : f32 to vector<8x128xf32>
    %22 = arith.mulf %21, %18 : vector<8x128xf32>
    %23 = arith.select %20, %18, %22 : vector<8x128xi1>, vector<8x128xf32>
    %24 = arith.truncf %23 : vector<8x128xf32> to vector<8x128xbf16>
    %c0_15 = arith.constant 0 : index
    %c0_16 = arith.constant 0 : index
    %25 = vector.load %arg6[%c0_15, %c0_16] : memref<128x256xbf16, #tpu.memory_space<vmem>>, vector<128x256xbf16>
    %cst_17 = arith.constant dense<0.000000e+00> : vector<8x256xf32>
    %26 = tpu.matmul %24, %25, %cst_17 {dimension_numbers = #tpu.dot_dimension_numbers<[1], [0], [0], [1], [0, 0, 1, 1], [], []>} : vector<8x128xbf16>, vector<128x256xbf16>, vector<8x256xf32> -> vector<8x256xf32>
    %c0_18 = arith.constant 0 : index
    %c0_19 = arith.constant 0 : index
    %27 = vector.load %arg7[%c0_18, %c0_19] : memref<1x256xf32, #tpu.memory_space<vmem>>, vector<1x256xf32>
    %c0_20 = arith.constant 0 : index
    %c0_21 = arith.constant 0 : index
    %28 = vector.load %arg8[%c0_20, %c0_21] : memref<1x256xf32, #tpu.memory_space<vmem>>, vector<1x256xf32>
    %cst_22 = arith.constant dense<0.000000e+00> : vector<256xf32>
    %29 = vector.multi_reduction <add>, %26, %cst_22 [0] : vector<8x256xf32> to vector<256xf32>
    %30 = vector.shape_cast %29 : vector<256xf32> to vector<1x256xf32>
    %cst_23 = arith.constant 8.000000e+00 : f32
    %31 = vector.broadcast %cst_23 : f32 to vector<1x256xf32>
    %32 = arith.divf %30, %31 : vector<1x256xf32>
    %33 = vector.broadcast %32 : vector<1x256xf32> to vector<8x256xf32>
    %34 = arith.subf %26, %33 : vector<8x256xf32>
    %35 = arith.mulf %34, %34 : vector<8x256xf32>
    %cst_24 = arith.constant dense<0.000000e+00> : vector<256xf32>
    %36 = vector.multi_reduction <add>, %35, %cst_24 [0] : vector<8x256xf32> to vector<256xf32>
    %37 = vector.shape_cast %36 : vector<256xf32> to vector<1x256xf32>
    %cst_25 = arith.constant 8.000000e+00 : f32
    %38 = vector.broadcast %cst_25 : f32 to vector<1x256xf32>
    %39 = arith.divf %37, %38 : vector<1x256xf32>
    %cst_26 = arith.constant 9.99999974E-6 : f32
    %40 = vector.broadcast %cst_26 : f32 to vector<1x256xf32>
    %41 = arith.addf %39, %40 : vector<1x256xf32>
    %42 = math.rsqrt %41 : vector<1x256xf32>
    %43 = arith.mulf %27, %42 : vector<1x256xf32>
    %44 = vector.broadcast %32 : vector<1x256xf32> to vector<8x256xf32>
    %45 = arith.subf %26, %44 : vector<8x256xf32>
    %46 = vector.broadcast %43 : vector<1x256xf32> to vector<8x256xf32>
    %47 = arith.mulf %45, %46 : vector<8x256xf32>
    %48 = vector.broadcast %28 : vector<1x256xf32> to vector<8x256xf32>
    %49 = arith.addf %47, %48 : vector<8x256xf32>
    %cst_27 = arith.constant 0.000000e+00 : f32
    %50 = vector.broadcast %cst_27 : f32 to vector<8x256xf32>
    %51 = arith.cmpf ogt, %49, %50 : vector<8x256xf32>
    %cst_28 = arith.constant 2.000000e-01 : f32
    %52 = vector.broadcast %cst_28 : f32 to vector<8x256xf32>
    %53 = arith.mulf %52, %49 : vector<8x256xf32>
    %54 = arith.select %51, %49, %53 : vector<8x256xi1>, vector<8x256xf32>
    %55 = arith.truncf %54 : vector<8x256xf32> to vector<8x256xbf16>
    %c0_29 = arith.constant 0 : index
    %c0_30 = arith.constant 0 : index
    %56 = vector.load %arg9[%c0_29, %c0_30] : memref<256x512xbf16, #tpu.memory_space<vmem>>, vector<256x512xbf16>
    %cst_31 = arith.constant dense<0.000000e+00> : vector<8x512xf32>
    %57 = tpu.matmul %55, %56, %cst_31 {dimension_numbers = #tpu.dot_dimension_numbers<[1], [0], [0], [1], [0, 0, 1, 1], [], []>} : vector<8x256xbf16>, vector<256x512xbf16>, vector<8x512xf32> -> vector<8x512xf32>
    %c0_32 = arith.constant 0 : index
    %c0_33 = arith.constant 0 : index
    %58 = vector.load %arg10[%c0_32, %c0_33] : memref<1x512xf32, #tpu.memory_space<vmem>>, vector<1x512xf32>
    %c0_34 = arith.constant 0 : index
    %c0_35 = arith.constant 0 : index
    %59 = vector.load %arg11[%c0_34, %c0_35] : memref<1x512xf32, #tpu.memory_space<vmem>>, vector<1x512xf32>
    %cst_36 = arith.constant dense<0.000000e+00> : vector<512xf32>
    %60 = vector.multi_reduction <add>, %57, %cst_36 [0] : vector<8x512xf32> to vector<512xf32>
    %61 = vector.shape_cast %60 : vector<512xf32> to vector<1x512xf32>
    %cst_37 = arith.constant 8.000000e+00 : f32
    %62 = vector.broadcast %cst_37 : f32 to vector<1x512xf32>
    %63 = arith.divf %61, %62 : vector<1x512xf32>
    %64 = vector.broadcast %63 : vector<1x512xf32> to vector<8x512xf32>
    %65 = arith.subf %57, %64 : vector<8x512xf32>
    %66 = arith.mulf %65, %65 : vector<8x512xf32>
    %cst_38 = arith.constant dense<0.000000e+00> : vector<512xf32>
    %67 = vector.multi_reduction <add>, %66, %cst_38 [0] : vector<8x512xf32> to vector<512xf32>
    %68 = vector.shape_cast %67 : vector<512xf32> to vector<1x512xf32>
    %cst_39 = arith.constant 8.000000e+00 : f32
    %69 = vector.broadcast %cst_39 : f32 to vector<1x512xf32>
    %70 = arith.divf %68, %69 : vector<1x512xf32>
    %cst_40 = arith.constant 9.99999974E-6 : f32
    %71 = vector.broadcast %cst_40 : f32 to vector<1x512xf32>
    %72 = arith.addf %70, %71 : vector<1x512xf32>
    %73 = math.rsqrt %72 : vector<1x512xf32>
    %74 = arith.mulf %58, %73 : vector<1x512xf32>
    %75 = vector.broadcast %63 : vector<1x512xf32> to vector<8x512xf32>
    %76 = arith.subf %57, %75 : vector<8x512xf32>
    %77 = vector.broadcast %74 : vector<1x512xf32> to vector<8x512xf32>
    %78 = arith.mulf %76, %77 : vector<8x512xf32>
    %79 = vector.broadcast %59 : vector<1x512xf32> to vector<8x512xf32>
    %80 = arith.addf %78, %79 : vector<8x512xf32>
    %cst_41 = arith.constant 0.000000e+00 : f32
    %81 = vector.broadcast %cst_41 : f32 to vector<8x512xf32>
    %82 = arith.cmpf ogt, %80, %81 : vector<8x512xf32>
    %cst_42 = arith.constant 2.000000e-01 : f32
    %83 = vector.broadcast %cst_42 : f32 to vector<8x512xf32>
    %84 = arith.mulf %83, %80 : vector<8x512xf32>
    %85 = arith.select %82, %80, %84 : vector<8x512xi1>, vector<8x512xf32>
    %86 = arith.truncf %85 : vector<8x512xf32> to vector<8x512xbf16>
    %c0_43 = arith.constant 0 : index
    %c0_44 = arith.constant 0 : index
    %87 = vector.load %arg12[%c0_43, %c0_44] : memref<512x1024xbf16, #tpu.memory_space<vmem>>, vector<512x1024xbf16>
    %cst_45 = arith.constant dense<0.000000e+00> : vector<8x1024xf32>
    %88 = tpu.matmul %86, %87, %cst_45 {dimension_numbers = #tpu.dot_dimension_numbers<[1], [0], [0], [1], [0, 0, 1, 1], [], []>} : vector<8x512xbf16>, vector<512x1024xbf16>, vector<8x1024xf32> -> vector<8x1024xf32>
    %c0_46 = arith.constant 0 : index
    %c0_47 = arith.constant 0 : index
    %89 = vector.load %arg13[%c0_46, %c0_47] : memref<1x1024xf32, #tpu.memory_space<vmem>>, vector<1x1024xf32>
    %c0_48 = arith.constant 0 : index
    %c0_49 = arith.constant 0 : index
    %90 = vector.load %arg14[%c0_48, %c0_49] : memref<1x1024xf32, #tpu.memory_space<vmem>>, vector<1x1024xf32>
    %cst_50 = arith.constant dense<0.000000e+00> : vector<1024xf32>
    %91 = vector.multi_reduction <add>, %88, %cst_50 [0] : vector<8x1024xf32> to vector<1024xf32>
    %92 = vector.shape_cast %91 : vector<1024xf32> to vector<1x1024xf32>
    %cst_51 = arith.constant 8.000000e+00 : f32
    %93 = vector.broadcast %cst_51 : f32 to vector<1x1024xf32>
    %94 = arith.divf %92, %93 : vector<1x1024xf32>
    %95 = vector.broadcast %94 : vector<1x1024xf32> to vector<8x1024xf32>
    %96 = arith.subf %88, %95 : vector<8x1024xf32>
    %97 = arith.mulf %96, %96 : vector<8x1024xf32>
    %cst_52 = arith.constant dense<0.000000e+00> : vector<1024xf32>
    %98 = vector.multi_reduction <add>, %97, %cst_52 [0] : vector<8x1024xf32> to vector<1024xf32>
    %99 = vector.shape_cast %98 : vector<1024xf32> to vector<1x1024xf32>
    %cst_53 = arith.constant 8.000000e+00 : f32
    %100 = vector.broadcast %cst_53 : f32 to vector<1x1024xf32>
    %101 = arith.divf %99, %100 : vector<1x1024xf32>
    %cst_54 = arith.constant 9.99999974E-6 : f32
    %102 = vector.broadcast %cst_54 : f32 to vector<1x1024xf32>
    %103 = arith.addf %101, %102 : vector<1x1024xf32>
    %104 = math.rsqrt %103 : vector<1x1024xf32>
    %105 = arith.mulf %89, %104 : vector<1x1024xf32>
    %106 = vector.broadcast %94 : vector<1x1024xf32> to vector<8x1024xf32>
    %107 = arith.subf %88, %106 : vector<8x1024xf32>
    %108 = vector.broadcast %105 : vector<1x1024xf32> to vector<8x1024xf32>
    %109 = arith.mulf %107, %108 : vector<8x1024xf32>
    %110 = vector.broadcast %90 : vector<1x1024xf32> to vector<8x1024xf32>
    %111 = arith.addf %109, %110 : vector<8x1024xf32>
    %cst_55 = arith.constant 0.000000e+00 : f32
    %112 = vector.broadcast %cst_55 : f32 to vector<8x1024xf32>
    %113 = arith.cmpf ogt, %111, %112 : vector<8x1024xf32>
    %cst_56 = arith.constant 2.000000e-01 : f32
    %114 = vector.broadcast %cst_56 : f32 to vector<8x1024xf32>
    %115 = arith.mulf %114, %111 : vector<8x1024xf32>
    %116 = arith.select %113, %111, %115 : vector<8x1024xi1>, vector<8x1024xf32>
    %117 = arith.truncf %116 : vector<8x1024xf32> to vector<8x1024xbf16>
    %c0_57 = arith.constant 0 : index
    %c0_58 = arith.constant 0 : index
    %118 = vector.load %arg15[%c0_57, %c0_58] : memref<1024x256xbf16, #tpu.memory_space<vmem>>, vector<1024x256xbf16>
    %cst_59 = arith.constant dense<0.000000e+00> : vector<8x256xf32>
    %119 = tpu.matmul %117, %118, %cst_59 {dimension_numbers = #tpu.dot_dimension_numbers<[1], [0], [0], [1], [0, 0, 1, 1], [], []>} : vector<8x1024xbf16>, vector<1024x256xbf16>, vector<8x256xf32> -> vector<8x256xf32>
    %c0_60 = arith.constant 0 : index
    %c0_61 = arith.constant 0 : index
    %120 = vector.load %arg16[%c0_60, %c0_61] : memref<1x256xf32, #tpu.memory_space<vmem>>, vector<1x256xf32>
    %121 = vector.broadcast %120 : vector<1x256xf32> to vector<8x256xf32>
    %122 = arith.addf %119, %121 : vector<8x256xf32>
    %123 = math.tanh %122 : vector<8x256xf32>
    %c0_62 = arith.constant 0 : index
    %c0_63 = arith.constant 0 : index
    %124 = vector.load %arg17[%c0_62, %c0_63] : memref<8x256xf32, #tpu.memory_space<vmem>>, vector<8x256xf32>
    tpu.vector_store %arg17[%c0_62, %c0_63], %123 {strides = array<i32>} : memref<8x256xf32, #tpu.memory_space<vmem>>, vector<8x256xf32>,
    return
  }
}

</mosaic_0001>

<llo_original>
// kernel: generator_forward.1
$region0: #{generator_forward.1}
  #allocation0 [shape = 'u32[]', space=smem, size = 0x4, offset = 0x4, fixed_abs, tag = 'smem constant byte address 0x4 - core index']
  #allocation1 [shape = 'u32[144,128]{1,0:T(1,128)}', space=vmem, size = 0x12000, scoped, tag = 'internal scratch']
  %s0 = inlined_call_operand.vmem [shape: s32[8,1], index: 0, kind: input, shape index: {}]
  %s1 = inlined_call_operand.hbm [shape: f32[8,32], index: 1, kind: input, shape index: {}]
  %s2 = inlined_call_operand.vmem [shape: f32[10,10], index: 2, kind: input, shape index: {}]
  %s3 = inlined_call_operand.hbm [shape: bf16[10,128], index: 3, kind: input, shape index: {}]
  %s4 = inlined_call_operand.vmem [shape: bf16[32,128], index: 4, kind: input, shape index: {}]
  %s5 = inlined_call_operand.hbm [shape: f32[1,128], index: 5, kind: input, shape index: {}]
  %s6 = inlined_call_operand.hbm [shape: bf16[128,256], index: 6, kind: input, shape index: {}]
  %s7 = inlined_call_operand.hbm [shape: f32[1,256], index: 7, kind: input, shape index: {}]
  %s8 = inlined_call_operand.hbm [shape: f32[1,256], index: 8, kind: input, shape index: {}]
  %s9 = inlined_call_operand.hbm [shape: bf16[256,512], index: 9, kind: input, shape index: {}]
  %s10 = inlined_call_operand.hbm [shape: f32[1,512], index: 10, kind: input, shape index: {}]
  %s11 = inlined_call_operand.hbm [shape: f32[1,512], index: 11, kind: input, shape index: {}]
  %s12 = inlined_call_operand.hbm [shape: bf16[512,1024], index: 12, kind: input, shape index: {}]
  %s13 = inlined_call_operand.hbm [shape: f32[1,1024], index: 13, kind: input, shape index: {}]
  %s14 = inlined_call_operand.hbm [shape: f32[1,1024], index: 14, kind: input, shape index: {}]
  %s15 = inlined_call_operand.hbm [shape: bf16[1024,256], index: 15, kind: input, shape index: {}]
  %s16 = inlined_call_operand.hbm [shape: f32[1,256], index: 16, kind: input, shape index: {}]
  %s17 = inlined_call_operand.vmem [shape: f32[8,256], index: 17, kind: output, shape index: {}]
  %s18 = sld [smem:[#allocation0]]
  $region134: #{generator_forward.1} parent=0
    _
  %s20 = ssub.s32 1, %s18
  %s21 = scalar_select 0, %s20, %s18
  $region1: #{generator_forward.1} parent=0
    #allocation2 [shape = 'u8[4096]{0}', space=vmem, size = 0x1000, scoped, tag = 'input window, operand 1, single buffered']
    #allocation3 [shape = 's32[1]{0}', space=sflag, size = 0x4, scoped, tag = 'scoped memory for generator_forward.1']
    #allocation4 [shape = 'u8[4096]{0}', space=vmem, size = 0x1000, scoped, tag = 'input window, operand 3, single buffered']
    #allocation5 [shape = 's32[1]{0}', space=sflag, size = 0x4, scoped, tag = 'scoped memory for generator_forward.1']
    #allocation6 [shape = 'u8[512]{0}', space=vmem, size = 0x400, scoped, tag = 'input window, operand 5, single buffered']
    #allocation7 [shape = 'u8[65536]{0}', space=vmem, size = 0x10000, scoped, tag = 'input window, operand 6, single buffered']
    #allocation8 [shape = 's32[1]{0}', space=sflag, size = 0x4, scoped, tag = 'scoped memory for generator_forward.1']
    #allocation9 [shape = 'u8[1024]{0}', space=vmem, size = 0x400, scoped, tag = 'input window, operand 7, single buffered']
    #allocation10 [shape = 'u8[1024]{0}', space=vmem, size = 0x400, scoped, tag = 'input window, operand 8, single buffered']
    #allocation11 [shape = 's32[1]{0}', space=sflag, size = 0x4, scoped, tag = 'scoped memory for generator_forward.1']
    #allocation12 [shape = 'u8[262144]{0}', space=vmem, size = 0x40000, scoped, tag = 'input window, operand 9, single buffered']
    #allocation13 [shape = 'u8[2048]{0}', space=vmem, size = 0x800, scoped, tag = 'input window, operand 10, single buffered']
    #allocation14 [shape = 's32[1]{0}', space=sflag, size = 0x4, scoped, tag = 'scoped memory for generator_forward.1']
    #allocation15 [shape = 'u8[2048]{0}', space=vmem, size = 0x800, scoped, tag = 'input window, operand 11, single buffered']
    #allocation16 [shape = 'u8[1048576]{0}', space=vmem, size = 0x100000, scoped, tag = 'input window, operand 12, single buffered']
    #allocation17 [shape = 's32[1]{0}', space=sflag, size = 0x4, scoped, tag = 'scoped memory for generator_forward.1']
    #allocation18 [shape = 'u8[4096]{0}', space=vmem, size = 0x1000, scoped, tag = 'input window, operand 13, single buffered']
    #allocation19 [shape = 'u8[4096]{0}', space=vmem, size = 0x1000, scoped, tag = 'input window, operand 14, single buffered']
    #allocation20 [shape = 's32[1]{0}', space=sflag, size = 0x4, scoped, tag = 'scoped memory for generator_forward.1']
    #allocation21 [shape = 'u8[524288]{0}', space=vmem, size = 0x80000, scoped, tag = 'input window, operand 15, single buffered']
    #allocation22 [shape = 'u8[1024]{0}', space=vmem, size = 0x400, scoped, tag = 'input window, operand 16, single buffered']
    #allocation23 [shape = 's32[1]{0}', space=sflag, size = 0x4, scoped, tag = 'scoped memory for generator_forward.1']
    %22 = vsyncpa [#allocation3], 0
    %23 = vsyncpa [#allocation5], 0
    %24 = vsyncpa [#allocation8], 0
    %25 = vsyncpa [#allocation11], 0
    %26 = vsyncpa [#allocation14], 0
    %27 = vsyncpa [#allocation17], 0
    %28 = vsyncpa [#allocation20], 0
    %29 = vsyncpa [#allocation23], 0
    // Predicated region
    $region2: #{generator_forward.1} parent=1 // pred_check
      _
    $region3: #{generator_forward.1} parent=1 // pred_check_branch
      %31 = sbr.rel (0) target = $region5
    $region4: #{generator_forward.1} parent=1 // pred_region
      _
    $region5: #{generator_forward.1} parent=1 // pred_fallthru
      _
    // Predicated region
    $region6: #{generator_forward.1} parent=1 // pred_check
      _
    $region7: #{generator_forward.1} parent=1 // pred_check_branch
      %33 = sbr.rel (0) target = $region9
    $region8: #{generator_forward.1} parent=1 // pred_region
      %s35 = ssub.s32 128, 128
      %36 = vsyncadd [#allocation3], %s35
      %s38 = sshll.u32 [#allocation2], 4
      %s39 = int_to_ptr.vmem [resolvable:$true] %s38
      %41 = dma.hbm_to_vmem [thread:$0]  %s1, 128, %s39, [#allocation3]
    $region9: #{generator_forward.1} parent=1 // pred_fallthru
      _
    // Predicated region
    $region10: #{generator_forward.1} parent=1 // pred_check
      _
    $region11: #{generator_forward.1} parent=1 // pred_check_branch
      %43 = sbr.rel (0) target = $region13
    $region12: #{generator_forward.1} parent=1 // pred_region
      _
    $region13: #{generator_forward.1} parent=1 // pred_fallthru
      _
    // Predicated region
    $region14: #{generator_forward.1} parent=1 // pred_check
      _
    $region15: #{generator_forward.1} parent=1 // pred_check_branch
      %45 = sbr.rel (0) target = $region17
    $region16: #{generator_forward.1} parent=1 // pred_region
      %s47 = ssub.s32 128, 128
      %48 = vsyncadd [#allocation5], %s47
      %s49 = sshll.u32 [#allocation4], 4
      %s50 = int_to_ptr.vmem [resolvable:$true] %s49
      %55 = dma.hbm_to_vmem [thread:$0]  %s3, 128, %s50, [#allocation5], 64, 64, 4
    $region17: #{generator_forward.1} parent=1 // pred_fallthru
      _
    // Predicated region
    $region18: #{generator_forward.1} parent=1 // pred_check
      _
    $region19: #{generator_forward.1} parent=1 // pred_check_branch
      %57 = sbr.rel (0) target = $region21
    $region20: #{generator_forward.1} parent=1 // pred_region
      _
    $region21: #{generator_forward.1} parent=1 // pred_fallthru
      _
    // Predicated region
    $region22: #{generator_forward.1} parent=1 // pred_check
      _
    $region23: #{generator_forward.1} parent=1 // pred_check_branch
      %59 = sbr.rel (0) target = $region25
    $region24: #{generator_forward.1} parent=1 // pred_region
      %s61 = ssub.s32 16, 16
      %62 = vsyncadd [#allocation5], %s61
      %s64 = sshll.u32 [#allocation6], 4
      %s65 = int_to_ptr.vmem [resolvable:$true] %s64
      %67 = dma.hbm_to_vmem [thread:$0]  %s5, 16, %s65, [#allocation5]
    $region25: #{generator_forward.1} parent=1 // pred_fallthru
      _
    // Predicated region
    $region26: #{generator_forward.1} parent=1 // pred_check
      _
    $region27: #{generator_forward.1} parent=1 // pred_check_branch
      %69 = sbr.rel (0) target = $region29
    $region28: #{generator_forward.1} parent=1 // pred_region
      %s71 = ssub.s32 2048, 2048
      %72 = vsyncadd [#allocation8], %s71
      %s73 = sshll.u32 [#allocation7], 4
      %s74 = int_to_ptr.vmem [resolvable:$true] %s73
      %79 = dma.hbm_to_vmem [thread:$0]  %s6, 2048, %s74, [#allocation8], 128, 128, 8
    $region29: #{generator_forward.1} parent=1 // pred_fallthru
      _
    // Predicated region
    $region30: #{generator_forward.1} parent=1 // pred_check
      _
    $region31: #{generator_forward.1} parent=1 // pred_check_branch
      %81 = sbr.rel (0) target = $region33
    $region32: #{generator_forward.1} parent=1 // pred_region
      %s83 = ssub.s32 32, 32
      %84 = vsyncadd [#allocation8], %s83
      %s86 = sshll.u32 [#allocation9], 4
      %s87 = int_to_ptr.vmem [resolvable:$true] %s86
      %89 = dma.hbm_to_vmem [thread:$0]  %s7, 32, %s87, [#allocation8]
    $region33: #{generator_forward.1} parent=1 // pred_fallthru
      _
    // Predicated region
    $region34: #{generator_forward.1} parent=1 // pred_check
      _
    $region35: #{generator_forward.1} parent=1 // pred_check_branch
      %91 = sbr.rel (0) target = $region37
    $region36: #{generator_forward.1} parent=1 // pred_region
      %s93 = ssub.s32 32, 32
      %94 = vsyncadd [#allocation11], %s93
      %s96 = sshll.u32 [#allocation10], 4
      %s97 = int_to_ptr.vmem [resolvable:$true] %s96
      %99 = dma.hbm_to_vmem [thread:$0]  %s8, 32, %s97, [#allocation11]
    $region37: #{generator_forward.1} parent=1 // pred_fallthru
      _
    // Predicated region
    $region38: #{generator_forward.1} parent=1 // pred_check
      _
    $region39: #{generator_forward.1} parent=1 // pred_check_branch
      %101 = sbr.rel (0) target = $region41
    $region40: #{generator_forward.1} parent=1 // pred_region
      %s103 = ssub.s32 8192, 8192
      %104 = vsyncadd [#allocation11], %s103
      %s105 = sshll.u32 [#allocation12], 4
      %s106 = int_to_ptr.vmem [resolvable:$true] %s105
      %111 = dma.hbm_to_vmem [thread:$0]  %s9, 8192, %s106, [#allocation11], 256, 256, 16
    $region41: #{generator_forward.1} parent=1 // pred_fallthru
      _
    // Predicated region
    $region42: #{generator_forward.1} parent=1 // pred_check
      _
    $region43: #{generator_forward.1} parent=1 // pred_check_branch
      %113 = sbr.rel (0) target = $region45
    $region44: #{generator_forward.1} parent=1 // pred_region
      %s115 = ssub.s32 64, 64
      %116 = vsyncadd [#allocation14], %s115
      %s118 = sshll.u32 [#allocation13], 4
      %s119 = int_to_ptr.vmem [resolvable:$true] %s118
      %121 = dma.hbm_to_vmem [thread:$0]  %s10, 64, %s119, [#allocation14]
    $region45: #{generator_forward.1} parent=1 // pred_fallthru
      _
    // Predicated region
    $region46: #{generator_forward.1} parent=1 // pred_check
      _
    $region47: #{generator_forward.1} parent=1 // pred_check_branch
      %123 = sbr.rel (0) target = $region49
    $region48: #{generator_forward.1} parent=1 // pred_region
      %s125 = ssub.s32 64, 64
      %126 = vsyncadd [#allocation14], %s125
      %s128 = sshll.u32 [#allocation15], 4
      %s129 = int_to_ptr.vmem [resolvable:$true] %s128
      %131 = dma.hbm_to_vmem [thread:$0]  %s11, 64, %s129, [#allocation14]
    $region49: #{generator_forward.1} parent=1 // pred_fallthru
      _
    // Predicated region
    $region50: #{generator_forward.1} parent=1 // pred_check
      _
    $region51: #{generator_forward.1} parent=1 // pred_check_branch
      %133 = sbr.rel (0) target = $region53
    $region52: #{generator_forward.1} parent=1 // pred_region
      %s135 = ssub.s32 32768, 32768
      %136 = vsyncadd [#allocation17], %s135
      %s137 = sshll.u32 [#allocation16], 4
      %s138 = int_to_ptr.vmem [resolvable:$true] %s137
      %143 = dma.hbm_to_vmem [thread:$0]  %s12, 32768, %s138, [#allocation17], 512, 512, 32
    $region53: #{generator_forward.1} parent=1 // pred_fallthru
      _
    // Predicated region
    $region54: #{generator_forward.1} parent=1 // pred_check
      _
    $region55: #{generator_forward.1} parent=1 // pred_check_branch
      %145 = sbr.rel (0) target = $region57
    $region56: #{generator_forward.1} parent=1 // pred_region
      %s147 = ssub.s32 128, 128
      %148 = vsyncadd [#allocation17], %s147
      %s150 = sshll.u32 [#allocation18], 4
      %s151 = int_to_ptr.vmem [resolvable:$true] %s150
      %153 = dma.hbm_to_vmem [thread:$0]  %s13, 128, %s151, [#allocation17]
    $region57: #{generator_forward.1} parent=1 // pred_fallthru
      _
    // Predicated region
    $region58: #{generator_forward.1} parent=1 // pred_check
      _
    $region59: #{generator_forward.1} parent=1 // pred_check_branch
      %155 = sbr.rel (0) target = $region61
    $region60: #{generator_forward.1} parent=1 // pred_region
      %s157 = ssub.s32 128, 128
      %158 = vsyncadd [#allocation20], %s157
      %s160 = sshll.u32 [#allocation19], 4
      %s161 = int_to_ptr.vmem [resolvable:$true] %s160
      %163 = dma.hbm_to_vmem [thread:$0]  %s14, 128, %s161, [#allocation20]
    $region61: #{generator_forward.1} parent=1 // pred_fallthru
      _
    // Predicated region
    $region62: #{generator_forward.1} parent=1 // pred_check
      _
    $region63: #{generator_forward.1} parent=1 // pred_check_branch
      %165 = sbr.rel (0) target = $region65
    $region64: #{generator_forward.1} parent=1 // pred_region
      %s167 = ssub.s32 16384, 16384
      %168 = vsyncadd [#allocation20], %s167
      %s169 = sshll.u32 [#allocation21], 4
      %s170 = int_to_ptr.vmem [resolvable:$true] %s169
      %175 = dma.hbm_to_vmem [thread:$0]  %s15, 16384, %s170, [#allocation20], 128, 128, 8
    $region65: #{generator_forward.1} parent=1 // pred_fallthru
      _
    // Predicated region
    $region66: #{generator_forward.1} parent=1 // pred_check
      _
    $region67: #{generator_forward.1} parent=1 // pred_check_branch
      %177 = sbr.rel (0) target = $region69
    $region68: #{generator_forward.1} parent=1 // pred_region
      %s179 = ssub.s32 32, 32
      %180 = vsyncadd [#allocation23], %s179
      %s182 = sshll.u32 [#allocation22], 4
      %s183 = int_to_ptr.vmem [resolvable:$true] %s182
      %185 = dma.hbm_to_vmem [thread:$0]  %s16, 32, %s183, [#allocation23]
    $region69: #{generator_forward.1} parent=1 // pred_fallthru
      _
    // Predicated region
    $region70: #{generator_forward.1} parent=1 // pred_check
      _
    $region71: #{generator_forward.1} parent=1 // pred_check_branch
      %187 = sbr.rel (0) target = $region73
    $region72: #{generator_forward.1} parent=1 // pred_region
      %188 = dma.done [#allocation3], 128
    $region73: #{generator_forward.1} parent=1 // pred_fallthru
      _
    // Predicated region
    $region74: #{generator_forward.1} parent=1 // pred_check
      _
    $region75: #{generator_forward.1} parent=1 // pred_check_branch
      %190 = sbr.rel (0) target = $region77
    $region76: #{generator_forward.1} parent=1 // pred_region
      %191 = dma.done [#allocation5], 128
    $region77: #{generator_forward.1} parent=1 // pred_fallthru
      _
    // Predicated region
    $region78: #{generator_forward.1} parent=1 // pred_check
      _
    $region79: #{generator_forward.1} parent=1 // pred_check_branch
      %193 = sbr.rel (0) target = $region81
    $region80: #{generator_forward.1} parent=1 // pred_region
      %194 = dma.done [#allocation5], 16
    $region81: #{generator_forward.1} parent=1 // pred_fallthru
      _
    // Predicated region
    $region82: #{generator_forward.1} parent=1 // pred_check
      _
    $region83: #{generator_forward.1} parent=1 // pred_check_branch
      %196 = sbr.rel (0) target = $region85
    $region84: #{generator_forward.1} parent=1 // pred_region
      %197 = dma.done [#allocation8], 2048
    $region85: #{generator_forward.1} parent=1 // pred_fallthru
      _
    // Predicated region
    $region86: #{generator_forward.1} parent=1 // pred_check
      _
    $region87: #{generator_forward.1} parent=1 // pred_check_branch
      %199 = sbr.rel (0) target = $region89
    $region88: #{generator_forward.1} parent=1 // pred_region
      %200 = dma.done [#allocation8], 32
    $region89: #{generator_forward.1} parent=1 // pred_fallthru
      _
    // Predicated region
    $region90: #{generator_forward.1} parent=1 // pred_check
      _
    $region91: #{generator_forward.1} parent=1 // pred_check_branch
      %202 = sbr.rel (0) target = $region93
    $region92: #{generator_forward.1} parent=1 // pred_region
      %203 = dma.done [#allocation11], 32
    $region93: #{generator_forward.1} parent=1 // pred_fallthru
      _
    // Predicated region
    $region94: #{generator_forward.1} parent=1 // pred_check
      _
    $region95: #{generator_forward.1} parent=1 // pred_check_branch
      %205 = sbr.rel (0) target = $region97
    $region96: #{generator_forward.1} parent=1 // pred_region
      %206 = dma.done [#allocation11], 8192
    $region97: #{generator_forward.1} parent=1 // pred_fallthru
      _
    // Predicated region
    $region98: #{generator_forward.1} parent=1 // pred_check
      _
    $region99: #{generator_forward.1} parent=1 // pred_check_branch
      %208 = sbr.rel (0) target = $region101
    $region100: #{generator_forward.1} parent=1 // pred_region
      %209 = dma.done [#allocation14], 64
    $region101: #{generator_forward.1} parent=1 // pred_fallthru
      _
    // Predicated region
    $region102: #{generator_forward.1} parent=1 // pred_check
      _
    $region103: #{generator_forward.1} parent=1 // pred_check_branch
      %211 = sbr.rel (0) target = $region105
    $region104: #{generator_forward.1} parent=1 // pred_region
      %212 = dma.done [#allocation14], 64
    $region105: #{generator_forward.1} parent=1 // pred_fallthru
      _
    // Predicated region
    $region106: #{generator_forward.1} parent=1 // pred_check
      _
    $region107: #{generator_forward.1} parent=1 // pred_check_branch
      %214 = sbr.rel (0) target = $region109
    $region108: #{generator_forward.1} parent=1 // pred_region
      %215 = dma.done [#allocation17], 32768
    $region109: #{generator_forward.1} parent=1 // pred_fallthru
      _
    // Predicated region
    $region110: #{generator_forward.1} parent=1 // pred_check
      _
    $region111: #{generator_forward.1} parent=1 // pred_check_branch
      %217 = sbr.rel (0) target = $region113
    $region112: #{generator_forward.1} parent=1 // pred_region
      %218 = dma.done [#allocation17], 128
    $region113: #{generator_forward.1} parent=1 // pred_fallthru
      _
    // Predicated region
    $region114: #{generator_forward.1} parent=1 // pred_check
      _
    $region115: #{generator_forward.1} parent=1 // pred_check_branch
      %220 = sbr.rel (0) target = $region117
    $region116: #{generator_forward.1} parent=1 // pred_region
      %221 = dma.done [#allocation20], 128
    $region117: #{generator_forward.1} parent=1 // pred_fallthru
      _
    // Predicated region
    $region118: #{generator_forward.1} parent=1 // pred_check
      _
    $region119: #{generator_forward.1} parent=1 // pred_check_branch
      %223 = sbr.rel (0) target = $region121
    $region120: #{generator_forward.1} parent=1 // pred_region
      %224 = dma.done [#allocation20], 16384
    $region121: #{generator_forward.1} parent=1 // pred_fallthru
      _
    // Predicated region
    $region122: #{generator_forward.1} parent=1 // pred_check
      _
    $region123: #{generator_forward.1} parent=1 // pred_check_branch
      %226 = sbr.rel (0) target = $region125
    $region124: #{generator_forward.1} parent=1 // pred_region
      %227 = dma.done [#allocation23], 32
    $region125: #{generator_forward.1} parent=1 // pred_fallthru
      _
    %v229 = vld [vmem:[%s0] sm:$0xff]
    %v230 = vlaneseq
    %v231 = vand.u32 %v230, 127
    %232 = vset.pattern.permute.xlu0 0
    %233 = vperm.xlu0 %232, %v229
    %v234 = vpop.permute.xlu0 %233
    %vm235 = vcmp.eq.s32.totalorder %v234, %v231
    %v236 = vsel %vm235, 1, 0
    %v237 = vcvt.s32.f32 %v236
    %v238 = vld [vmem:[%s2] sm:$0xff]
    %v239 = vld [vmem:[%s2 + $0x8] sm:$0x3]
    %vm240 = vcmask 80896
    %v242 = vsel %vm240, %v237, 0
    %vm244 = vcmask 1041408
    %v246 = vsel %vm244, %v239, 0
    %248 = vmatprep.subr.mxu0 0.0
    %249 = vmatpush1.msra.mxu0 0.0
    %250 = vmatprep.subr.mxu0 0.0
    %251 = vmatpush1.msra.mxu0 0.0
    %252 = vmatprep.subr.mxu0 0.0
    %253 = vmatpush1.msra.mxu0 0.0
    %254 = vmatprep.subr.mxu0 0.0
    %255 = vmatpush1.msra.mxu0 0.0
    %256 = vmatprep.subr.mxu0 0.0
    %257 = vmatpush1.msra.mxu0 0.0
    %258 = vmatprep.subr.mxu0 0.0
    %259 = vmatpush1.msra.mxu0 0.0
    %260 = vmatprep.subr.mxu0 0.0
    %261 = vmatpush1.msra.mxu0 0.0
    %262 = vmatprep.subr.mxu0 0.0
    %263 = vmatpush1.msra.mxu0 0.0
    %264 = vmatprep.subr.mxu0 0.0
    %265 = vmatpush1.msra.mxu0 0.0
    %266 = vmatprep.subr.mxu0 0.0
    %267 = vmatpush1.msra.mxu0 0.0
    %268 = vmatprep.subr.mxu0 0.0
    %269 = vmatpush1.msra.mxu0 0.0
    %270 = vmatprep.subr.mxu0 0.0
    %271 = vmatpush1.msra.mxu0 0.0
    %272 = vmatprep.subr.mxu0 0.0
    %273 = vmatpush1.msra.mxu0 0.0
    %274 = vmatprep.subr.mxu0 0.0
    %275 = vmatpush1.msra.mxu0 0.0
    %276 = vmatprep.subr.mxu0 0.0
    %277 = vmatpush1.msra.mxu0 %v246
    %278 = vmatprep.subr.mxu0 0.0
    %279 = vmatpush1.msra.mxu0 %v238
    %280 = vmatprep.subr.mxu0 0.0
    %281 = vmatpush2.msra.mxu0 0.0
    %282 = vmatprep.subr.mxu0 0.0
    %283 = vmatpush2.msra.mxu0 0.0
    %284 = vmatprep.subr.mxu0 0.0
    %285 = vmatpush2.msra.mxu0 0.0
    %286 = vmatprep.subr.mxu0 0.0
    %287 = vmatpush2.msra.mxu0 0.0
    %288 = vmatprep.subr.mxu0 0.0
    %289 = vmatpush2.msra.mxu0 0.0
    %290 = vmatprep.subr.mxu0 0.0
    %291 = vmatpush2.msra.mxu0 0.0
    %292 = vmatprep.subr.mxu0 0.0
    %293 = vmatpush2.msra.mxu0 0.0
    %294 = vmatprep.subr.mxu0 0.0
    %295 = vmatpush2.msra.mxu0 0.0
    %296 = vmatprep.subr.mxu0 0.0
    %297 = vmatpush2.msra.mxu0 0.0
    %298 = vmatprep.subr.mxu0 0.0
    %299 = vmatpush2.msra.mxu0 0.0
    %300 = vmatprep.subr.mxu0 0.0
    %301 = vmatpush2.msra.mxu0 0.0
    %302 = vmatprep.subr.mxu0 0.0
    %303 = vmatpush2.msra.mxu0 0.0
    %304 = vmatprep.subr.mxu0 0.0
    %305 = vmatpush2.msra.mxu0 0.0
    %306 = vmatprep.subr.mxu0 0.0
    %307 = vmatpush2.msra.mxu0 0.0
    %308 = vmatprep.subr.mxu0 0.0
    %309 = vmatpush2.msra.mxu0 0.0
    %310 = vmatprep.subr.mxu0 0.0
    %311 = vmatpush2.msra.mxu0 0.0
    %312 = vmatprep.mubr.f32.mxu0 0.0
    %313 = vmatmul.mubr.f32.gmra.mxu0 %v242
    %v314 = vpop.f32.mrf.mxu0
    %v315 = vadd.f32 0.0, %v314
    %v316 = vpop.f32.mrf.mxu0
    %317 = vdwg.mxu0
    %v318 = vpack.c.bf16 %v315, %v315
    %v319 = vld [vmem:[#allocation4] sm:$0xf]
    %v320 = vld [vmem:[#allocation4 + $0x4] sm:$0x1]
    %v321 = vld [vmem:[#allocation2] sm:$0xff]
    %v322 = vpack.c.bf16 %v321, %v321
    %v323 = vld [vmem:[%s4] sm:$0xf]
    %v324 = vld [vmem:[%s4 + $0x4] sm:$0xf]
    %v325 = vld [vmem:[%s4 + $0x8] sm:$0xf]
    %v326 = vld [vmem:[%s4 + $0xc] sm:$0xf]
    %v331 = vunpack.c.l.b16 %v323
    %v332 = vunpack.c.l.b16 %v324
    %v333 = vunpack.c.l.b16 %v325
    %v334 = vunpack.c.l.b16 %v326
    %v335 = vpack.c.b16 %v332, %v331
    %v336 = vpack.c.b16 %v334, %v333
    %vm339 = vcmask 261120
    %v341 = vsel %vm339, %v322, 0
    %343 = vmatprep.subr.bf16.mxu0 0
    %344 = vmatpush1.bf16.msra.mxu0 0
    %345 = vmatprep.subr.bf16.mxu0 0
    %346 = vmatpush1.bf16.msra.mxu0 0
    %347 = vmatprep.subr.bf16.mxu0 0
    %348 = vmatpush1.bf16.msra.mxu0 0
    %349 = vmatprep.subr.bf16.mxu0 0
    %350 = vmatpush1.bf16.msra.mxu0 0
    %351 = vmatprep.subr.bf16.mxu0 0
    %352 = vmatpush1.bf16.msra.mxu0 0
    %353 = vmatprep.subr.bf16.mxu0 0
    %354 = vmatpush1.bf16.msra.mxu0 0
    %355 = vmatprep.subr.bf16.mxu0 0
    %356 = vmatpush1.bf16.msra.mxu0 %v336
    %357 = vmatprep.subr.bf16.mxu0 0
    %358 = vmatpush1.bf16.msra.mxu0 %v335
    %359 = vmatprep.subr.bf16.mxu0 0
    %360 = vmatpush2.bf16.msra.mxu0 0
    %361 = vmatprep.subr.bf16.mxu0 0
    %362 = vmatpush2.bf16.msra.mxu0 0
    %363 = vmatprep.subr.bf16.mxu0 0
    %364 = vmatpush2.bf16.msra.mxu0 0
    %365 = vmatprep.subr.bf16.mxu0 0
    %366 = vmatpush2.bf16.msra.mxu0 0
    %367 = vmatprep.subr.bf16.mxu0 0
    %368 = vmatpush2.bf16.msra.mxu0 0
    %369 = vmatprep.subr.bf16.mxu0 0
    %370 = vmatpush2.bf16.msra.mxu0 0
    %371 = vmatprep.subr.bf16.mxu0 0
    %372 = vmatpush2.bf16.msra.mxu0 0
    %373 = vmatprep.subr.bf16.mxu0 0
    %374 = vmatpush2.bf16.msra.mxu0 0
    %375 = vmatprep.mubr.bf16.mxu0 0
    %376 = vmatmul.mubr.bf16.gmra.mxu0 %v341
    %v377 = vpop.f32.mrf.mxu0
    %v378 = vadd.f32 0.0, %v377
    %v379 = vpop.f32.mrf.mxu0
    %v380 = vpop.f32.mrf.mxu0
    %v381 = vpop.f32.mrf.mxu0
    %382 = vdwg.mxu0
    %v385 = vunpack.c.l.b16 %v319
    %v386 = vunpack.c.l.b16 %v320
    %v387 = vpack.c.b16 %v386, %v385
    %v389 = vsel %vm240, %v318, 0
    %vm391 = vcmask 1044480
    %v393 = vsel %vm391, %v387, 0
    %395 = vmatprep.subr.bf16.mxu0 0
    %396 = vmatpush1.bf16.msra.mxu0 0
    %397 = vmatprep.subr.bf16.mxu0 0
    %398 = vmatpush1.bf16.msra.mxu0 0
    %399 = vmatprep.subr.bf16.mxu0 0
    %400 = vmatpush1.bf16.msra.mxu0 0
    %401 = vmatprep.subr.bf16.mxu0 0
    %402 = vmatpush1.bf16.msra.mxu0 0
    %403 = vmatprep.subr.bf16.mxu0 0
    %404 = vmatpush1.bf16.msra.mxu0 0
    %405 = vmatprep.subr.bf16.mxu0 0
    %406 = vmatpush1.bf16.msra.mxu0 0
    %407 = vmatprep.subr.bf16.mxu0 0
    %408 = vmatpush1.bf16.msra.mxu0 0
    %409 = vmatprep.subr.bf16.mxu0 0
    %410 = vmatpush1.bf16.msra.mxu0 %v393
    %411 = vmatprep.subr.bf16.mxu0 0
    %412 = vmatpush2.bf16.msra.mxu0 0
    %413 = vmatprep.subr.bf16.mxu0 0
    %414 = vmatpush2.bf16.msra.mxu0 0
    %415 = vmatprep.subr.bf16.mxu0 0
    %416 = vmatpush2.bf16.msra.mxu0 0
    %417 = vmatprep.subr.bf16.mxu0 0
    %418 = vmatpush2.bf16.msra.mxu0 0
    %419 = vmatprep.subr.bf16.mxu0 0
    %420 = vmatpush2.bf16.msra.mxu0 0
    %421 = vmatprep.subr.bf16.mxu0 0
    %422 = vmatpush2.bf16.msra.mxu0 0
    %423 = vmatprep.subr.bf16.mxu0 0
    %424 = vmatpush2.bf16.msra.mxu0 0
    %425 = vmatprep.subr.bf16.mxu0 0
    %426 = vmatpush2.bf16.msra.mxu0 0
    %427 = vmatprep.mubr.bf16.mxu0 0
    %428 = vmatmul.mubr.bf16.gmra.mxu0 %v389
    %v429 = vpop.f32.mrf.mxu0
    %v430 = vadd.f32 %v378, %v429
    %v431 = vpop.f32.mrf.mxu0
    %v432 = vpop.f32.mrf.mxu0
    %v433 = vpop.f32.mrf.mxu0
    %434 = vdwg.mxu0
    %v435 = vld [vmem:[#allocation6] sm:$0x1]
    %v437 = vlaneseq
    %v438 = vshrl.u32 %v437, 7
    %v439 = vsub.s32 0, %v438
    %v440 = vrot.slane %v435, %v439
    %v442 = vadd.f32 %v430, %v440
    %vm443 = vcmp.gt.f32.partialorder %v442, 0.0
    %v444 = vmul.f32 %v442, 0.2
    %v445 = vsel %vm443, %v442, %v444
    %v446 = vpack.c.bf16 %v445, %v445
    %v447 = vld [vmem:[#allocation7] sm:$0xff]
    %v448 = vld [vmem:[#allocation7 + $0x8] sm:$0xff]
    %v449 = vld [vmem:[#allocation7 + $0x10] sm:$0xff]
    %v450 = vld [vmem:[#allocation7 + $0x18] sm:$0xff]
    %v451 = vld [vmem:[#allocation7 + $0x20] sm:$0xff]
    %v452 = vld [vmem:[#allocation7 + $0x28] sm:$0xff]
    %v453 = vld [vmem:[#allocation7 + $0x30] sm:$0xff]
    %v454 = vld [vmem:[#allocation7 + $0x38] sm:$0xff]
    %v455 = vld [vmem:[#allocation7 + $0x40] sm:$0xff]
    %v456 = vld [vmem:[#allocation7 + $0x48] sm:$0xff]
    %v457 = vld [vmem:[#allocation7 + $0x50] sm:$0xff]
    %v458 = vld [vmem:[#allocation7 + $0x58] sm:$0xff]
    %v459 = vld [vmem:[#allocation7 + $0x60] sm:$0xff]
    %v460 = vld [vmem:[#allocation7 + $0x68] sm:$0xff]
    %v461 = vld [vmem:[#allocation7 + $0x70] sm:$0xff]
    %v462 = vld [vmem:[#allocation7 + $0x78] sm:$0xff]
    %v479 = vunpack.c.l.b16 %v447
    %v480 = vunpack.c.h.b16 %v447
    %v481 = vunpack.c.l.b16 %v448
    %v482 = vunpack.c.h.b16 %v448
    %v483 = vunpack.c.l.b16 %v449
    %v484 = vunpack.c.h.b16 %v449
    %v485 = vunpack.c.l.b16 %v450
    %v486 = vunpack.c.h.b16 %v450
    %v487 = vunpack.c.l.b16 %v451
    %v488 = vunpack.c.h.b16 %v451
    %v489 = vunpack.c.l.b16 %v452
    %v490 = vunpack.c.h.b16 %v452
    %v491 = vunpack.c.l.b16 %v453
    %v492 = vunpack.c.h.b16 %v453
    %v493 = vunpack.c.l.b16 %v454
    %v494 = vunpack.c.h.b16 %v454
    %v495 = vunpack.c.l.b16 %v455
    %v496 = vunpack.c.h.b16 %v455
    %v497 = vunpack.c.l.b16 %v456
    %v498 = vunpack.c.h.b16 %v456
    %v499 = vunpack.c.l.b16 %v457
    %v500 = vunpack.c.h.b16 %v457
    %v501 = vunpack.c.l.b16 %v458
    %v502 = vunpack.c.h.b16 %v458
    %v503 = vunpack.c.l.b16 %v459
    %v504 = vunpack.c.h.b16 %v459
    %v505 = vunpack.c.l.b16 %v460
    %v506 = vunpack.c.h.b16 %v460
    %v507 = vunpack.c.l.b16 %v461
    %v508 = vunpack.c.h.b16 %v461
    %v509 = vunpack.c.l.b16 %v462
    %v510 = vunpack.c.h.b16 %v462
    %v511 = vpack.c.b16 %v481, %v479
    %v512 = vpack.c.b16 %v482, %v480
    %v513 = vpack.c.b16 %v485, %v483
    %v514 = vpack.c.b16 %v486, %v484
    %v515 = vpack.c.b16 %v489, %v487
    %v516 = vpack.c.b16 %v490, %v488
    %v517 = vpack.c.b16 %v493, %v491
    %v518 = vpack.c.b16 %v494, %v492
    %v519 = vpack.c.b16 %v497, %v495
    %v520 = vpack.c.b16 %v498, %v496
    %v521 = vpack.c.b16 %v501, %v499
    %v522 = vpack.c.b16 %v502, %v500
    %v523 = vpack.c.b16 %v505, %v503
    %v524 = vpack.c.b16 %v506, %v504
    %v525 = vpack.c.b16 %v509, %v507
    %v526 = vpack.c.b16 %v510, %v508
    %543 = vmatprep.subr.bf16.mxu0 %v526
    %544 = vmatpush1.bf16.msra.mxu0 %v525
    %545 = vmatprep.subr.bf16.mxu0 %v524
    %546 = vmatpush1.bf16.msra.mxu0 %v523
    %547 = vmatprep.subr.bf16.mxu0 %v522
    %548 = vmatpush1.bf16.msra.mxu0 %v521
    %549 = vmatprep.subr.bf16.mxu0 %v520
    %550 = vmatpush1.bf16.msra.mxu0 %v519
    %551 = vmatprep.subr.bf16.mxu0 %v518
    %552 = vmatpush1.bf16.msra.mxu0 %v517
    %553 = vmatprep.subr.bf16.mxu0 %v516
    %554 = vmatpush1.bf16.msra.mxu0 %v515
    %555 = vmatprep.subr.bf16.mxu0 %v514
    %556 = vmatpush1.bf16.msra.mxu0 %v513
    %557 = vmatprep.subr.bf16.mxu0 %v512
    %558 = vmatpush1.bf16.msra.mxu0 %v511
    %559 = vmatprep.subr.bf16.mxu0 0
    %560 = vmatpush2.bf16.msra.mxu0 0
    %561 = vmatprep.subr.bf16.mxu0 0
    %562 = vmatpush2.bf16.msra.mxu0 0
    %563 = vmatprep.subr.bf16.mxu0 0
    %564 = vmatpush2.bf16.msra.mxu0 0
    %565 = vmatprep.subr.bf16.mxu0 0
    %566 = vmatpush2.bf16.msra.mxu0 0
    %567 = vmatprep.subr.bf16.mxu0 0
    %568 = vmatpush2.bf16.msra.mxu0 0
    %569 = vmatprep.subr.bf16.mxu0 0
    %570 = vmatpush2.bf16.msra.mxu0 0
    %571 = vmatprep.subr.bf16.mxu0 0
    %572 = vmatpush2.bf16.msra.mxu0 0
    %573 = vmatprep.subr.bf16.mxu0 0
    %574 = vmatpush2.bf16.msra.mxu0 0
    %575 = vmatprep.mubr.bf16.mxu0 0
    %576 = vmatmul.mubr.bf16.gmra.mxu0 %v446
    %v577 = vpop.f32.mrf.mxu0
    %v578 = vadd.f32 0.0, %v577
    %v579 = vpop.f32.mrf.mxu0
    %v580 = vadd.f32 0.0, %v579
    %v581 = vpop.f32.mrf.mxu0
    %v582 = vpop.f32.mrf.mxu0
    %583 = vdwg.mxu0
    %v584 = vld [vmem:[#allocation9] sm:$0x3]
    %v585 = vld [vmem:[#allocation10] sm:$0x3]
    %v586 = vrot.slane %v578, 4
    %v587 = vadd.f32 %v578, %v586
    %v588 = vrot.slane %v587, 2
    %v589 = vadd.f32 %v587, %v588
    %v590 = vrot.slane %v589, 1
    %v591 = vadd.f32 %v589, %v590
    %v592 = vrot.slane %v580, 4
    %v593 = vadd.f32 %v580, %v592
    %v594 = vrot.slane %v593, 2
    %v595 = vadd.f32 %v593, %v594
    %v596 = vrot.slane %v595, 1
    %v597 = vadd.f32 %v595, %v596
    %v598 = vrcp.pop 8.0
    %v599 = vmul.f32 %v591, %v598
    %v600 = vmul.f32 %v597, %v598
    %v601 = vsub.f32 %v578, %v599
    %v602 = vsub.f32 %v580, %v600
    %v603 = vmul.f32 %v601, %v601
    %v604 = vmul.f32 %v602, %v602
    %v605 = vrot.slane %v603, 4
    %v606 = vadd.f32 %v603, %v605
    %v607 = vrot.slane %v606, 2
    %v608 = vadd.f32 %v606, %v607
    %v609 = vrot.slane %v608, 1
    %v610 = vadd.f32 %v608, %v609
    %v611 = vrot.slane %v604, 4
    %v612 = vadd.f32 %v604, %v611
    %v613 = vrot.slane %v612, 2
    %v614 = vadd.f32 %v612, %v613
    %v615 = vrot.slane %v614, 1
    %v616 = vadd.f32 %v614, %v615
    %v617 = vmul.f32 %v610, %v598
    %v618 = vmul.f32 %v616, %v598
    %v619 = vadd.f32 %v617, 1e-05
    %v620 = vadd.f32 %v618, 1e-05
    %v621 = vrsqrt.pop %v619
    %v622 = vrsqrt.pop %v620
    %v625 = vcombine.low %v621, %v622
    %v627 = vunpack.c.l.s4 1966171168
    %v628 = vunpack.c.0.s8 %v627
    %v629 = vlaneseq
    %v630 = vshrl.u32 %v629, 7
    %v631 = vsub.s32 %v628, %v630
    %v632 = vrot.slane %v625, %v631
    %v634 = vunpack.c.l.s4 1966171168
    %v635 = vunpack.c.0.s8 %v634
    %v636 = vlaneseq
    %v637 = vshrl.u32 %v636, 7
    %v638 = vsub.s32 %v635, %v637
    %v639 = vrot.slane %v632, %v638
    %v641 = vmul.f32 %v584, %v639
    %v643 = vlaneseq
    %v644 = vshrl.u32 %v643, 7
    %v645 = vsub.s32 0, %v644
    %v646 = vrot.slane %v641, %v645
    %v647 = vlaneseq
    %v648 = vshrl.u32 %v647, 7
    %v649 = vsub.s32 1, %v648
    %v650 = vrot.slane %v641, %v649
    %v653 = vmul.f32 %v601, %v646
    %v654 = vmul.f32 %v602, %v650
    %v656 = vlaneseq
    %v657 = vshrl.u32 %v656, 7
    %v658 = vsub.s32 0, %v657
    %v659 = vrot.slane %v585, %v658
    %v660 = vlaneseq
    %v661 = vshrl.u32 %v660, 7
    %v662 = vsub.s32 1, %v661
    %v663 = vrot.slane %v585, %v662
    %v666 = vadd.f32 %v653, %v659
    %v667 = vadd.f32 %v654, %v663
    %vm668 = vcmp.gt.f32.partialorder %v666, 0.0
    %vm669 = vcmp.gt.f32.partialorder %v667, 0.0
    %v670 = vmul.f32 %v666, 0.2
    %v671 = vmul.f32 %v667, 0.2
    %v672 = vsel %vm668, %v666, %v670
    %v673 = vsel %vm669, %v667, %v671
    %v674 = vpack.c.bf16 %v672, %v672
    %v675 = vpack.c.bf16 %v673, %v673
    %v676 = vld [vmem:[#allocation12] sm:$0xff]
    %v677 = vld [vmem:[#allocation12 + $0x8] sm:$0xff]
    %v678 = vld [vmem:[#allocation12 + $0x10] sm:$0xff]
    %v679 = vld [vmem:[#allocation12 + $0x18] sm:$0xff]
    %v680 = vld [vmem:[#allocation12 + $0x20] sm:$0xff]
    %v681 = vld [vmem:[#allocation12 + $0x28] sm:$0xff]
    %v682 = vld [vmem:[#allocation12 + $0x30] sm:$0xff]
    %v683 = vld [vmem:[#allocation12 + $0x38] sm:$0xff]
    %v684 = vld [vmem:[#allocation12 + $0x40] sm:$0xff]
    %v685 = vld [vmem:[#allocation12 + $0x48] sm:$0xff]
    %v686 = vld [vmem:[#allocation12 + $0x50] sm:$0xff]
    %v687 = vld [vmem:[#allocation12 + $0x58] sm:$0xff]
    %v688 = vld [vmem:[#allocation12 + $0x60] sm:$0xff]
    %v689 = vld [vmem:[#allocation12 + $0x68] sm:$0xff]
    %v690 = vld [vmem:[#allocation12 + $0x70] sm:$0xff]
    %v691 = vld [vmem:[#allocation12 + $0x78] sm:$0xff]
    %v692 = vld [vmem:[#allocation12 + $0x80] sm:$0xff]
    %v693 = vld [vmem:[#allocation12 + $0x88] sm:$0xff]
    %v694 = vld [vmem:[#allocation12 + $0x90] sm:$0xff]
    %v695 = vld [vmem:[#allocation12 + $0x98] sm:$0xff]
    %v696 = vld [vmem:[#allocation12 + $0xa0] sm:$0xff]
    %v697 = vld [vmem:[#allocation12 + $0xa8] sm:$0xff]
    %v698 = vld [vmem:[#allocation12 + $0xb0] sm:$0xff]
    %v699 = vld [vmem:[#allocation12 + $0xb8] sm:$0xff]
    %v700 = vld [vmem:[#allocation12 + $0xc0] sm:$0xff]
    %v701 = vld [vmem:[#allocation12 + $0xc8] sm:$0xff]
    %v702 = vld [vmem:[#allocation12 + $0xd0] sm:$0xff]
    %v703 = vld [vmem:[#allocation12 + $0xd8] sm:$0xff]
    %v704 = vld [vmem:[#allocation12 + $0xe0] sm:$0xff]
    %v705 = vld [vmem:[#allocation12 + $0xe8] sm:$0xff]
    %v706 = vld [vmem:[#allocation12 + $0xf0] sm:$0xff]
    %v707 = vld [vmem:[#allocation12 + $0xf8] sm:$0xff]
    %v708 = vld [vmem:[#allocation12 + $0x100] sm:$0xff]
    %v709 = vld [vmem:[#allocation12 + $0x108] sm:$0xff]
    %v710 = vld [vmem:[#allocation12 + $0x110] sm:$0xff]
    %v711 = vld [vmem:[#allocation12 + $0x118] sm:$0xff]
    %v712 = vld [vmem:[#allocation12 + $0x120] sm:$0xff]
    %v713 = vld [vmem:[#allocation12 + $0x128] sm:$0xff]
    %v714 = vld [vmem:[#allocation12 + $0x130] sm:$0xff]
    %v715 = vld [vmem:[#allocation12 + $0x138] sm:$0xff]
    %v716 = vld [vmem:[#allocation12 + $0x140] sm:$0xff]
    %v717 = vld [vmem:[#allocation12 + $0x148] sm:$0xff]
    %v718 = vld [vmem:[#allocation12 + $0x150] sm:$0xff]
    %v719 = vld [vmem:[#allocation12 + $0x158] sm:$0xff]
    %v720 = vld [vmem:[#allocation12 + $0x160] sm:$0xff]
    %v721 = vld [vmem:[#allocation12 + $0x168] sm:$0xff]
    %v722 = vld [vmem:[#allocation12 + $0x170] sm:$0xff]
    %v723 = vld [vmem:[#allocation12 + $0x178] sm:$0xff]
    %v724 = vld [vmem:[#allocation12 + $0x180] sm:$0xff]
    %v725 = vld [vmem:[#allocation12 + $0x188] sm:$0xff]
    %v726 = vld [vmem:[#allocation12 + $0x190] sm:$0xff]
    %v727 = vld [vmem:[#allocation12 + $0x198] sm:$0xff]
    %v728 = vld [vmem:[#allocation12 + $0x1a0] sm:$0xff]
    %v729 = vld [vmem:[#allocation12 + $0x1a8] sm:$0xff]
    %v730 = vld [vmem:[#allocation12 + $0x1b0] sm:$0xff]
    %v731 = vld [vmem:[#allocation12 + $0x1b8] sm:$0xff]
    %v732 = vld [vmem:[#allocation12 + $0x1c0] sm:$0xff]
    %v733 = vld [vmem:[#allocation12 + $0x1c8] sm:$0xff]
    %v734 = vld [vmem:[#allocation12 + $0x1d0] sm:$0xff]
    %v735 = vld [vmem:[#allocation12 + $0x1d8] sm:$0xff]
    %v736 = vld [vmem:[#allocation12 + $0x1e0] sm:$0xff]
    %v737 = vld [vmem:[#allocation12 + $0x1e8] sm:$0xff]
    %v738 = vld [vmem:[#allocation12 + $0x1f0] sm:$0xff]
    %v739 = vld [vmem:[#allocation12 + $0x1f8] sm:$0xff]
    %v804 = vunpack.c.l.b16 %v676
    %v805 = vunpack.c.h.b16 %v676
    %v806 = vunpack.c.l.b16 %v677
    %v807 = vunpack.c.h.b16 %v677
    %v808 = vunpack.c.l.b16 %v678
    %v809 = vunpack.c.h.b16 %v678
    %v810 = vunpack.c.l.b16 %v679
    %v811 = vunpack.c.h.b16 %v679
    %v812 = vunpack.c.l.b16 %v680
    %v813 = vunpack.c.h.b16 %v680
    %v814 = vunpack.c.l.b16 %v681
    %v815 = vunpack.c.h.b16 %v681
    %v816 = vunpack.c.l.b16 %v682
    %v817 = vunpack.c.h.b16 %v682
    %v818 = vunpack.c.l.b16 %v683
    %v819 = vunpack.c.h.b16 %v683
    %v820 = vunpack.c.l.b16 %v684
    %v821 = vunpack.c.h.b16 %v684
    %v822 = vunpack.c.l.b16 %v685
    %v823 = vunpack.c.h.b16 %v685
    %v824 = vunpack.c.l.b16 %v686
    %v825 = vunpack.c.h.b16 %v686
    %v826 = vunpack.c.l.b16 %v687
    %v827 = vunpack.c.h.b16 %v687
    %v828 = vunpack.c.l.b16 %v688
    %v829 = vunpack.c.h.b16 %v688
    %v830 = vunpack.c.l.b16 %v689
    %v831 = vunpack.c.h.b16 %v689
    %v832 = vunpack.c.l.b16 %v690
    %v833 = vunpack.c.h.b16 %v690
    %v834 = vunpack.c.l.b16 %v691
    %v835 = vunpack.c.h.b16 %v691
    %v836 = vunpack.c.l.b16 %v692
    %v837 = vunpack.c.h.b16 %v692
    %v838 = vunpack.c.l.b16 %v693
    %v839 = vunpack.c.h.b16 %v693
    %v840 = vunpack.c.l.b16 %v694
    %v841 = vunpack.c.h.b16 %v694
    %v842 = vunpack.c.l.b16 %v695
    %v843 = vunpack.c.h.b16 %v695
    %v844 = vunpack.c.l.b16 %v696
    %v845 = vunpack.c.h.b16 %v696
    %v846 = vunpack.c.l.b16 %v697
    %v847 = vunpack.c.h.b16 %v697
    %v848 = vunpack.c.l.b16 %v698
    %v849 = vunpack.c.h.b16 %v698
    %v850 = vunpack.c.l.b16 %v699
    %v851 = vunpack.c.h.b16 %v699
    %v852 = vunpack.c.l.b16 %v700
    %v853 = vunpack.c.h.b16 %v700
    %v854 = vunpack.c.l.b16 %v701
    %v855 = vunpack.c.h.b16 %v701
    %v856 = vunpack.c.l.b16 %v702
    %v857 = vunpack.c.h.b16 %v702
    %v858 = vunpack.c.l.b16 %v703
    %v859 = vunpack.c.h.b16 %v703
    %v860 = vunpack.c.l.b16 %v704
    %v861 = vunpack.c.h.b16 %v704
    %v862 = vunpack.c.l.b16 %v705
    %v863 = vunpack.c.h.b16 %v705
    %v864 = vunpack.c.l.b16 %v706
    %v865 = vunpack.c.h.b16 %v706
    %v866 = vunpack.c.l.b16 %v707
    %v867 = vunpack.c.h.b16 %v707
    %v868 = vunpack.c.l.b16 %v708
    %v869 = vunpack.c.h.b16 %v708
    %v870 = vunpack.c.l.b16 %v709
    %v871 = vunpack.c.h.b16 %v709
    %v872 = vunpack.c.l.b16 %v710
    %v873 = vunpack.c.h.b16 %v710
    %v874 = vunpack.c.l.b16 %v711
    %v875 = vunpack.c.h.b16 %v711
    %v876 = vunpack.c.l.b16 %v712
    %v877 = vunpack.c.h.b16 %v712
    %v878 = vunpack.c.l.b16 %v713
    %v879 = vunpack.c.h.b16 %v713
    %v880 = vunpack.c.l.b16 %v714
    %v881 = vunpack.c.h.b16 %v714
    %v882 = vunpack.c.l.b16 %v715
    %v883 = vunpack.c.h.b16 %v715
    %v884 = vunpack.c.l.b16 %v716
    %v885 = vunpack.c.h.b16 %v716
    %v886 = vunpack.c.l.b16 %v717
    %v887 = vunpack.c.h.b16 %v717
    %v888 = vunpack.c.l.b16 %v718
    %v889 = vunpack.c.h.b16 %v718
    %v890 = vunpack.c.l.b16 %v719
    %v891 = vunpack.c.h.b16 %v719
    %v892 = vunpack.c.l.b16 %v720
    %v893 = vunpack.c.h.b16 %v720
    %v894 = vunpack.c.l.b16 %v721
    %v895 = vunpack.c.h.b16 %v721
    %v896 = vunpack.c.l.b16 %v722
    %v897 = vunpack.c.h.b16 %v722
    %v898 = vunpack.c.l.b16 %v723
    %v899 = vunpack.c.h.b16 %v723
    %v900 = vunpack.c.l.b16 %v724
    %v901 = vunpack.c.h.b16 %v724
    %v902 = vunpack.c.l.b16 %v725
    %v903 = vunpack.c.h.b16 %v725
    %v904 = vunpack.c.l.b16 %v726
    %v905 = vunpack.c.h.b16 %v726
    %v906 = vunpack.c.l.b16 %v727
    %v907 = vunpack.c.h.b16 %v727
    %v908 = vunpack.c.l.b16 %v728
    %v909 = vunpack.c.h.b16 %v728
    %v910 = vunpack.c.l.b16 %v729
    %v911 = vunpack.c.h.b16 %v729
    %v912 = vunpack.c.l.b16 %v730
    %v913 = vunpack.c.h.b16 %v730
    %v914 = vunpack.c.l.b16 %v731
    %v915 = vunpack.c.h.b16 %v731
    %v916 = vunpack.c.l.b16 %v732
    %v917 = vunpack.c.h.b16 %v732
    %v918 = vunpack.c.l.b16 %v733
    %v919 = vunpack.c.h.b16 %v733
    %v920 = vunpack.c.l.b16 %v734
    %v921 = vunpack.c.h.b16 %v734
    %v922 = vunpack.c.l.b16 %v735
    %v923 = vunpack.c.h.b16 %v735
    %v924 = vunpack.c.l.b16 %v736
    %v925 = vunpack.c.h.b16 %v736
    %v926 = vunpack.c.l.b16 %v737
    %v927 = vunpack.c.h.b16 %v737
    %v928 = vunpack.c.l.b16 %v738
    %v929 = vunpack.c.h.b16 %v738
    %v930 = vunpack.c.l.b16 %v739
    %v931 = vunpack.c.h.b16 %v739
    %v932 = vpack.c.b16 %v808, %v804
    %v933 = vpack.c.b16 %v809, %v805
    %v934 = vpack.c.b16 %v810, %v806
    %v935 = vpack.c.b16 %v811, %v807
    %v936 = vpack.c.b16 %v816, %v812
    %v937 = vpack.c.b16 %v817, %v813
    %v938 = vpack.c.b16 %v818, %v814
    %v939 = vpack.c.b16 %v819, %v815
    %v940 = vpack.c.b16 %v824, %v820
    %v941 = vpack.c.b16 %v825, %v821
    %v942 = vpack.c.b16 %v826, %v822
    %v943 = vpack.c.b16 %v827, %v823
    %v944 = vpack.c.b16 %v832, %v828
    %v945 = vpack.c.b16 %v833, %v829
    %v946 = vpack.c.b16 %v834, %v830
    %v947 = vpack.c.b16 %v835, %v831
    %v948 = vpack.c.b16 %v840, %v836
    %v949 = vpack.c.b16 %v841, %v837
    %v950 = vpack.c.b16 %v842, %v838
    %v951 = vpack.c.b16 %v843, %v839
    %v952 = vpack.c.b16 %v848, %v844
    %v953 = vpack.c.b16 %v849, %v845
    %v954 = vpack.c.b16 %v850, %v846
    %v955 = vpack.c.b16 %v851, %v847
    %v956 = vpack.c.b16 %v856, %v852
    %v957 = vpack.c.b16 %v857, %v853
    %v958 = vpack.c.b16 %v858, %v854
    %v959 = vpack.c.b16 %v859, %v855
    %v960 = vpack.c.b16 %v864, %v860
    %v961 = vpack.c.b16 %v865, %v861
    %v962 = vpack.c.b16 %v866, %v862
    %v963 = vpack.c.b16 %v867, %v863
    %v964 = vpack.c.b16 %v872, %v868
    %v965 = vpack.c.b16 %v873, %v869
    %v966 = vpack.c.b16 %v874, %v870
    %v967 = vpack.c.b16 %v875, %v871
    %v968 = vpack.c.b16 %v880, %v876
    %v969 = vpack.c.b16 %v881, %v877
    %v970 = vpack.c.b16 %v882, %v878
    %v971 = vpack.c.b16 %v883, %v879
    %v972 = vpack.c.b16 %v888, %v884
    %v973 = vpack.c.b16 %v889, %v885
    %v974 = vpack.c.b16 %v890, %v886
    %v975 = vpack.c.b16 %v891, %v887
    %v976 = vpack.c.b16 %v896, %v892
    %v977 = vpack.c.b16 %v897, %v893
    %v978 = vpack.c.b16 %v898, %v894
    %v979 = vpack.c.b16 %v899, %v895
    %v980 = vpack.c.b16 %v904, %v900
    %v981 = vpack.c.b16 %v905, %v901
    %v982 = vpack.c.b16 %v906, %v902
    %v983 = vpack.c.b16 %v907, %v903
    %v984 = vpack.c.b16 %v912, %v908
    %v985 = vpack.c.b16 %v913, %v909
    %v986 = vpack.c.b16 %v914, %v910
    %v987 = vpack.c.b16 %v915, %v911
    %v988 = vpack.c.b16 %v920, %v916
    %v989 = vpack.c.b16 %v921, %v917
    %v990 = vpack.c.b16 %v922, %v918
    %v991 = vpack.c.b16 %v923, %v919
    %v992 = vpack.c.b16 %v928, %v924
    %v993 = vpack.c.b16 %v929, %v925
    %v994 = vpack.c.b16 %v930, %v926
    %v995 = vpack.c.b16 %v931, %v927
    %1060 = vmatprep.subr.bf16.mxu0 %v961
    %1061 = vmatpush1.bf16.msra.mxu0 %v960
    %1062 = vmatprep.subr.bf16.mxu0 %v957
    %1063 = vmatpush1.bf16.msra.mxu0 %v956
    %1064 = vmatprep.subr.bf16.mxu0 %v953
    %1065 = vmatpush1.bf16.msra.mxu0 %v952
    %1066 = vmatprep.subr.bf16.mxu0 %v949
    %1067 = vmatpush1.bf16.msra.mxu0 %v948
    %1068 = vmatprep.subr.bf16.mxu0 %v945
    %1069 = vmatpush1.bf16.msra.mxu0 %v944
    %1070 = vmatprep.subr.bf16.mxu0 %v941
    %1071 = vmatpush1.bf16.msra.mxu0 %v940
    %1072 = vmatprep.subr.bf16.mxu0 %v937
    %1073 = vmatpush1.bf16.msra.mxu0 %v936
    %1074 = vmatprep.subr.bf16.mxu0 %v933
    %1075 = vmatpush1.bf16.msra.mxu0 %v932
    %1076 = vmatprep.subr.bf16.mxu0 %v993
    %1077 = vmatpush2.bf16.msra.mxu0 %v992
    %1078 = vmatprep.subr.bf16.mxu0 %v989
    %1079 = vmatpush2.bf16.msra.mxu0 %v988
    %1080 = vmatprep.subr.bf16.mxu0 %v985
    %1081 = vmatpush2.bf16.msra.mxu0 %v984
    %1082 = vmatprep.subr.bf16.mxu0 %v981
    %1083 = vmatpush2.bf16.msra.mxu0 %v980
    %1084 = vmatprep.subr.bf16.mxu0 %v977
    %1085 = vmatpush2.bf16.msra.mxu0 %v976
    %1086 = vmatprep.subr.bf16.mxu0 %v973
    %1087 = vmatpush2.bf16.msra.mxu0 %v972
    %1088 = vmatprep.subr.bf16.mxu0 %v969
    %1089 = vmatpush2.bf16.msra.mxu0 %v968
    %1090 = vmatprep.subr.bf16.mxu0 %v965
    %1091 = vmatpush2.bf16.msra.mxu0 %v964
    %1092 = vmatprep.mubr.bf16.mxu0 %v675
    %1093 = vmatmul.mubr.bf16.gmra.mxu0 %v674
    %v1094 = vpop.f32.mrf.mxu0
    %v1095 = vadd.f32 0.0, %v1094
    %v1096 = vpop.f32.mrf.mxu0
    %v1097 = vadd.f32 0.0, %v1096
    %v1098 = vpop.f32.mrf.mxu0
    %v1099 = vpop.f32.mrf.mxu0
    %1100 = vdwg.mxu0
    %1101 = vmatprep.subr.bf16.mxu0 %v963
    %1102 = vmatpush1.bf16.msra.mxu0 %v962
    %1103 = vmatprep.subr.bf16.mxu0 %v959
    %1104 = vmatpush1.bf16.msra.mxu0 %v958
    %1105 = vmatprep.subr.bf16.mxu0 %v955
    %1106 = vmatpush1.bf16.msra.mxu0 %v954
    %1107 = vmatprep.subr.bf16.mxu0 %v951
    %1108 = vmatpush1.bf16.msra.mxu0 %v950
    %1109 = vmatprep.subr.bf16.mxu0 %v947
    %1110 = vmatpush1.bf16.msra.mxu0 %v946
    %1111 = vmatprep.subr.bf16.mxu0 %v943
    %1112 = vmatpush1.bf16.msra.mxu0 %v942
    %1113 = vmatprep.subr.bf16.mxu0 %v939
    %1114 = vmatpush1.bf16.msra.mxu0 %v938
    %1115 = vmatprep.subr.bf16.mxu0 %v935
    %1116 = vmatpush1.bf16.msra.mxu0 %v934
    %1117 = vmatprep.subr.bf16.mxu0 %v995
    %1118 = vmatpush2.bf16.msra.mxu0 %v994
    %1119 = vmatprep.subr.bf16.mxu0 %v991
    %1120 = vmatpush2.bf16.msra.mxu0 %v990
    %1121 = vmatprep.subr.bf16.mxu0 %v987
    %1122 = vmatpush2.bf16.msra.mxu0 %v986
    %1123 = vmatprep.subr.bf16.mxu0 %v983
    %1124 = vmatpush2.bf16.msra.mxu0 %v982
    %1125 = vmatprep.subr.bf16.mxu0 %v979
    %1126 = vmatpush2.bf16.msra.mxu0 %v978
    %1127 = vmatprep.subr.bf16.mxu0 %v975
    %1128 = vmatpush2.bf16.msra.mxu0 %v974
    %1129 = vmatprep.subr.bf16.mxu0 %v971
    %1130 = vmatpush2.bf16.msra.mxu0 %v970
    %1131 = vmatprep.subr.bf16.mxu0 %v967
    %1132 = vmatpush2.bf16.msra.mxu0 %v966
    %1133 = vmatprep.mubr.bf16.mxu0 %v675
    %1134 = vmatmul.mubr.bf16.gmra.mxu0 %v674
    %v1135 = vpop.f32.mrf.mxu0
    %v1136 = vadd.f32 0.0, %v1135
    %v1137 = vpop.f32.mrf.mxu0
    %v1138 = vadd.f32 0.0, %v1137
    %v1139 = vpop.f32.mrf.mxu0
    %v1140 = vpop.f32.mrf.mxu0
    %1141 = vdwg.mxu0
    %v1142 = vld [vmem:[#allocation13] sm:$0xf]
    %v1143 = vld [vmem:[#allocation15] sm:$0xf]
    %v1144 = vrot.slane %v1095, 4
    %v1145 = vadd.f32 %v1095, %v1144
    %v1146 = vrot.slane %v1145, 2
    %v1147 = vadd.f32 %v1145, %v1146
    %v1148 = vrot.slane %v1147, 1
    %v1149 = vadd.f32 %v1147, %v1148
    %v1150 = vrot.slane %v1097, 4
    %v1151 = vadd.f32 %v1097, %v1150
    %v1152 = vrot.slane %v1151, 2
    %v1153 = vadd.f32 %v1151, %v1152
    %v1154 = vrot.slane %v1153, 1
    %v1155 = vadd.f32 %v1153, %v1154
    %v1156 = vrot.slane %v1136, 4
    %v1157 = vadd.f32 %v1136, %v1156
    %v1158 = vrot.slane %v1157, 2
    %v1159 = vadd.f32 %v1157, %v1158
    %v1160 = vrot.slane %v1159, 1
    %v1161 = vadd.f32 %v1159, %v1160
    %v1162 = vrot.slane %v1138, 4
    %v1163 = vadd.f32 %v1138, %v1162
    %v1164 = vrot.slane %v1163, 2
    %v1165 = vadd.f32 %v1163, %v1164
    %v1166 = vrot.slane %v1165, 1
    %v1167 = vadd.f32 %v1165, %v1166
    %v1168 = vmul.f32 %v1149, %v598
    %v1169 = vmul.f32 %v1155, %v598
    %v1170 = vmul.f32 %v1161, %v598
    %v1171 = vmul.f32 %v1167, %v598
    %v1172 = vsub.f32 %v1095, %v1168
    %v1173 = vsub.f32 %v1097, %v1169
    %v1174 = vsub.f32 %v1136, %v1170
    %v1175 = vsub.f32 %v1138, %v1171
    %v1176 = vmul.f32 %v1172, %v1172
    %v1177 = vmul.f32 %v1173, %v1173
    %v1178 = vmul.f32 %v1174, %v1174
    %v1179 = vmul.f32 %v1175, %v1175
    %v1180 = vrot.slane %v1176, 4
    %v1181 = vadd.f32 %v1176, %v1180
    %v1182 = vrot.slane %v1181, 2
    %v1183 = vadd.f32 %v1181, %v1182
    %v1184 = vrot.slane %v1183, 1
    %v1185 = vadd.f32 %v1183, %v1184
    %v1186 = vrot.slane %v1177, 4
    %v1187 = vadd.f32 %v1177, %v1186
    %v1188 = vrot.slane %v1187, 2
    %v1189 = vadd.f32 %v1187, %v1188
    %v1190 = vrot.slane %v1189, 1
    %v1191 = vadd.f32 %v1189, %v1190
    %v1192 = vrot.slane %v1178, 4
    %v1193 = vadd.f32 %v1178, %v1192
    %v1194 = vrot.slane %v1193, 2
    %v1195 = vadd.f32 %v1193, %v1194
    %v1196 = vrot.slane %v1195, 1
    %v1197 = vadd.f32 %v1195, %v1196
    %v1198 = vrot.slane %v1179, 4
    %v1199 = vadd.f32 %v1179, %v1198
    %v1200 = vrot.slane %v1199, 2
    %v1201 = vadd.f32 %v1199, %v1200
    %v1202 = vrot.slane %v1201, 1
    %v1203 = vadd.f32 %v1201, %v1202
    %v1204 = vmul.f32 %v1185, %v598
    %v1205 = vmul.f32 %v1191, %v598
    %v1206 = vmul.f32 %v1197, %v598
    %v1207 = vmul.f32 %v1203, %v598
    %v1208 = vadd.f32 %v1204, 1e-05
    %v1209 = vadd.f32 %v1205, 1e-05
    %v1210 = vadd.f32 %v1206, 1e-05
    %v1211 = vadd.f32 %v1207, 1e-05
    %v1212 = vrsqrt.pop %v1208
    %v1213 = vrsqrt.pop %v1209
    %v1214 = vrsqrt.pop %v1210
    %v1215 = vrsqrt.pop %v1211
    %v1220 = vcombine.low %v1212, %v1213
    %v1221 = vcombine.low %v1214, %v1215
    %v1223 = vunpack.c.l.s4 1966171168
    %v1224 = vunpack.c.0.s8 %v1223
    %v1225 = vlaneseq
    %v1226 = vshrl.u32 %v1225, 7
    %v1227 = vsub.s32 %v1224, %v1226
    %v1228 = vrot.slane %v1220, %v1227
    %v1230 = vunpack.c.l.s4 1966171168
    %v1231 = vunpack.c.0.s8 %v1230
    %v1232 = vlaneseq
    %v1233 = vshrl.u32 %v1232, 7
    %v1234 = vsub.s32 %v1231, %v1233
    %v1235 = vrot.slane %v1221, %v1234
    %v1236 = vcombine.low %v1228, %v1235
    %v1238 = vunpack.c.l.s4 1966171168
    %v1239 = vunpack.c.0.s8 %v1238
    %v1240 = vlaneseq
    %v1241 = vshrl.u32 %v1240, 7
    %v1242 = vsub.s32 %v1239, %v1241
    %v1243 = vrot.slane %v1236, %v1242
    %v1245 = vmul.f32 %v1142, %v1243
    %v1247 = vlaneseq
    %v1248 = vshrl.u32 %v1247, 7
    %v1249 = vsub.s32 0, %v1248
    %v1250 = vrot.slane %v1245, %v1249
    %v1251 = vlaneseq
    %v1252 = vshrl.u32 %v1251, 7
    %v1253 = vsub.s32 1, %v1252
    %v1254 = vrot.slane %v1245, %v1253
    %v1255 = vlaneseq
    %v1256 = vshrl.u32 %v1255, 7
    %v1257 = vsub.s32 2, %v1256
    %v1258 = vrot.slane %v1245, %v1257
    %v1259 = vlaneseq
    %v1260 = vshrl.u32 %v1259, 7
    %v1261 = vsub.s32 3, %v1260
    %v1262 = vrot.slane %v1245, %v1261
    %v1267 = vmul.f32 %v1172, %v1250
    %v1268 = vmul.f32 %v1173, %v1254
    %v1269 = vmul.f32 %v1174, %v1258
    %v1270 = vmul.f32 %v1175, %v1262
    %v1272 = vlaneseq
    %v1273 = vshrl.u32 %v1272, 7
    %v1274 = vsub.s32 0, %v1273
    %v1275 = vrot.slane %v1143, %v1274
    %v1276 = vlaneseq
    %v1277 = vshrl.u32 %v1276, 7
    %v1278 = vsub.s32 1, %v1277
    %v1279 = vrot.slane %v1143, %v1278
    %v1280 = vlaneseq
    %v1281 = vshrl.u32 %v1280, 7
    %v1282 = vsub.s32 2, %v1281
    %v1283 = vrot.slane %v1143, %v1282
    %v1284 = vlaneseq
    %v1285 = vshrl.u32 %v1284, 7
    %v1286 = vsub.s32 3, %v1285
    %v1287 = vrot.slane %v1143, %v1286
    %v1292 = vadd.f32 %v1267, %v1275
    %v1293 = vadd.f32 %v1268, %v1279
    %v1294 = vadd.f32 %v1269, %v1283
    %v1295 = vadd.f32 %v1270, %v1287
    %vm1296 = vcmp.gt.f32.partialorder %v1292, 0.0
    %vm1297 = vcmp.gt.f32.partialorder %v1293, 0.0
    %vm1298 = vcmp.gt.f32.partialorder %v1294, 0.0
    %vm1299 = vcmp.gt.f32.partialorder %v1295, 0.0
    %v1300 = vmul.f32 %v1292, 0.2
    %v1301 = vmul.f32 %v1293, 0.2
    %v1302 = vmul.f32 %v1294, 0.2
    %v1303 = vmul.f32 %v1295, 0.2
    %v1304 = vsel %vm1296, %v1292, %v1300
    %v1305 = vsel %vm1297, %v1293, %v1301
    %v1306 = vsel %vm1298, %v1294, %v1302
    %v1307 = vsel %vm1299, %v1295, %v1303
    %v1308 = vpack.c.bf16 %v1304, %v1304
    %v1309 = vpack.c.bf16 %v1305, %v1305
    %v1310 = vpack.c.bf16 %v1306, %v1306
    %v1311 = vpack.c.bf16 %v1307, %v1307
    %v1312 = vld [vmem:[#allocation16] sm:$0xff]
    %v1313 = vld [vmem:[#allocation16 + $0x8] sm:$0xff]
    %v1314 = vld [vmem:[#allocation16 + $0x10] sm:$0xff]
    %v1315 = vld [vmem:[#allocation16 + $0x18] sm:$0xff]
    %v1316 = vld [vmem:[#allocation16 + $0x20] sm:$0xff]
    %v1317 = vld [vmem:[#allocation16 + $0x28] sm:$0xff]
    %v1318 = vld [vmem:[#allocation16 + $0x30] sm:$0xff]
    %v1319 = vld [vmem:[#allocation16 + $0x38] sm:$0xff]
    %v1320 = vld [vmem:[#allocation16 + $0x40] sm:$0xff]
    %v1321 = vld [vmem:[#allocation16 + $0x48] sm:$0xff]
    %v1322 = vld [vmem:[#allocation16 + $0x50] sm:$0xff]
    %v1323 = vld [vmem:[#allocation16 + $0x58] sm:$0xff]
    %v1324 = vld [vmem:[#allocation16 + $0x60] sm:$0xff]
    %v1325 = vld [vmem:[#allocation16 + $0x68] sm:$0xff]
    %v1326 = vld [vmem:[#allocation16 + $0x70] sm:$0xff]
    %v1327 = vld [vmem:[#allocation16 + $0x78] sm:$0xff]
    %v1328 = vld [vmem:[#allocation16 + $0x80] sm:$0xff]
    %v1329 = vld [vmem:[#allocation16 + $0x88] sm:$0xff]
    %v1330 = vld [vmem:[#allocation16 + $0x90] sm:$0xff]
    %v1331 = vld [vmem:[#allocation16 + $0x98] sm:$0xff]
    %v1332 = vld [vmem:[#allocation16 + $0xa0] sm:$0xff]
    %v1333 = vld [vmem:[#allocation16 + $0xa8] sm:$0xff]
    %v1334 = vld [vmem:[#allocation16 + $0xb0] sm:$0xff]
    %v1335 = vld [vmem:[#allocation16 + $0xb8] sm:$0xff]
    %v1336 = vld [vmem:[#allocation16 + $0xc0] sm:$0xff]
    %v1337 = vld [vmem:[#allocation16 + $0xc8] sm:$0xff]
    %v1338 = vld [vmem:[#allocation16 + $0xd0] sm:$0xff]
    %v1339 = vld [vmem:[#allocation16 + $0xd8] sm:$0xff]
    %v1340 = vld [vmem:[#allocation16 + $0xe0] sm:$0xff]
    %v1341 = vld [vmem:[#allocation16 + $0xe8] sm:$0xff]
    %v1342 = vld [vmem:[#allocation16 + $0xf0] sm:$0xff]
    %v1343 = vld [vmem:[#allocation16 + $0xf8] sm:$0xff]
    %v1344 = vld [vmem:[#allocation16 + $0x100] sm:$0xff]
    %v1345 = vld [vmem:[#allocation16 + $0x108] sm:$0xff]
    %v1346 = vld [vmem:[#allocation16 + $0x110] sm:$0xff]
    %v1347 = vld [vmem:[#allocation16 + $0x118] sm:$0xff]
    %v1348 = vld [vmem:[#allocation16 + $0x120] sm:$0xff]
    %v1349 = vld [vmem:[#allocation16 + $0x128] sm:$0xff]
    %v1350 = vld [vmem:[#allocation16 + $0x130] sm:$0xff]
    %v1351 = vld [vmem:[#allocation16 + $0x138] sm:$0xff]
    %v1352 = vld [vmem:[#allocation16 + $0x140] sm:$0xff]
    %v1353 = vld [vmem:[#allocation16 + $0x148] sm:$0xff]
    %v1354 = vld [vmem:[#allocation16 + $0x150] sm:$0xff]
    %v1355 = vld [vmem:[#allocation16 + $0x158] sm:$0xff]
    %v1356 = vld [vmem:[#allocation16 + $0x160] sm:$0xff]
    %v1357 = vld [vmem:[#allocation16 + $0x168] sm:$0xff]
    %v1358 = vld [vmem:[#allocation16 + $0x170] sm:$0xff]
    %v1359 = vld [vmem:[#allocation16 + $0x178] sm:$0xff]
    %v1360 = vld [vmem:[#allocation16 + $0x180] sm:$0xff]
    %v1361 = vld [vmem:[#allocation16 + $0x188] sm:$0xff]
    %v1362 = vld [vmem:[#allocation16 + $0x190] sm:$0xff]
    %v1363 = vld [vmem:[#allocation16 + $0x198] sm:$0xff]
    %v1364 = vld [vmem:[#allocation16 + $0x1a0] sm:$0xff]
    %v1365 = vld [vmem:[#allocation16 + $0x1a8] sm:$0xff]
    %v1366 = vld [vmem:[#allocation16 + $0x1b0] sm:$0xff]
    %v1367 = vld [vmem:[#allocation16 + $0x1b8] sm:$0xff]
    %v1368 = vld [vmem:[#allocation16 + $0x1c0] sm:$0xff]
    %v1369 = vld [vmem:[#allocation16 + $0x1c8] sm:$0xff]
    %v1370 = vld [vmem:[#allocation16 + $0x1d0] sm:$0xff]
    %v1371 = vld [vmem:[#allocation16 + $0x1d8] sm:$0xff]
    %v1372 = vld [vmem:[#allocation16 + $0x1e0] sm:$0xff]
    %v1373 = vld [vmem:[#allocation16 + $0x1e8] sm:$0xff]
    %v1374 = vld [vmem:[#allocation16 + $0x1f0] sm:$0xff]
    %v1375 = vld [vmem:[#allocation16 + $0x1f8] sm:$0xff]
    %v1376 = vld [vmem:[#allocation16 + $0x200] sm:$0xff]
    %v1377 = vld [vmem:[#allocation16 + $0x208] sm:$0xff]
    %v1378 = vld [vmem:[#allocation16 + $0x210] sm:$0xff]
    %v1379 = vld [vmem:[#allocation16 + $0x218] sm:$0xff]
    %v1380 = vld [vmem:[#allocation16 + $0x220] sm:$0xff]
    %v1381 = vld [vmem:[#allocation16 + $0x228] sm:$0xff]
    %v1382 = vld [vmem:[#allocation16 + $0x230] sm:$0xff]
    %v1383 = vld [vmem:[#allocation16 + $0x238] sm:$0xff]
    %v1384 = vld [vmem:[#allocation16 + $0x240] sm:$0xff]
    %v1385 = vld [vmem:[#allocation16 + $0x248] sm:$0xff]
    %v1386 = vld [vmem:[#allocation16 + $0x250] sm:$0xff]
    %v1387 = vld [vmem:[#allocation16 + $0x258] sm:$0xff]
    %v1388 = vld [vmem:[#allocation16 + $0x260] sm:$0xff]
    %v1389 = vld [vmem:[#allocation16 + $0x268] sm:$0xff]
    %v1390 = vld [vmem:[#allocation16 + $0x270] sm:$0xff]
    %v1391 = vld [vmem:[#allocation16 + $0x278] sm:$0xff]
    %v1392 = vld [vmem:[#allocation16 + $0x280] sm:$0xff]
    %v1393 = vld [vmem:[#allocation16 + $0x288] sm:$0xff]
    %v1394 = vld [vmem:[#allocation16 + $0x290] sm:$0xff]
    %v1395 = vld [vmem:[#allocation16 + $0x298] sm:$0xff]
    %v1396 = vld [vmem:[#allocation16 + $0x2a0] sm:$0xff]
    %v1397 = vld [vmem:[#allocation16 + $0x2a8] sm:$0xff]
    %v1398 = vld [vmem:[#allocation16 + $0x2b0] sm:$0xff]
    %v1399 = vld [vmem:[#allocation16 + $0x2b8] sm:$0xff]
    %v1400 = vld [vmem:[#allocation16 + $0x2c0] sm:$0xff]
    %v1401 = vld [vmem:[#allocation16 + $0x2c8] sm:$0xff]
    %v1402 = vld [vmem:[#allocation16 + $0x2d0] sm:$0xff]
    %v1403 = vld [vmem:[#allocation16 + $0x2d8] sm:$0xff]
    %v1404 = vld [vmem:[#allocation16 + $0x2e0] sm:$0xff]
    %v1405 = vld [vmem:[#allocation16 + $0x2e8] sm:$0xff]
    %v1406 = vld [vmem:[#allocation16 + $0x2f0] sm:$0xff]
    %v1407 = vld [vmem:[#allocation16 + $0x2f8] sm:$0xff]
    %v1408 = vld [vmem:[#allocation16 + $0x300] sm:$0xff]
    %v1409 = vld [vmem:[#allocation16 + $0x308] sm:$0xff]
    %v1410 = vld [vmem:[#allocation16 + $0x310] sm:$0xff]
    %v1411 = vld [vmem:[#allocation16 + $0x318] sm:$0xff]
    %v1412 = vld [vmem:[#allocation16 + $0x320] sm:$0xff]
    %v1413 = vld [vmem:[#allocation16 + $0x328] sm:$0xff]
    %v1414 = vld [vmem:[#allocation16 + $0x330] sm:$0xff]
    %v1415 = vld [vmem:[#allocation16 + $0x338] sm:$0xff]
    %v1416 = vld [vmem:[#allocation16 + $0x340] sm:$0xff]
    %v1417 = vld [vmem:[#allocation16 + $0x348] sm:$0xff]
    %v1418 = vld [vmem:[#allocation16 + $0x350] sm:$0xff]
    %v1419 = vld [vmem:[#allocation16 + $0x358] sm:$0xff]
    %v1420 = vld [vmem:[#allocation16 + $0x360] sm:$0xff]
    %v1421 = vld [vmem:[#allocation16 + $0x368] sm:$0xff]
    %v1422 = vld [vmem:[#allocation16 + $0x370] sm:$0xff]
    %v1423 = vld [vmem:[#allocation16 + $0x378] sm:$0xff]
    %v1424 = vld [vmem:[#allocation16 + $0x380] sm:$0xff]
    %v1425 = vld [vmem:[#allocation16 + $0x388] sm:$0xff]
    %v1426 = vld [vmem:[#allocation16 + $0x390] sm:$0xff]
    %v1427 = vld [vmem:[#allocation16 + $0x398] sm:$0xff]
    %v1428 = vld [vmem:[#allocation16 + $0x3a0] sm:$0xff]
    %v1429 = vld [vmem:[#allocation16 + $0x3a8] sm:$0xff]
    %v1430 = vld [vmem:[#allocation16 + $0x3b0] sm:$0xff]
    %v1431 = vld [vmem:[#allocation16 + $0x3b8] sm:$0xff]
    %v1432 = vld [vmem:[#allocation16 + $0x3c0] sm:$0xff]
    %v1433 = vld [vmem:[#allocation16 + $0x3c8] sm:$0xff]
    %v1434 = vld [vmem:[#allocation16 + $0x3d0] sm:$0xff]
    %v1435 = vld [vmem:[#allocation16 + $0x3d8] sm:$0xff]
    %v1436 = vld [vmem:[#allocation16 + $0x3e0] sm:$0xff]
    %v1437 = vld [vmem:[#allocation16 + $0x3e8] sm:$0xff]
    %v1438 = vld [vmem:[#allocation16 + $0x3f0] sm:$0xff]
    %v1439 = vld [vmem:[#allocation16 + $0x3f8] sm:$0xff]
    %v1440 = vld [vmem:[#allocation16 + $0x400] sm:$0xff]
    %v1441 = vld [vmem:[#allocation16 + $0x408] sm:$0xff]
    %v1442 = vld [vmem:[#allocation16 + $0x410] sm:$0xff]
    %v1443 = vld [vmem:[#allocation16 + $0x418] sm:$0xff]
    %v1444 = vld [vmem:[#allocation16 + $0x420] sm:$0xff]
    %v1445 = vld [vmem:[#allocation16 + $0x428] sm:$0xff]
    %v1446 = vld [vmem:[#allocation16 + $0x430] sm:$0xff]
    %v1447 = vld [vmem:[#allocation16 + $0x438] sm:$0xff]
    %v1448 = vld [vmem:[#allocation16 + $0x440] sm:$0xff]
    %v1449 = vld [vmem:[#allocation16 + $0x448] sm:$0xff]
    %v1450 = vld [vmem:[#allocation16 + $0x450] sm:$0xff]
    %v1451 = vld [vmem:[#allocation16 + $0x458] sm:$0xff]
    %v1452 = vld [vmem:[#allocation16 + $0x460] sm:$0xff]
    %v1453 = vld [vmem:[#allocation16 + $0x468] sm:$0xff]
    %v1454 = vld [vmem:[#allocation16 + $0x470] sm:$0xff]
    %v1455 = vld [vmem:[#allocation16 + $0x478] sm:$0xff]
    %v1456 = vld [vmem:[#allocation16 + $0x480] sm:$0xff]
    %v1457 = vld [vmem:[#allocation16 + $0x488] sm:$0xff]
    %v1458 = vld [vmem:[#allocation16 + $0x490] sm:$0xff]
    %v1459 = vld [vmem:[#allocation16 + $0x498] sm:$0xff]
    %v1460 = vld [vmem:[#allocation16 + $0x4a0] sm:$0xff]
    %v1461 = vld [vmem:[#allocation16 + $0x4a8] sm:$0xff]
    %v1462 = vld [vmem:[#allocation16 + $0x4b0] sm:$0xff]
    %v1463 = vld [vmem:[#allocation16 + $0x4b8] sm:$0xff]
    %v1464 = vld [vmem:[#allocation16 + $0x4c0] sm:$0xff]
    %v1465 = vld [vmem:[#allocation16 + $0x4c8] sm:$0xff]
    %v1466 = vld [vmem:[#allocation16 + $0x4d0] sm:$0xff]
    %v1467 = vld [vmem:[#allocation16 + $0x4d8] sm:$0xff]
    %v1468 = vld [vmem:[#allocation16 + $0x4e0] sm:$0xff]
    %v1469 = vld [vmem:[#allocation16 + $0x4e8] sm:$0xff]
    %v1470 = vld [vmem:[#allocation16 + $0x4f0] sm:$0xff]
    %v1471 = vld [vmem:[#allocation16 + $0x4f8] sm:$0xff]
    %v1472 = vld [vmem:[#allocation16 + $0x500] sm:$0xff]
    %v1473 = vld [vmem:[#allocation16 + $0x508] sm:$0xff]
    %v1474 = vld [vmem:[#allocation16 + $0x510] sm:$0xff]
    %v1475 = vld [vmem:[#allocation16 + $0x518] sm:$0xff]
    %v1476 = vld [vmem:[#allocation16 + $0x520] sm:$0xff]
    %v1477 = vld [vmem:[#allocation16 + $0x528] sm:$0xff]
    %v1478 = vld [vmem:[#allocation16 + $0x530] sm:$0xff]
    %v1479 = vld [vmem:[#allocation16 + $0x538] sm:$0xff]
    %v1480 = vld [vmem:[#allocation16 + $0x540] sm:$0xff]
    %v1481 = vld [vmem:[#allocation16 + $0x548] sm:$0xff]
    %v1482 = vld [vmem:[#allocation16 + $0x550] sm:$0xff]
    %v1483 = vld [vmem:[#allocation16 + $0x558] sm:$0xff]
    %v1484 = vld [vmem:[#allocation16 + $0x560] sm:$0xff]
    %v1485 = vld [vmem:[#allocation16 + $0x568] sm:$0xff]
    %v1486 = vld [vmem:[#allocation16 + $0x570] sm:$0xff]
    %v1487 = vld [vmem:[#allocation16 + $0x578] sm:$0xff]
    %v1488 = vld [vmem:[#allocation16 + $0x580] sm:$0xff]
    %v1489 = vld [vmem:[#allocation16 + $0x588] sm:$0xff]
    %v1490 = vld [vmem:[#allocation16 + $0x590] sm:$0xff]
    %v1491 = vld [vmem:[#allocation16 + $0x598] sm:$0xff]
    %v1492 = vld [vmem:[#allocation16 + $0x5a0] sm:$0xff]
    %v1493 = vld [vmem:[#allocation16 + $0x5a8] sm:$0xff]
    %v1494 = vld [vmem:[#allocation16 + $0x5b0] sm:$0xff]
    %v1495 = vld [vmem:[#allocation16 + $0x5b8] sm:$0xff]
    %v1496 = vld [vmem:[#allocation16 + $0x5c0] sm:$0xff]
    %v1497 = vld [vmem:[#allocation16 + $0x5c8] sm:$0xff]
    %v1498 = vld [vmem:[#allocation16 + $0x5d0] sm:$0xff]
    %v1499 = vld [vmem:[#allocation16 + $0x5d8] sm:$0xff]
    %v1500 = vld [vmem:[#allocation16 + $0x5e0] sm:$0xff]
    %v1501 = vld [vmem:[#allocation16 + $0x5e8] sm:$0xff]
    %v1502 = vld [vmem:[#allocation16 + $0x5f0] sm:$0xff]
    %v1503 = vld [vmem:[#allocation16 + $0x5f8] sm:$0xff]
    %v1504 = vld [vmem:[#allocation16 + $0x600] sm:$0xff]
    %v1505 = vld [vmem:[#allocation16 + $0x608] sm:$0xff]
    %v1506 = vld [vmem:[#allocation16 + $0x610] sm:$0xff]
    %v1507 = vld [vmem:[#allocation16 + $0x618] sm:$0xff]
    %v1508 = vld [vmem:[#allocation16 + $0x620] sm:$0xff]
    %v1509 = vld [vmem:[#allocation16 + $0x628] sm:$0xff]
    %v1510 = vld [vmem:[#allocation16 + $0x630] sm:$0xff]
    %v1511 = vld [vmem:[#allocation16 + $0x638] sm:$0xff]
    %v1512 = vld [vmem:[#allocation16 + $0x640] sm:$0xff]
    %v1513 = vld [vmem:[#allocation16 + $0x648] sm:$0xff]
    %v1514 = vld [vmem:[#allocation16 + $0x650] sm:$0xff]
    %v1515 = vld [vmem:[#allocation16 + $0x658] sm:$0xff]
    %v1516 = vld [vmem:[#allocation16 + $0x660] sm:$0xff]
    %v1517 = vld [vmem:[#allocation16 + $0x668] sm:$0xff]
    %v1518 = vld [vmem:[#allocation16 + $0x670] sm:$0xff]
    %v1519 = vld [vmem:[#allocation16 + $0x678] sm:$0xff]
    %v1520 = vld [vmem:[#allocation16 + $0x680] sm:$0xff]
    %v1521 = vld [vmem:[#allocation16 + $0x688] sm:$0xff]
    %v1522 = vld [vmem:[#allocation16 + $0x690] sm:$0xff]
    %v1523 = vld [vmem:[#allocation16 + $0x698] sm:$0xff]
    %v1524 = vld [vmem:[#allocation16 + $0x6a0] sm:$0xff]
    %v1525 = vld [vmem:[#allocation16 + $0x6a8] sm:$0xff]
    %v1526 = vld [vmem:[#allocation16 + $0x6b0] sm:$0xff]
    %v1527 = vld [vmem:[#allocation16 + $0x6b8] sm:$0xff]
    %v1528 = vld [vmem:[#allocation16 + $0x6c0] sm:$0xff]
    %v1529 = vld [vmem:[#allocation16 + $0x6c8] sm:$0xff]
    %v1530 = vld [vmem:[#allocation16 + $0x6d0] sm:$0xff]
    %v1531 = vld [vmem:[#allocation16 + $0x6d8] sm:$0xff]
    %v1532 = vld [vmem:[#allocation16 + $0x6e0] sm:$0xff]
    %v1533 = vld [vmem:[#allocation16 + $0x6e8] sm:$0xff]
    %v1534 = vld [vmem:[#allocation16 + $0x6f0] sm:$0xff]
    %v1535 = vld [vmem:[#allocation16 + $0x6f8] sm:$0xff]
    %v1536 = vld [vmem:[#allocation16 + $0x700] sm:$0xff]
    %v1537 = vld [vmem:[#allocation16 + $0x708] sm:$0xff]
    %v1538 = vld [vmem:[#allocation16 + $0x710] sm:$0xff]
    %v1539 = vld [vmem:[#allocation16 + $0x718] sm:$0xff]
    %v1540 = vld [vmem:[#allocation16 + $0x720] sm:$0xff]
    %v1541 = vld [vmem:[#allocation16 + $0x728] sm:$0xff]
    %v1542 = vld [vmem:[#allocation16 + $0x730] sm:$0xff]
    %v1543 = vld [vmem:[#allocation16 + $0x738] sm:$0xff]
    %v1544 = vld [vmem:[#allocation16 + $0x740] sm:$0xff]
    %v1545 = vld [vmem:[#allocation16 + $0x748] sm:$0xff]
    %v1546 = vld [vmem:[#allocation16 + $0x750] sm:$0xff]
    %v1547 = vld [vmem:[#allocation16 + $0x758] sm:$0xff]
    %v1548 = vld [vmem:[#allocation16 + $0x760] sm:$0xff]
    %v1549 = vld [vmem:[#allocation16 + $0x768] sm:$0xff]
    %v1550 = vld [vmem:[#allocation16 + $0x770] sm:$0xff]
    %v1551 = vld [vmem:[#allocation16 + $0x778] sm:$0xff]
    %v1552 = vld [vmem:[#allocation16 + $0x780] sm:$0xff]
    %v1553 = vld [vmem:[#allocation16 + $0x788] sm:$0xff]
    %v1554 = vld [vmem:[#allocation16 + $0x790] sm:$0xff]
    %v1555 = vld [vmem:[#allocation16 + $0x798] sm:$0xff]
    %v1556 = vld [vmem:[#allocation16 + $0x7a0] sm:$0xff]
    %v1557 = vld [vmem:[#allocation16 + $0x7a8] sm:$0xff]
    %v1558 = vld [vmem:[#allocation16 + $0x7b0] sm:$0xff]
    %v1559 = vld [vmem:[#allocation16 + $0x7b8] sm:$0xff]
    %v1560 = vld [vmem:[#allocation16 + $0x7c0] sm:$0xff]
    %v1561 = vld [vmem:[#allocation16 + $0x7c8] sm:$0xff]
    %v1562 = vld [vmem:[#allocation16 + $0x7d0] sm:$0xff]
    %v1563 = vld [vmem:[#allocation16 + $0x7d8] sm:$0xff]
    %v1564 = vld [vmem:[#allocation16 + $0x7e0] sm:$0xff]
    %v1565 = vld [vmem:[#allocation16 + $0x7e8] sm:$0xff]
    %v1566 = vld [vmem:[#allocation16 + $0x7f0] sm:$0xff]
    %v1567 = vld [vmem:[#allocation16 + $0x7f8] sm:$0xff]
    %v1824 = vunpack.c.l.b16 %v1312
    %v1825 = vunpack.c.h.b16 %v1312
    %v1826 = vunpack.c.l.b16 %v1313
    %v1827 = vunpack.c.h.b16 %v1313
    %v1828 = vunpack.c.l.b16 %v1314
    %v1829 = vunpack.c.h.b16 %v1314
    %v1830 = vunpack.c.l.b16 %v1315
    %v1831 = vunpack.c.h.b16 %v1315
    %v1832 = vunpack.c.l.b16 %v1316
    %v1833 = vunpack.c.h.b16 %v1316
    %v1834 = vunpack.c.l.b16 %v1317
    %v1835 = vunpack.c.h.b16 %v1317
    %v1836 = vunpack.c.l.b16 %v1318
    %v1837 = vunpack.c.h.b16 %v1318
    %v1838 = vunpack.c.l.b16 %v1319
    %v1839 = vunpack.c.h.b16 %v1319
    %v1840 = vunpack.c.l.b16 %v1320
    %v1841 = vunpack.c.h.b16 %v1320
    %v1842 = vunpack.c.l.b16 %v1321
    %v1843 = vunpack.c.h.b16 %v1321
    %v1844 = vunpack.c.l.b16 %v1322
    %v1845 = vunpack.c.h.b16 %v1322
    %v1846 = vunpack.c.l.b16 %v1323
    %v1847 = vunpack.c.h.b16 %v1323
    %v1848 = vunpack.c.l.b16 %v1324
    %v1849 = vunpack.c.h.b16 %v1324
    %v1850 = vunpack.c.l.b16 %v1325
    %v1851 = vunpack.c.h.b16 %v1325
    %v1852 = vunpack.c.l.b16 %v1326
    %v1853 = vunpack.c.h.b16 %v1326
    %v1854 = vunpack.c.l.b16 %v1327
    %v1855 = vunpack.c.h.b16 %v1327
    %v1856 = vunpack.c.l.b16 %v1328
    %v1857 = vunpack.c.h.b16 %v1328
    %v1858 = vunpack.c.l.b16 %v1329
    %v1859 = vunpack.c.h.b16 %v1329
    %v1860 = vunpack.c.l.b16 %v1330
    %v1861 = vunpack.c.h.b16 %v1330
    %v1862 = vunpack.c.l.b16 %v1331
    %v1863 = vunpack.c.h.b16 %v1331
    %v1864 = vunpack.c.l.b16 %v1332
    %v1865 = vunpack.c.h.b16 %v1332
    %v1866 = vunpack.c.l.b16 %v1333
    %v1867 = vunpack.c.h.b16 %v1333
    %v1868 = vunpack.c.l.b16 %v1334
    %v1869 = vunpack.c.h.b16 %v1334
    %v1870 = vunpack.c.l.b16 %v1335
    %v1871 = vunpack.c.h.b16 %v1335
    %v1872 = vunpack.c.l.b16 %v1336
    %v1873 = vunpack.c.h.b16 %v1336
    %v1874 = vunpack.c.l.b16 %v1337
    %v1875 = vunpack.c.h.b16 %v1337
    %v1876 = vunpack.c.l.b16 %v1338
    %v1877 = vunpack.c.h.b16 %v1338
    %v1878 = vunpack.c.l.b16 %v1339
    %v1879 = vunpack.c.h.b16 %v1339
    %v1880 = vunpack.c.l.b16 %v1340
    %v1881 = vunpack.c.h.b16 %v1340
    %v1882 = vunpack.c.l.b16 %v1341
    %v1883 = vunpack.c.h.b16 %v1341
    %v1884 = vunpack.c.l.b16 %v1342
    %v1885 = vunpack.c.h.b16 %v1342
    %v1886 = vunpack.c.l.b16 %v1343
    %v1887 = vunpack.c.h.b16 %v1343
    %v1888 = vunpack.c.l.b16 %v1344
    %v1889 = vunpack.c.h.b16 %v1344
    %v1890 = vunpack.c.l.b16 %v1345
    %v1891 = vunpack.c.h.b16 %v1345
    %v1892 = vunpack.c.l.b16 %v1346
    %v1893 = vunpack.c.h.b16 %v1346
    %v1894 = vunpack.c.l.b16 %v1347
    %v1895 = vunpack.c.h.b16 %v1347
    %v1896 = vunpack.c.l.b16 %v1348
    %v1897 = vunpack.c.h.b16 %v1348
    %v1898 = vunpack.c.l.b16 %v1349
    %v1899 = vunpack.c.h.b16 %v1349
    %v1900 = vunpack.c.l.b16 %v1350
    %v1901 = vunpack.c.h.b16 %v1350
    %v1902 = vunpack.c.l.b16 %v1351
    %v1903 = vunpack.c.h.b16 %v1351
    %v1904 = vunpack.c.l.b16 %v1352
    %v1905 = vunpack.c.h.b16 %v1352
    %v1906 = vunpack.c.l.b16 %v1353
    %v1907 = vunpack.c.h.b16 %v1353
    %v1908 = vunpack.c.l.b16 %v1354
    %v1909 = vunpack.c.h.b16 %v1354
    %v1910 = vunpack.c.l.b16 %v1355
    %v1911 = vunpack.c.h.b16 %v1355
    %v1912 = vunpack.c.l.b16 %v1356
    %v1913 = vunpack.c.h.b16 %v1356
    %v1914 = vunpack.c.l.b16 %v1357
    %v1915 = vunpack.c.h.b16 %v1357
    %v1916 = vunpack.c.l.b16 %v1358
    %v1917 = vunpack.c.h.b16 %v1358
    %v1918 = vunpack.c.l.b16 %v1359
    %v1919 = vunpack.c.h.b16 %v1359
    %v1920 = vunpack.c.l.b16 %v1360
    %v1921 = vunpack.c.h.b16 %v1360
    %v1922 = vunpack.c.l.b16 %v1361
    %v1923 = vunpack.c.h.b16 %v1361
    %v1924 = vunpack.c.l.b16 %v1362
    %v1925 = vunpack.c.h.b16 %v1362
    %v1926 = vunpack.c.l.b16 %v1363
    %v1927 = vunpack.c.h.b16 %v1363
    %v1928 = vunpack.c.l.b16 %v1364
    %v1929 = vunpack.c.h.b16 %v1364
    %v1930 = vunpack.c.l.b16 %v1365
    %v1931 = vunpack.c.h.b16 %v1365
    %v1932 = vunpack.c.l.b16 %v1366
    %v1933 = vunpack.c.h.b16 %v1366
    %v1934 = vunpack.c.l.b16 %v1367
    %v1935 = vunpack.c.h.b16 %v1367
    %v1936 = vunpack.c.l.b16 %v1368
    %v1937 = vunpack.c.h.b16 %v1368
    %v1938 = vunpack.c.l.b16 %v1369
    %v1939 = vunpack.c.h.b16 %v1369
    %v1940 = vunpack.c.l.b16 %v1370
    %v1941 = vunpack.c.h.b16 %v1370
    %v1942 = vunpack.c.l.b16 %v1371
    %v1943 = vunpack.c.h.b16 %v1371
    %v1944 = vunpack.c.l.b16 %v1372
    %v1945 = vunpack.c.h.b16 %v1372
    %v1946 = vunpack.c.l.b16 %v1373
    %v1947 = vunpack.c.h.b16 %v1373
    %v1948 = vunpack.c.l.b16 %v1374
    %v1949 = vunpack.c.h.b16 %v1374
    %v1950 = vunpack.c.l.b16 %v1375
    %v1951 = vunpack.c.h.b16 %v1375
    %v1952 = vunpack.c.l.b16 %v1376
    %v1953 = vunpack.c.h.b16 %v1376
    %v1954 = vunpack.c.l.b16 %v1377
    %v1955 = vunpack.c.h.b16 %v1377
    %v1956 = vunpack.c.l.b16 %v1378
    %v1957 = vunpack.c.h.b16 %v1378
    %v1958 = vunpack.c.l.b16 %v1379
    %v1959 = vunpack.c.h.b16 %v1379
    %v1960 = vunpack.c.l.b16 %v1380
    %v1961 = vunpack.c.h.b16 %v1380
    %v1962 = vunpack.c.l.b16 %v1381
    %v1963 = vunpack.c.h.b16 %v1381
    %v1964 = vunpack.c.l.b16 %v1382
    %v1965 = vunpack.c.h.b16 %v1382
    %v1966 = vunpack.c.l.b16 %v1383
    %v1967 = vunpack.c.h.b16 %v1383
    %v1968 = vunpack.c.l.b16 %v1384
    %v1969 = vunpack.c.h.b16 %v1384
    %v1970 = vunpack.c.l.b16 %v1385
    %v1971 = vunpack.c.h.b16 %v1385
    %v1972 = vunpack.c.l.b16 %v1386
    %v1973 = vunpack.c.h.b16 %v1386
    %v1974 = vunpack.c.l.b16 %v1387
    %v1975 = vunpack.c.h.b16 %v1387
    %v1976 = vunpack.c.l.b16 %v1388
    %v1977 = vunpack.c.h.b16 %v1388
    %v1978 = vunpack.c.l.b16 %v1389
    %v1979 = vunpack.c.h.b16 %v1389
    %v1980 = vunpack.c.l.b16 %v1390
    %v1981 = vunpack.c.h.b16 %v1390
    %v1982 = vunpack.c.l.b16 %v1391
    %v1983 = vunpack.c.h.b16 %v1391
    %v1984 = vunpack.c.l.b16 %v1392
    %v1985 = vunpack.c.h.b16 %v1392
    %v1986 = vunpack.c.l.b16 %v1393
    %v1987 = vunpack.c.h.b16 %v1393
    %v1988 = vunpack.c.l.b16 %v1394
    %v1989 = vunpack.c.h.b16 %v1394
    %v1990 = vunpack.c.l.b16 %v1395
    %v1991 = vunpack.c.h.b16 %v1395
    %v1992 = vunpack.c.l.b16 %v1396
    %v1993 = vunpack.c.h.b16 %v1396
    %v1994 = vunpack.c.l.b16 %v1397
    %v1995 = vunpack.c.h.b16 %v1397
    %v1996 = vunpack.c.l.b16 %v1398
    %v1997 = vunpack.c.h.b16 %v1398
    %v1998 = vunpack.c.l.b16 %v1399
    %v1999 = vunpack.c.h.b16 %v1399
    %v2000 = vunpack.c.l.b16 %v1400
    %v2001 = vunpack.c.h.b16 %v1400
    %v2002 = vunpack.c.l.b16 %v1401
    %v2003 = vunpack.c.h.b16 %v1401
    %v2004 = vunpack.c.l.b16 %v1402
    %v2005 = vunpack.c.h.b16 %v1402
    %v2006 = vunpack.c.l.b16 %v1403
    %v2007 = vunpack.c.h.b16 %v1403
    %v2008 = vunpack.c.l.b16 %v1404
    %v2009 = vunpack.c.h.b16 %v1404
    %v2010 = vunpack.c.l.b16 %v1405
    %v2011 = vunpack.c.h.b16 %v1405
    %v2012 = vunpack.c.l.b16 %v1406
    %v2013 = vunpack.c.h.b16 %v1406
    %v2014 = vunpack.c.l.b16 %v1407
    %v2015 = vunpack.c.h.b16 %v1407
    %v2016 = vunpack.c.l.b16 %v1408
    %v2017 = vunpack.c.h.b16 %v1408
    %v2018 = vunpack.c.l.b16 %v1409
    %v2019 = vunpack.c.h.b16 %v1409
    %v2020 = vunpack.c.l.b16 %v1410
    %v2021 = vunpack.c.h.b16 %v1410
    %v2022 = vunpack.c.l.b16 %v1411
    %v2023 = vunpack.c.h.b16 %v1411
    %v2024 = vunpack.c.l.b16 %v1412
    %v2025 = vunpack.c.h.b16 %v1412
    %v2026 = vunpack.c.l.b16 %v1413
    %v2027 = vunpack.c.h.b16 %v1413
    %v2028 = vunpack.c.l.b16 %v1414
    %v2029 = vunpack.c.h.b16 %v1414
    %v2030 = vunpack.c.l.b16 %v1415
    %v2031 = vunpack.c.h.b16 %v1415
    %v2032 = vunpack.c.l.b16 %v1416
    %v2033 = vunpack.c.h.b16 %v1416
    %v2034 = vunpack.c.l.b16 %v1417
    %v2035 = vunpack.c.h.b16 %v1417
    %v2036 = vunpack.c.l.b16 %v1418
    %v2037 = vunpack.c.h.b16 %v1418
    %v2038 = vunpack.c.l.b16 %v1419
    %v2039 = vunpack.c.h.b16 %v1419
    %v2040 = vunpack.c.l.b16 %v1420
    %v2041 = vunpack.c.h.b16 %v1420
    %v2042 = vunpack.c.l.b16 %v1421
    %v2043 = vunpack.c.h.b16 %v1421
    %v2044 = vunpack.c.l.b16 %v1422
    %v2045 = vunpack.c.h.b16 %v1422
    %v2046 = vunpack.c.l.b16 %v1423
    %v2047 = vunpack.c.h.b16 %v1423
    %v2048 = vunpack.c.l.b16 %v1424
    %v2049 = vunpack.c.h.b16 %v1424
    %v2050 = vunpack.c.l.b16 %v1425
    %v2051 = vunpack.c.h.b16 %v1425
    %v2052 = vunpack.c.l.b16 %v1426
    %v2053 = vunpack.c.h.b16 %v1426
    %v2054 = vunpack.c.l.b16 %v1427
    %v2055 = vunpack.c.h.b16 %v1427
    %v2056 = vunpack.c.l.b16 %v1428
    %v2057 = vunpack.c.h.b16 %v1428
    %v2058 = vunpack.c.l.b16 %v1429
    %v2059 = vunpack.c.h.b16 %v1429
    %v2060 = vunpack.c.l.b16 %v1430
    %v2061 = vunpack.c.h.b16 %v1430
    %v2062 = vunpack.c.l.b16 %v1431
    %v2063 = vunpack.c.h.b16 %v1431
    %v2064 = vunpack.c.l.b16 %v1432
    %v2065 = vunpack.c.h.b16 %v1432
    %v2066 = vunpack.c.l.b16 %v1433
    %v2067 = vunpack.c.h.b16 %v1433
    %v2068 = vunpack.c.l.b16 %v1434
    %v2069 = vunpack.c.h.b16 %v1434
    %v2070 = vunpack.c.l.b16 %v1435
    %v2071 = vunpack.c.h.b16 %v1435
    %v2072 = vunpack.c.l.b16 %v1436
    %v2073 = vunpack.c.h.b16 %v1436
    %v2074 = vunpack.c.l.b16 %v1437
    %v2075 = vunpack.c.h.b16 %v1437
    %v2076 = vunpack.c.l.b16 %v1438
    %v2077 = vunpack.c.h.b16 %v1438
    %v2078 = vunpack.c.l.b16 %v1439
    %v2079 = vunpack.c.h.b16 %v1439
    %v2080 = vunpack.c.l.b16 %v1440
    %v2081 = vunpack.c.h.b16 %v1440
    %v2082 = vunpack.c.l.b16 %v1441
    %v2083 = vunpack.c.h.b16 %v1441
    %v2084 = vunpack.c.l.b16 %v1442
    %v2085 = vunpack.c.h.b16 %v1442
    %v2086 = vunpack.c.l.b16 %v1443
    %v2087 = vunpack.c.h.b16 %v1443
    %v2088 = vunpack.c.l.b16 %v1444
    %v2089 = vunpack.c.h.b16 %v1444
    %v2090 = vunpack.c.l.b16 %v1445
    %v2091 = vunpack.c.h.b16 %v1445
    %v2092 = vunpack.c.l.b16 %v1446
    %v2093 = vunpack.c.h.b16 %v1446
    %v2094 = vunpack.c.l.b16 %v1447
    %v2095 = vunpack.c.h.b16 %v1447
    %v2096 = vunpack.c.l.b16 %v1448
    %v2097 = vunpack.c.h.b16 %v1448
    %v2098 = vunpack.c.l.b16 %v1449
    %v2099 = vunpack.c.h.b16 %v1449
    %v2100 = vunpack.c.l.b16 %v1450
    %v2101 = vunpack.c.h.b16 %v1450
    %v2102 = vunpack.c.l.b16 %v1451
    %v2103 = vunpack.c.h.b16 %v1451
    %v2104 = vunpack.c.l.b16 %v1452
    %v2105 = vunpack.c.h.b16 %v1452
    %v2106 = vunpack.c.l.b16 %v1453
    %v2107 = vunpack.c.h.b16 %v1453
    %v2108 = vunpack.c.l.b16 %v1454
    %v2109 = vunpack.c.h.b16 %v1454
    %v2110 = vunpack.c.l.b16 %v1455
    %v2111 = vunpack.c.h.b16 %v1455
    %v2112 = vunpack.c.l.b16 %v1456
    %v2113 = vunpack.c.h.b16 %v1456
    %v2114 = vunpack.c.l.b16 %v1457
    %v2115 = vunpack.c.h.b16 %v1457
    %v2116 = vunpack.c.l.b16 %v1458
    %v2117 = vunpack.c.h.b16 %v1458
    %v2118 = vunpack.c.l.b16 %v1459
    %v2119 = vunpack.c.h.b16 %v1459
    %v2120 = vunpack.c.l.b16 %v1460
    %v2121 = vunpack.c.h.b16 %v1460
    %v2122 = vunpack.c.l.b16 %v1461
    %v2123 = vunpack.c.h.b16 %v1461
    %v2124 = vunpack.c.l.b16 %v1462
    %v2125 = vunpack.c.h.b16 %v1462
    %v2126 = vunpack.c.l.b16 %v1463
    %v2127 = vunpack.c.h.b16 %v1463
    %v2128 = vunpack.c.l.b16 %v1464
    %v2129 = vunpack.c.h.b16 %v1464
    %v2130 = vunpack.c.l.b16 %v1465
    %v2131 = vunpack.c.h.b16 %v1465
    %v2132 = vunpack.c.l.b16 %v1466
    %v2133 = vunpack.c.h.b16 %v1466
    %v2134 = vunpack.c.l.b16 %v1467
    %v2135 = vunpack.c.h.b16 %v1467
    %v2136 = vunpack.c.l.b16 %v1468
    %v2137 = vunpack.c.h.b16 %v1468
    %v2138 = vunpack.c.l.b16 %v1469
    %v2139 = vunpack.c.h.b16 %v1469
    %v2140 = vunpack.c.l.b16 %v1470
    %v2141 = vunpack.c.h.b16 %v1470
    %v2142 = vunpack.c.l.b16 %v1471
    %v2143 = vunpack.c.h.b16 %v1471
    %v2144 = vunpack.c.l.b16 %v1472
    %v2145 = vunpack.c.h.b16 %v1472
    %v2146 = vunpack.c.l.b16 %v1473
    %v2147 = vunpack.c.h.b16 %v1473
    %v2148 = vunpack.c.l.b16 %v1474
    %v2149 = vunpack.c.h.b16 %v1474
    %v2150 = vunpack.c.l.b16 %v1475
    %v2151 = vunpack.c.h.b16 %v1475
    %v2152 = vunpack.c.l.b16 %v1476
    %v2153 = vunpack.c.h.b16 %v1476
    %v2154 = vunpack.c.l.b16 %v1477
    %v2155 = vunpack.c.h.b16 %v1477
    %v2156 = vunpack.c.l.b16 %v1478
    %v2157 = vunpack.c.h.b16 %v1478
    %v2158 = vunpack.c.l.b16 %v1479
    %v2159 = vunpack.c.h.b16 %v1479
    %v2160 = vunpack.c.l.b16 %v1480
    %v2161 = vunpack.c.h.b16 %v1480
    %v2162 = vunpack.c.l.b16 %v1481
    %v2163 = vunpack.c.h.b16 %v1481
    %v2164 = vunpack.c.l.b16 %v1482
    %v2165 = vunpack.c.h.b16 %v1482
    %v2166 = vunpack.c.l.b16 %v1483
    %v2167 = vunpack.c.h.b16 %v1483
    %v2168 = vunpack.c.l.b16 %v1484
    %v2169 = vunpack.c.h.b16 %v1484
    %v2170 = vunpack.c.l.b16 %v1485
    %v2171 = vunpack.c.h.b16 %v1485
    %v2172 = vunpack.c.l.b16 %v1486
    %v2173 = vunpack.c.h.b16 %v1486
    %v2174 = vunpack.c.l.b16 %v1487
    %v2175 = vunpack.c.h.b16 %v1487
    %v2176 = vunpack.c.l.b16 %v1488
    %v2177 = vunpack.c.h.b16 %v1488
    %v2178 = vunpack.c.l.b16 %v1489
    %v2179 = vunpack.c.h.b16 %v1489
    %v2180 = vunpack.c.l.b16 %v1490
    %v2181 = vunpack.c.h.b16 %v1490
    %v2182 = vunpack.c.l.b16 %v1491
    %v2183 = vunpack.c.h.b16 %v1491
    %v2184 = vunpack.c.l.b16 %v1492
    %v2185 = vunpack.c.h.b16 %v1492
    %v2186 = vunpack.c.l.b16 %v1493
    %v2187 = vunpack.c.h.b16 %v1493
    %v2188 = vunpack.c.l.b16 %v1494
    %v2189 = vunpack.c.h.b16 %v1494
    %v2190 = vunpack.c.l.b16 %v1495
    %v2191 = vunpack.c.h.b16 %v1495
    %v2192 = vunpack.c.l.b16 %v1496
    %v2193 = vunpack.c.h.b16 %v1496
    %v2194 = vunpack.c.l.b16 %v1497
    %v2195 = vunpack.c.h.b16 %v1497
    %v2196 = vunpack.c.l.b16 %v1498
    %v2197 = vunpack.c.h.b16 %v1498
    %v2198 = vunpack.c.l.b16 %v1499
    %v2199 = vunpack.c.h.b16 %v1499
    %v2200 = vunpack.c.l.b16 %v1500
    %v2201 = vunpack.c.h.b16 %v1500
    %v2202 = vunpack.c.l.b16 %v1501
    %v2203 = vunpack.c.h.b16 %v1501
    %v2204 = vunpack.c.l.b16 %v1502
    %v2205 = vunpack.c.h.b16 %v1502
    %v2206 = vunpack.c.l.b16 %v1503
    %v2207 = vunpack.c.h.b16 %v1503
    %v2208 = vunpack.c.l.b16 %v1504
    %v2209 = vunpack.c.h.b16 %v1504
    %v2210 = vunpack.c.l.b16 %v1505
    %v2211 = vunpack.c.h.b16 %v1505
    %v2212 = vunpack.c.l.b16 %v1506
    %v2213 = vunpack.c.h.b16 %v1506
    %v2214 = vunpack.c.l.b16 %v1507
    %v2215 = vunpack.c.h.b16 %v1507
    %v2216 = vunpack.c.l.b16 %v1508
    %v2217 = vunpack.c.h.b16 %v1508
    %v2218 = vunpack.c.l.b16 %v1509
    %v2219 = vunpack.c.h.b16 %v1509
    %v2220 = vunpack.c.l.b16 %v1510
    %v2221 = vunpack.c.h.b16 %v1510
    %v2222 = vunpack.c.l.b16 %v1511
    %v2223 = vunpack.c.h.b16 %v1511
    %v2224 = vunpack.c.l.b16 %v1512
    %v2225 = vunpack.c.h.b16 %v1512
    %v2226 = vunpack.c.l.b16 %v1513
    %v2227 = vunpack.c.h.b16 %v1513
    %v2228 = vunpack.c.l.b16 %v1514
    %v2229 = vunpack.c.h.b16 %v1514
    %v2230 = vunpack.c.l.b16 %v1515
    %v2231 = vunpack.c.h.b16 %v1515
    %v2232 = vunpack.c.l.b16 %v1516
    %v2233 = vunpack.c.h.b16 %v1516
    %v2234 = vunpack.c.l.b16 %v1517
    %v2235 = vunpack.c.h.b16 %v1517
    %v2236 = vunpack.c.l.b16 %v1518
    %v2237 = vunpack.c.h.b16 %v1518
    %v2238 = vunpack.c.l.b16 %v1519
    %v2239 = vunpack.c.h.b16 %v1519
    %v2240 = vunpack.c.l.b16 %v1520
    %v2241 = vunpack.c.h.b16 %v1520
    %v2242 = vunpack.c.l.b16 %v1521
    %v2243 = vunpack.c.h.b16 %v1521
    %v2244 = vunpack.c.l.b16 %v1522
    %v2245 = vunpack.c.h.b16 %v1522
    %v2246 = vunpack.c.l.b16 %v1523
    %v2247 = vunpack.c.h.b16 %v1523
    %v2248 = vunpack.c.l.b16 %v1524
    %v2249 = vunpack.c.h.b16 %v1524
    %v2250 = vunpack.c.l.b16 %v1525
    %v2251 = vunpack.c.h.b16 %v1525
    %v2252 = vunpack.c.l.b16 %v1526
    %v2253 = vunpack.c.h.b16 %v1526
    %v2254 = vunpack.c.l.b16 %v1527
    %v2255 = vunpack.c.h.b16 %v1527
    %v2256 = vunpack.c.l.b16 %v1528
    %v2257 = vunpack.c.h.b16 %v1528
    %v2258 = vunpack.c.l.b16 %v1529
    %v2259 = vunpack.c.h.b16 %v1529
    %v2260 = vunpack.c.l.b16 %v1530
    %v2261 = vunpack.c.h.b16 %v1530
    %v2262 = vunpack.c.l.b16 %v1531
    %v2263 = vunpack.c.h.b16 %v1531
    %v2264 = vunpack.c.l.b16 %v1532
    %v2265 = vunpack.c.h.b16 %v1532
    %v2266 = vunpack.c.l.b16 %v1533
    %v2267 = vunpack.c.h.b16 %v1533
    %v2268 = vunpack.c.l.b16 %v1534
    %v2269 = vunpack.c.h.b16 %v1534
    %v2270 = vunpack.c.l.b16 %v1535
    %v2271 = vunpack.c.h.b16 %v1535
    %v2272 = vunpack.c.l.b16 %v1536
    %v2273 = vunpack.c.h.b16 %v1536
    %v2274 = vunpack.c.l.b16 %v1537
    %v2275 = vunpack.c.h.b16 %v1537
    %v2276 = vunpack.c.l.b16 %v1538
    %v2277 = vunpack.c.h.b16 %v1538
    %v2278 = vunpack.c.l.b16 %v1539
    %v2279 = vunpack.c.h.b16 %v1539
    %v2280 = vunpack.c.l.b16 %v1540
    %v2281 = vunpack.c.h.b16 %v1540
    %v2282 = vunpack.c.l.b16 %v1541
    %v2283 = vunpack.c.h.b16 %v1541
    %v2284 = vunpack.c.l.b16 %v1542
    %v2285 = vunpack.c.h.b16 %v1542
    %v2286 = vunpack.c.l.b16 %v1543
    %v2287 = vunpack.c.h.b16 %v1543
    %v2288 = vunpack.c.l.b16 %v1544
    %v2289 = vunpack.c.h.b16 %v1544
    %v2290 = vunpack.c.l.b16 %v1545
    %v2291 = vunpack.c.h.b16 %v1545
    %v2292 = vunpack.c.l.b16 %v1546
    %v2293 = vunpack.c.h.b16 %v1546
    %v2294 = vunpack.c.l.b16 %v1547
    %v2295 = vunpack.c.h.b16 %v1547
    %v2296 = vunpack.c.l.b16 %v1548
    %v2297 = vunpack.c.h.b16 %v1548
    %v2298 = vunpack.c.l.b16 %v1549
    %v2299 = vunpack.c.h.b16 %v1549
    %v2300 = vunpack.c.l.b16 %v1550
    %v2301 = vunpack.c.h.b16 %v1550
    %v2302 = vunpack.c.l.b16 %v1551
    %v2303 = vunpack.c.h.b16 %v1551
    %v2304 = vunpack.c.l.b16 %v1552
    %v2305 = vunpack.c.h.b16 %v1552
    %v2306 = vunpack.c.l.b16 %v1553
    %v2307 = vunpack.c.h.b16 %v1553
    %v2308 = vunpack.c.l.b16 %v1554
    %v2309 = vunpack.c.h.b16 %v1554
    %v2310 = vunpack.c.l.b16 %v1555
    %v2311 = vunpack.c.h.b16 %v1555
    %v2312 = vunpack.c.l.b16 %v1556
    %v2313 = vunpack.c.h.b16 %v1556
    %v2314 = vunpack.c.l.b16 %v1557
    %v2315 = vunpack.c.h.b16 %v1557
    %v2316 = vunpack.c.l.b16 %v1558
    %v2317 = vunpack.c.h.b16 %v1558
    %v2318 = vunpack.c.l.b16 %v1559
    %v2319 = vunpack.c.h.b16 %v1559
    %v2320 = vunpack.c.l.b16 %v1560
    %v2321 = vunpack.c.h.b16 %v1560
    %v2322 = vunpack.c.l.b16 %v1561
    %v2323 = vunpack.c.h.b16 %v1561
    %v2324 = vunpack.c.l.b16 %v1562
    %v2325 = vunpack.c.h.b16 %v1562
    %v2326 = vunpack.c.l.b16 %v1563
    %v2327 = vunpack.c.h.b16 %v1563
    %v2328 = vunpack.c.l.b16 %v1564
    %v2329 = vunpack.c.h.b16 %v1564
    %v2330 = vunpack.c.l.b16 %v1565
    %v2331 = vunpack.c.h.b16 %v1565
    %v2332 = vunpack.c.l.b16 %v1566
    %v2333 = vunpack.c.h.b16 %v1566
    %v2334 = vunpack.c.l.b16 %v1567
    %v2335 = vunpack.c.h.b16 %v1567
    %v2336 = vpack.c.b16 %v1832, %v1824
    %v2337 = vpack.c.b16 %v1833, %v1825
    %v2338 = vpack.c.b16 %v1834, %v1826
    %v2339 = vpack.c.b16 %v1835, %v1827
    %v2340 = vpack.c.b16 %v1836, %v1828
    %v2341 = vpack.c.b16 %v1837, %v1829
    %v2342 = vpack.c.b16 %v1838, %v1830
    %v2343 = vpack.c.b16 %v1839, %v1831
    %v2344 = vpack.c.b16 %v1848, %v1840
    %v2345 = vpack.c.b16 %v1849, %v1841
    %v2346 = vpack.c.b16 %v1850, %v1842
    %v2347 = vpack.c.b16 %v1851, %v1843
    %v2348 = vpack.c.b16 %v1852, %v1844
    %v2349 = vpack.c.b16 %v1853, %v1845
    %v2350 = vpack.c.b16 %v1854, %v1846
    %v2351 = vpack.c.b16 %v1855, %v1847
    %v2352 = vpack.c.b16 %v1864, %v1856
    %v2353 = vpack.c.b16 %v1865, %v1857
    %v2354 = vpack.c.b16 %v1866, %v1858
    %v2355 = vpack.c.b16 %v1867, %v1859
    %v2356 = vpack.c.b16 %v1868, %v1860
    %v2357 = vpack.c.b16 %v1869, %v1861
    %v2358 = vpack.c.b16 %v1870, %v1862
    %v2359 = vpack.c.b16 %v1871, %v1863
    %v2360 = vpack.c.b16 %v1880, %v1872
    %v2361 = vpack.c.b16 %v1881, %v1873
    %v2362 = vpack.c.b16 %v1882, %v1874
    %v2363 = vpack.c.b16 %v1883, %v1875
    %v2364 = vpack.c.b16 %v1884, %v1876
    %v2365 = vpack.c.b16 %v1885, %v1877
    %v2366 = vpack.c.b16 %v1886, %v1878
    %v2367 = vpack.c.b16 %v1887, %v1879
    %v2368 = vpack.c.b16 %v1896, %v1888
    %v2369 = vpack.c.b16 %v1897, %v1889
    %v2370 = vpack.c.b16 %v1898, %v1890
    %v2371 = vpack.c.b16 %v1899, %v1891
    %v2372 = vpack.c.b16 %v1900, %v1892
    %v2373 = vpack.c.b16 %v1901, %v1893
    %v2374 = vpack.c.b16 %v1902, %v1894
    %v2375 = vpack.c.b16 %v1903, %v1895
    %v2376 = vpack.c.b16 %v1912, %v1904
    %v2377 = vpack.c.b16 %v1913, %v1905
    %v2378 = vpack.c.b16 %v1914, %v1906
    %v2379 = vpack.c.b16 %v1915, %v1907
    %v2380 = vpack.c.b16 %v1916, %v1908
    %v2381 = vpack.c.b16 %v1917, %v1909
    %v2382 = vpack.c.b16 %v1918, %v1910
    %v2383 = vpack.c.b16 %v1919, %v1911
    %v2384 = vpack.c.b16 %v1928, %v1920
    %v2385 = vpack.c.b16 %v1929, %v1921
    %v2386 = vpack.c.b16 %v1930, %v1922
    %v2387 = vpack.c.b16 %v1931, %v1923
    %v2388 = vpack.c.b16 %v1932, %v1924
    %v2389 = vpack.c.b16 %v1933, %v1925
    %v2390 = vpack.c.b16 %v1934, %v1926
    %v2391 = vpack.c.b16 %v1935, %v1927
    %v2392 = vpack.c.b16 %v1944, %v1936
    %v2393 = vpack.c.b16 %v1945, %v1937
    %v2394 = vpack.c.b16 %v1946, %v1938
    %v2395 = vpack.c.b16 %v1947, %v1939
    %v2396 = vpack.c.b16 %v1948, %v1940
    %v2397 = vpack.c.b16 %v1949, %v1941
    %v2398 = vpack.c.b16 %v1950, %v1942
    %v2399 = vpack.c.b16 %v1951, %v1943
    %v2400 = vpack.c.b16 %v1960, %v1952
    %v2401 = vpack.c.b16 %v1961, %v1953
    %v2402 = vpack.c.b16 %v1962, %v1954
    %v2403 = vpack.c.b16 %v1963, %v1955
    %v2404 = vpack.c.b16 %v1964, %v1956
    %v2405 = vpack.c.b16 %v1965, %v1957
    %v2406 = vpack.c.b16 %v1966, %v1958
    %v2407 = vpack.c.b16 %v1967, %v1959
    %v2408 = vpack.c.b16 %v1976, %v1968
    %v2409 = vpack.c.b16 %v1977, %v1969
    %v2410 = vpack.c.b16 %v1978, %v1970
    %v2411 = vpack.c.b16 %v1979, %v1971
    %v2412 = vpack.c.b16 %v1980, %v1972
    %v2413 = vpack.c.b16 %v1981, %v1973
    %v2414 = vpack.c.b16 %v1982, %v1974
    %v2415 = vpack.c.b16 %v1983, %v1975
    %v2416 = vpack.c.b16 %v1992, %v1984
    %v2417 = vpack.c.b16 %v1993, %v1985
    %v2418 = vpack.c.b16 %v1994, %v1986
    %v2419 = vpack.c.b16 %v1995, %v1987
    %v2420 = vpack.c.b16 %v1996, %v1988
    %v2421 = vpack.c.b16 %v1997, %v1989
    %v2422 = vpack.c.b16 %v1998, %v1990
    %v2423 = vpack.c.b16 %v1999, %v1991
    %v2424 = vpack.c.b16 %v2008, %v2000
    %v2425 = vpack.c.b16 %v2009, %v2001
    %v2426 = vpack.c.b16 %v2010, %v2002
    %v2427 = vpack.c.b16 %v2011, %v2003
    %v2428 = vpack.c.b16 %v2012, %v2004
    %v2429 = vpack.c.b16 %v2013, %v2005
    %v2430 = vpack.c.b16 %v2014, %v2006
    %v2431 = vpack.c.b16 %v2015, %v2007
    %v2432 = vpack.c.b16 %v2024, %v2016
    %v2433 = vpack.c.b16 %v2025, %v2017
    %v2434 = vpack.c.b16 %v2026, %v2018
    %v2435 = vpack.c.b16 %v2027, %v2019
    %v2436 = vpack.c.b16 %v2028, %v2020
    %v2437 = vpack.c.b16 %v2029, %v2021
    %v2438 = vpack.c.b16 %v2030, %v2022
    %v2439 = vpack.c.b16 %v2031, %v2023
    %v2440 = vpack.c.b16 %v2040, %v2032
    %v2441 = vpack.c.b16 %v2041, %v2033
    %v2442 = vpack.c.b16 %v2042, %v2034
    %v2443 = vpack.c.b16 %v2043, %v2035
    %v2444 = vpack.c.b16 %v2044, %v2036
    %v2445 = vpack.c.b16 %v2045, %v2037
    %v2446 = vpack.c.b16 %v2046, %v2038
    %v2447 = vpack.c.b16 %v2047, %v2039
    %v2448 = vpack.c.b16 %v2056, %v2048
    %v2449 = vpack.c.b16 %v2057, %v2049
    %v2450 = vpack.c.b16 %v2058, %v2050
    %v2451 = vpack.c.b16 %v2059, %v2051
    %v2452 = vpack.c.b16 %v2060, %v2052
    %v2453 = vpack.c.b16 %v2061, %v2053
    %v2454 = vpack.c.b16 %v2062, %v2054
    %v2455 = vpack.c.b16 %v2063, %v2055
    %v2456 = vpack.c.b16 %v2072, %v2064
    %v2457 = vpack.c.b16 %v2073, %v2065
    %v2458 = vpack.c.b16 %v2074, %v2066
    %v2459 = vpack.c.b16 %v2075, %v2067
    %v2460 = vpack.c.b16 %v2076, %v2068
    %v2461 = vpack.c.b16 %v2077, %v2069
    %v2462 = vpack.c.b16 %v2078, %v2070
    %v2463 = vpack.c.b16 %v2079, %v2071
    %v2464 = vpack.c.b16 %v2088, %v2080
    %v2465 = vpack.c.b16 %v2089, %v2081
    %v2466 = vpack.c.b16 %v2090, %v2082
    %v2467 = vpack.c.b16 %v2091, %v2083
    %v2468 = vpack.c.b16 %v2092, %v2084
    %v2469 = vpack.c.b16 %v2093, %v2085
    %v2470 = vpack.c.b16 %v2094, %v2086
    %v2471 = vpack.c.b16 %v2095, %v2087
    %v2472 = vpack.c.b16 %v2104, %v2096
    %v2473 = vpack.c.b16 %v2105, %v2097
    %v2474 = vpack.c.b16 %v2106, %v2098
    %v2475 = vpack.c.b16 %v2107, %v2099
    %v2476 = vpack.c.b16 %v2108, %v2100
    %v2477 = vpack.c.b16 %v2109, %v2101
    %v2478 = vpack.c.b16 %v2110, %v2102
    %v2479 = vpack.c.b16 %v2111, %v2103
    %v2480 = vpack.c.b16 %v2120, %v2112
    %v2481 = vpack.c.b16 %v2121, %v2113
    %v2482 = vpack.c.b16 %v2122, %v2114
    %v2483 = vpack.c.b16 %v2123, %v2115
    %v2484 = vpack.c.b16 %v2124, %v2116
    %v2485 = vpack.c.b16 %v2125, %v2117
    %v2486 = vpack.c.b16 %v2126, %v2118
    %v2487 = vpack.c.b16 %v2127, %v2119
    %v2488 = vpack.c.b16 %v2136, %v2128
    %v2489 = vpack.c.b16 %v2137, %v2129
    %v2490 = vpack.c.b16 %v2138, %v2130
    %v2491 = vpack.c.b16 %v2139, %v2131
    %v2492 = vpack.c.b16 %v2140, %v2132
    %v2493 = vpack.c.b16 %v2141, %v2133
    %v2494 = vpack.c.b16 %v2142, %v2134
    %v2495 = vpack.c.b16 %v2143, %v2135
    %v2496 = vpack.c.b16 %v2152, %v2144
    %v2497 = vpack.c.b16 %v2153, %v2145
    %v2498 = vpack.c.b16 %v2154, %v2146
    %v2499 = vpack.c.b16 %v2155, %v2147
    %v2500 = vpack.c.b16 %v2156, %v2148
    %v2501 = vpack.c.b16 %v2157, %v2149
    %v2502 = vpack.c.b16 %v2158, %v2150
    %v2503 = vpack.c.b16 %v2159, %v2151
    %v2504 = vpack.c.b16 %v2168, %v2160
    %v2505 = vpack.c.b16 %v2169, %v2161
    %v2506 = vpack.c.b16 %v2170, %v2162
    %v2507 = vpack.c.b16 %v2171, %v2163
    %v2508 = vpack.c.b16 %v2172, %v2164
    %v2509 = vpack.c.b16 %v2173, %v2165
    %v2510 = vpack.c.b16 %v2174, %v2166
    %v2511 = vpack.c.b16 %v2175, %v2167
    %v2512 = vpack.c.b16 %v2184, %v2176
    %v2513 = vpack.c.b16 %v2185, %v2177
    %v2514 = vpack.c.b16 %v2186, %v2178
    %v2515 = vpack.c.b16 %v2187, %v2179
    %v2516 = vpack.c.b16 %v2188, %v2180
    %v2517 = vpack.c.b16 %v2189, %v2181
    %v2518 = vpack.c.b16 %v2190, %v2182
    %v2519 = vpack.c.b16 %v2191, %v2183
    %v2520 = vpack.c.b16 %v2200, %v2192
    %v2521 = vpack.c.b16 %v2201, %v2193
    %v2522 = vpack.c.b16 %v2202, %v2194
    %v2523 = vpack.c.b16 %v2203, %v2195
    %v2524 = vpack.c.b16 %v2204, %v2196
    %v2525 = vpack.c.b16 %v2205, %v2197
    %v2526 = vpack.c.b16 %v2206, %v2198
    %v2527 = vpack.c.b16 %v2207, %v2199
    %v2528 = vpack.c.b16 %v2216, %v2208
    %v2529 = vpack.c.b16 %v2217, %v2209
    %v2530 = vpack.c.b16 %v2218, %v2210
    %v2531 = vpack.c.b16 %v2219, %v2211
    %v2532 = vpack.c.b16 %v2220, %v2212
    %v2533 = vpack.c.b16 %v2221, %v2213
    %v2534 = vpack.c.b16 %v2222, %v2214
    %v2535 = vpack.c.b16 %v2223, %v2215
    %v2536 = vpack.c.b16 %v2232, %v2224
    %v2537 = vpack.c.b16 %v2233, %v2225
    %v2538 = vpack.c.b16 %v2234, %v2226
    %v2539 = vpack.c.b16 %v2235, %v2227
    %v2540 = vpack.c.b16 %v2236, %v2228
    %v2541 = vpack.c.b16 %v2237, %v2229
    %v2542 = vpack.c.b16 %v2238, %v2230
    %v2543 = vpack.c.b16 %v2239, %v2231
    %v2544 = vpack.c.b16 %v2248, %v2240
    %v2545 = vpack.c.b16 %v2249, %v2241
    %v2546 = vpack.c.b16 %v2250, %v2242
    %v2547 = vpack.c.b16 %v2251, %v2243
    %v2548 = vpack.c.b16 %v2252, %v2244
    %v2549 = vpack.c.b16 %v2253, %v2245
    %v2550 = vpack.c.b16 %v2254, %v2246
    %v2551 = vpack.c.b16 %v2255, %v2247
    %v2552 = vpack.c.b16 %v2264, %v2256
    %v2553 = vpack.c.b16 %v2265, %v2257
    %v2554 = vpack.c.b16 %v2266, %v2258
    %v2555 = vpack.c.b16 %v2267, %v2259
    %v2556 = vpack.c.b16 %v2268, %v2260
    %v2557 = vpack.c.b16 %v2269, %v2261
    %v2558 = vpack.c.b16 %v2270, %v2262
    %v2559 = vpack.c.b16 %v2271, %v2263
    %v2560 = vpack.c.b16 %v2280, %v2272
    %v2561 = vpack.c.b16 %v2281, %v2273
    %v2562 = vpack.c.b16 %v2282, %v2274
    %v2563 = vpack.c.b16 %v2283, %v2275
    %v2564 = vpack.c.b16 %v2284, %v2276
    %v2565 = vpack.c.b16 %v2285, %v2277
    %v2566 = vpack.c.b16 %v2286, %v2278
    %v2567 = vpack.c.b16 %v2287, %v2279
    %v2568 = vpack.c.b16 %v2296, %v2288
    %v2569 = vpack.c.b16 %v2297, %v2289
    %v2570 = vpack.c.b16 %v2298, %v2290
    %v2571 = vpack.c.b16 %v2299, %v2291
    %v2572 = vpack.c.b16 %v2300, %v2292
    %v2573 = vpack.c.b16 %v2301, %v2293
    %v2574 = vpack.c.b16 %v2302, %v2294
    %v2575 = vpack.c.b16 %v2303, %v2295
    %v2576 = vpack.c.b16 %v2312, %v2304
    %v2577 = vpack.c.b16 %v2313, %v2305
    %v2578 = vpack.c.b16 %v2314, %v2306
    %v2579 = vpack.c.b16 %v2315, %v2307
    %v2580 = vpack.c.b16 %v2316, %v2308
    %v2581 = vpack.c.b16 %v2317, %v2309
    %v2582 = vpack.c.b16 %v2318, %v2310
    %v2583 = vpack.c.b16 %v2319, %v2311
    %v2584 = vpack.c.b16 %v2328, %v2320
    %v2585 = vpack.c.b16 %v2329, %v2321
    %v2586 = vpack.c.b16 %v2330, %v2322
    %v2587 = vpack.c.b16 %v2331, %v2323
    %v2588 = vpack.c.b16 %v2332, %v2324
    %v2589 = vpack.c.b16 %v2333, %v2325
    %v2590 = vpack.c.b16 %v2334, %v2326
    %v2591 = vpack.c.b16 %v2335, %v2327
    %2848 = vmatprep.subr.bf16.mxu0 %v2393
    %2849 = vmatpush1.bf16.msra.mxu0 %v2392
    %2850 = vmatprep.subr.bf16.mxu0 %v2385
    %2851 = vmatpush1.bf16.msra.mxu0 %v2384
    %2852 = vmatprep.subr.bf16.mxu0 %v2377
    %2853 = vmatpush1.bf16.msra.mxu0 %v2376
    %2854 = vmatprep.subr.bf16.mxu0 %v2369
    %2855 = vmatpush1.bf16.msra.mxu0 %v2368
    %2856 = vmatprep.subr.bf16.mxu0 %v2361
    %2857 = vmatpush1.bf16.msra.mxu0 %v2360
    %2858 = vmatprep.subr.bf16.mxu0 %v2353
    %2859 = vmatpush1.bf16.msra.mxu0 %v2352
    %2860 = vmatprep.subr.bf16.mxu0 %v2345
    %2861 = vmatpush1.bf16.msra.mxu0 %v2344
    %2862 = vmatprep.subr.bf16.mxu0 %v2337
    %2863 = vmatpush1.bf16.msra.mxu0 %v2336
    %2864 = vmatprep.subr.bf16.mxu0 %v2457
    %2865 = vmatpush2.bf16.msra.mxu0 %v2456
    %2866 = vmatprep.subr.bf16.mxu0 %v2449
    %2867 = vmatpush2.bf16.msra.mxu0 %v2448
    %2868 = vmatprep.subr.bf16.mxu0 %v2441
    %2869 = vmatpush2.bf16.msra.mxu0 %v2440
    %2870 = vmatprep.subr.bf16.mxu0 %v2433
    %2871 = vmatpush2.bf16.msra.mxu0 %v2432
    %2872 = vmatprep.subr.bf16.mxu0 %v2425
    %2873 = vmatpush2.bf16.msra.mxu0 %v2424
    %2874 = vmatprep.subr.bf16.mxu0 %v2417
    %2875 = vmatpush2.bf16.msra.mxu0 %v2416
    %2876 = vmatprep.subr.bf16.mxu0 %v2409
    %2877 = vmatpush2.bf16.msra.mxu0 %v2408
    %2878 = vmatprep.subr.bf16.mxu0 %v2401
    %2879 = vmatpush2.bf16.msra.mxu0 %v2400
    %2880 = vmatprep.mubr.bf16.mxu0 %v1309
    %2881 = vmatmul.mubr.bf16.gmra.mxu0 %v1308
    %v2882 = vpop.f32.mrf.mxu0
    %v2883 = vadd.f32 0.0, %v2882
    %v2884 = vpop.f32.mrf.mxu0
    %v2885 = vadd.f32 0.0, %v2884
    %v2886 = vpop.f32.mrf.mxu0
    %v2887 = vpop.f32.mrf.mxu0
    %2888 = vdwg.mxu0
    %2889 = vmatprep.subr.bf16.mxu0 %v2521
    %2890 = vmatpush1.bf16.msra.mxu0 %v2520
    %2891 = vmatprep.subr.bf16.mxu0 %v2513
    %2892 = vmatpush1.bf16.msra.mxu0 %v2512
    %2893 = vmatprep.subr.bf16.mxu0 %v2505
    %2894 = vmatpush1.bf16.msra.mxu0 %v2504
    %2895 = vmatprep.subr.bf16.mxu0 %v2497
    %2896 = vmatpush1.bf16.msra.mxu0 %v2496
    %2897 = vmatprep.subr.bf16.mxu0 %v2489
    %2898 = vmatpush1.bf16.msra.mxu0 %v2488
    %2899 = vmatprep.subr.bf16.mxu0 %v2481
    %2900 = vmatpush1.bf16.msra.mxu0 %v2480
    %2901 = vmatprep.subr.bf16.mxu0 %v2473
    %2902 = vmatpush1.bf16.msra.mxu0 %v2472
    %2903 = vmatprep.subr.bf16.mxu0 %v2465
    %2904 = vmatpush1.bf16.msra.mxu0 %v2464
    %2905 = vmatprep.subr.bf16.mxu0 %v2585
    %2906 = vmatpush2.bf16.msra.mxu0 %v2584
    %2907 = vmatprep.subr.bf16.mxu0 %v2577
    %2908 = vmatpush2.bf16.msra.mxu0 %v2576
    %2909 = vmatprep.subr.bf16.mxu0 %v2569
    %2910 = vmatpush2.bf16.msra.mxu0 %v2568
    %2911 = vmatprep.subr.bf16.mxu0 %v2561
    %2912 = vmatpush2.bf16.msra.mxu0 %v2560
    %2913 = vmatprep.subr.bf16.mxu0 %v2553
    %2914 = vmatpush2.bf16.msra.mxu0 %v2552
    %2915 = vmatprep.subr.bf16.mxu0 %v2545
    %2916 = vmatpush2.bf16.msra.mxu0 %v2544
    %2917 = vmatprep.subr.bf16.mxu0 %v2537
    %2918 = vmatpush2.bf16.msra.mxu0 %v2536
    %2919 = vmatprep.subr.bf16.mxu0 %v2529
    %2920 = vmatpush2.bf16.msra.mxu0 %v2528
    %2921 = vmatprep.mubr.bf16.mxu0 %v1311
    %2922 = vmatmul.mubr.bf16.gmra.mxu0 %v1310
    %v2923 = vpop.f32.mrf.mxu0
    %v2924 = vadd.f32 %v2883, %v2923
    %v2925 = vpop.f32.mrf.mxu0
    %v2926 = vadd.f32 %v2885, %v2925
    %v2927 = vpop.f32.mrf.mxu0
    %v2928 = vpop.f32.mrf.mxu0
    %2929 = vdwg.mxu0
    %2930 = vmatprep.subr.bf16.mxu0 %v2395
    %2931 = vmatpush1.bf16.msra.mxu0 %v2394
    %2932 = vmatprep.subr.bf16.mxu0 %v2387
    %2933 = vmatpush1.bf16.msra.mxu0 %v2386
    %2934 = vmatprep.subr.bf16.mxu0 %v2379
    %2935 = vmatpush1.bf16.msra.mxu0 %v2378
    %2936 = vmatprep.subr.bf16.mxu0 %v2371
    %2937 = vmatpush1.bf16.msra.mxu0 %v2370
    %2938 = vmatprep.subr.bf16.mxu0 %v2363
    %2939 = vmatpush1.bf16.msra.mxu0 %v2362
    %2940 = vmatprep.subr.bf16.mxu0 %v2355
    %2941 = vmatpush1.bf16.msra.mxu0 %v2354
    %2942 = vmatprep.subr.bf16.mxu0 %v2347
    %2943 = vmatpush1.bf16.msra.mxu0 %v2346
    %2944 = vmatprep.subr.bf16.mxu0 %v2339
    %2945 = vmatpush1.bf16.msra.mxu0 %v2338
    %2946 = vmatprep.subr.bf16.mxu0 %v2459
    %2947 = vmatpush2.bf16.msra.mxu0 %v2458
    %2948 = vmatprep.subr.bf16.mxu0 %v2451
    %2949 = vmatpush2.bf16.msra.mxu0 %v2450
    %2950 = vmatprep.subr.bf16.mxu0 %v2443
    %2951 = vmatpush2.bf16.msra.mxu0 %v2442
    %2952 = vmatprep.subr.bf16.mxu0 %v2435
    %2953 = vmatpush2.bf16.msra.mxu0 %v2434
    %2954 = vmatprep.subr.bf16.mxu0 %v2427
    %2955 = vmatpush2.bf16.msra.mxu0 %v2426
    %2956 = vmatprep.subr.bf16.mxu0 %v2419
    %2957 = vmatpush2.bf16.msra.mxu0 %v2418
    %2958 = vmatprep.subr.bf16.mxu0 %v2411
    %2959 = vmatpush2.bf16.msra.mxu0 %v2410
    %2960 = vmatprep.subr.bf16.mxu0 %v2403
    %2961 = vmatpush2.bf16.msra.mxu0 %v2402
    %2962 = vmatprep.mubr.bf16.mxu0 %v1309
    %2963 = vmatmul.mubr.bf16.gmra.mxu0 %v1308
    %v2964 = vpop.f32.mrf.mxu0
    %v2965 = vadd.f32 0.0, %v2964
    %v2966 = vpop.f32.mrf.mxu0
    %v2967 = vadd.f32 0.0, %v2966
    %v2968 = vpop.f32.mrf.mxu0
    %v2969 = vpop.f32.mrf.mxu0
    %2970 = vdwg.mxu0
    %2971 = vmatprep.subr.bf16.mxu0 %v2523
    %2972 = vmatpush1.bf16.msra.mxu0 %v2522
    %2973 = vmatprep.subr.bf16.mxu0 %v2515
    %2974 = vmatpush1.bf16.msra.mxu0 %v2514
    %2975 = vmatprep.subr.bf16.mxu0 %v2507
    %2976 = vmatpush1.bf16.msra.mxu0 %v2506
    %2977 = vmatprep.subr.bf16.mxu0 %v2499
    %2978 = vmatpush1.bf16.msra.mxu0 %v2498
    %2979 = vmatprep.subr.bf16.mxu0 %v2491
    %2980 = vmatpush1.bf16.msra.mxu0 %v2490
    %2981 = vmatprep.subr.bf16.mxu0 %v2483
    %2982 = vmatpush1.bf16.msra.mxu0 %v2482
    %2983 = vmatprep.subr.bf16.mxu0 %v2475
    %2984 = vmatpush1.bf16.msra.mxu0 %v2474
    %2985 = vmatprep.subr.bf16.mxu0 %v2467
    %2986 = vmatpush1.bf16.msra.mxu0 %v2466
    %2987 = vmatprep.subr.bf16.mxu0 %v2587
    %2988 = vmatpush2.bf16.msra.mxu0 %v2586
    %2989 = vmatprep.subr.bf16.mxu0 %v2579
    %2990 = vmatpush2.bf16.msra.mxu0 %v2578
    %2991 = vmatprep.subr.bf16.mxu0 %v2571
    %2992 = vmatpush2.bf16.msra.mxu0 %v2570
    %2993 = vmatprep.subr.bf16.mxu0 %v2563
    %2994 = vmatpush2.bf16.msra.mxu0 %v2562
    %2995 = vmatprep.subr.bf16.mxu0 %v2555
    %2996 = vmatpush2.bf16.msra.mxu0 %v2554
    %2997 = vmatprep.subr.bf16.mxu0 %v2547
    %2998 = vmatpush2.bf16.msra.mxu0 %v2546
    %2999 = vmatprep.subr.bf16.mxu0 %v2539
    %3000 = vmatpush2.bf16.msra.mxu0 %v2538
    %3001 = vmatprep.subr.bf16.mxu0 %v2531
    %3002 = vmatpush2.bf16.msra.mxu0 %v2530
    %3003 = vmatprep.mubr.bf16.mxu0 %v1311
    %3004 = vmatmul.mubr.bf16.gmra.mxu0 %v1310
    %v3005 = vpop.f32.mrf.mxu0
    %v3006 = vadd.f32 %v2965, %v3005
    %v3007 = vpop.f32.mrf.mxu0
    %v3008 = vadd.f32 %v2967, %v3007
    %v3009 = vpop.f32.mrf.mxu0
    %v3010 = vpop.f32.mrf.mxu0
    %3011 = vdwg.mxu0
    %3012 = vmatprep.subr.bf16.mxu0 %v2397
    %3013 = vmatpush1.bf16.msra.mxu0 %v2396
    %3014 = vmatprep.subr.bf16.mxu0 %v2389
    %3015 = vmatpush1.bf16.msra.mxu0 %v2388
    %3016 = vmatprep.subr.bf16.mxu0 %v2381
    %3017 = vmatpush1.bf16.msra.mxu0 %v2380
    %3018 = vmatprep.subr.bf16.mxu0 %v2373
    %3019 = vmatpush1.bf16.msra.mxu0 %v2372
    %3020 = vmatprep.subr.bf16.mxu0 %v2365
    %3021 = vmatpush1.bf16.msra.mxu0 %v2364
    %3022 = vmatprep.subr.bf16.mxu0 %v2357
    %3023 = vmatpush1.bf16.msra.mxu0 %v2356
    %3024 = vmatprep.subr.bf16.mxu0 %v2349
    %3025 = vmatpush1.bf16.msra.mxu0 %v2348
    %3026 = vmatprep.subr.bf16.mxu0 %v2341
    %3027 = vmatpush1.bf16.msra.mxu0 %v2340
    %3028 = vmatprep.subr.bf16.mxu0 %v2461
    %3029 = vmatpush2.bf16.msra.mxu0 %v2460
    %3030 = vmatprep.subr.bf16.mxu0 %v2453
    %3031 = vmatpush2.bf16.msra.mxu0 %v2452
    %3032 = vmatprep.subr.bf16.mxu0 %v2445
    %3033 = vmatpush2.bf16.msra.mxu0 %v2444
    %3034 = vmatprep.subr.bf16.mxu0 %v2437
    %3035 = vmatpush2.bf16.msra.mxu0 %v2436
    %3036 = vmatprep.subr.bf16.mxu0 %v2429
    %3037 = vmatpush2.bf16.msra.mxu0 %v2428
    %3038 = vmatprep.subr.bf16.mxu0 %v2421
    %3039 = vmatpush2.bf16.msra.mxu0 %v2420
    %3040 = vmatprep.subr.bf16.mxu0 %v2413
    %3041 = vmatpush2.bf16.msra.mxu0 %v2412
    %3042 = vmatprep.subr.bf16.mxu0 %v2405
    %3043 = vmatpush2.bf16.msra.mxu0 %v2404
    %3044 = vmatprep.mubr.bf16.mxu0 %v1309
    %3045 = vmatmul.mubr.bf16.gmra.mxu0 %v1308
    %v3046 = vpop.f32.mrf.mxu0
    %v3047 = vadd.f32 0.0, %v3046
    %v3048 = vpop.f32.mrf.mxu0
    %v3049 = vadd.f32 0.0, %v3048
    %v3050 = vpop.f32.mrf.mxu0
    %v3051 = vpop.f32.mrf.mxu0
    %3052 = vdwg.mxu0
    %3053 = vmatprep.subr.bf16.mxu0 %v2525
    %3054 = vmatpush1.bf16.msra.mxu0 %v2524
    %3055 = vmatprep.subr.bf16.mxu0 %v2517
    %3056 = vmatpush1.bf16.msra.mxu0 %v2516
    %3057 = vmatprep.subr.bf16.mxu0 %v2509
    %3058 = vmatpush1.bf16.msra.mxu0 %v2508
    %3059 = vmatprep.subr.bf16.mxu0 %v2501
    %3060 = vmatpush1.bf16.msra.mxu0 %v2500
    %3061 = vmatprep.subr.bf16.mxu0 %v2493
    %3062 = vmatpush1.bf16.msra.mxu0 %v2492
    %3063 = vmatprep.subr.bf16.mxu0 %v2485
    %3064 = vmatpush1.bf16.msra.mxu0 %v2484
    %3065 = vmatprep.subr.bf16.mxu0 %v2477
    %3066 = vmatpush1.bf16.msra.mxu0 %v2476
    %3067 = vmatprep.subr.bf16.mxu0 %v2469
    %3068 = vmatpush1.bf16.msra.mxu0 %v2468
    %3069 = vmatprep.subr.bf16.mxu0 %v2589
    %3070 = vmatpush2.bf16.msra.mxu0 %v2588
    %3071 = vmatprep.subr.bf16.mxu0 %v2581
    %3072 = vmatpush2.bf16.msra.mxu0 %v2580
    %3073 = vmatprep.subr.bf16.mxu0 %v2573
    %3074 = vmatpush2.bf16.msra.mxu0 %v2572
    %3075 = vmatprep.subr.bf16.mxu0 %v2565
    %3076 = vmatpush2.bf16.msra.mxu0 %v2564
    %3077 = vmatprep.subr.bf16.mxu0 %v2557
    %3078 = vmatpush2.bf16.msra.mxu0 %v2556
    %3079 = vmatprep.subr.bf16.mxu0 %v2549
    %3080 = vmatpush2.bf16.msra.mxu0 %v2548
    %3081 = vmatprep.subr.bf16.mxu0 %v2541
    %3082 = vmatpush2.bf16.msra.mxu0 %v2540
    %3083 = vmatprep.subr.bf16.mxu0 %v2533
    %3084 = vmatpush2.bf16.msra.mxu0 %v2532
    %3085 = vmatprep.mubr.bf16.mxu0 %v1311
    %3086 = vmatmul.mubr.bf16.gmra.mxu0 %v1310
    %v3087 = vpop.f32.mrf.mxu0
    %v3088 = vadd.f32 %v3047, %v3087
    %v3089 = vpop.f32.mrf.mxu0
    %v3090 = vadd.f32 %v3049, %v3089
    %v3091 = vpop.f32.mrf.mxu0
    %v3092 = vpop.f32.mrf.mxu0
    %3093 = vdwg.mxu0
    %3094 = vmatprep.subr.bf16.mxu0 %v2399
    %3095 = vmatpush1.bf16.msra.mxu0 %v2398
    %3096 = vmatprep.subr.bf16.mxu0 %v2391
    %3097 = vmatpush1.bf16.msra.mxu0 %v2390
    %3098 = vmatprep.subr.bf16.mxu0 %v2383
    %3099 = vmatpush1.bf16.msra.mxu0 %v2382
    %3100 = vmatprep.subr.bf16.mxu0 %v2375
    %3101 = vmatpush1.bf16.msra.mxu0 %v2374
    %3102 = vmatprep.subr.bf16.mxu0 %v2367
    %3103 = vmatpush1.bf16.msra.mxu0 %v2366
    %3104 = vmatprep.subr.bf16.mxu0 %v2359
    %3105 = vmatpush1.bf16.msra.mxu0 %v2358
    %3106 = vmatprep.subr.bf16.mxu0 %v2351
    %3107 = vmatpush1.bf16.msra.mxu0 %v2350
    %3108 = vmatprep.subr.bf16.mxu0 %v2343
    %3109 = vmatpush1.bf16.msra.mxu0 %v2342
    %3110 = vmatprep.subr.bf16.mxu0 %v2463
    %3111 = vmatpush2.bf16.msra.mxu0 %v2462
    %3112 = vmatprep.subr.bf16.mxu0 %v2455
    %3113 = vmatpush2.bf16.msra.mxu0 %v2454
    %3114 = vmatprep.subr.bf16.mxu0 %v2447
    %3115 = vmatpush2.bf16.msra.mxu0 %v2446
    %3116 = vmatprep.subr.bf16.mxu0 %v2439
    %3117 = vmatpush2.bf16.msra.mxu0 %v2438
    %3118 = vmatprep.subr.bf16.mxu0 %v2431
    %3119 = vmatpush2.bf16.msra.mxu0 %v2430
    %3120 = vmatprep.subr.bf16.mxu0 %v2423
    %3121 = vmatpush2.bf16.msra.mxu0 %v2422
    %3122 = vmatprep.subr.bf16.mxu0 %v2415
    %3123 = vmatpush2.bf16.msra.mxu0 %v2414
    %3124 = vmatprep.subr.bf16.mxu0 %v2407
    %3125 = vmatpush2.bf16.msra.mxu0 %v2406
    %3126 = vmatprep.mubr.bf16.mxu0 %v1309
    %3127 = vmatmul.mubr.bf16.gmra.mxu0 %v1308
    %v3128 = vpop.f32.mrf.mxu0
    %v3129 = vadd.f32 0.0, %v3128
    %v3130 = vpop.f32.mrf.mxu0
    %v3131 = vadd.f32 0.0, %v3130
    %v3132 = vpop.f32.mrf.mxu0
    %v3133 = vpop.f32.mrf.mxu0
    %3134 = vdwg.mxu0
    %3135 = vmatprep.subr.bf16.mxu0 %v2527
    %3136 = vmatpush1.bf16.msra.mxu0 %v2526
    %3137 = vmatprep.subr.bf16.mxu0 %v2519
    %3138 = vmatpush1.bf16.msra.mxu0 %v2518
    %3139 = vmatprep.subr.bf16.mxu0 %v2511
    %3140 = vmatpush1.bf16.msra.mxu0 %v2510
    %3141 = vmatprep.subr.bf16.mxu0 %v2503
    %3142 = vmatpush1.bf16.msra.mxu0 %v2502
    %3143 = vmatprep.subr.bf16.mxu0 %v2495
    %3144 = vmatpush1.bf16.msra.mxu0 %v2494
    %3145 = vmatprep.subr.bf16.mxu0 %v2487
    %3146 = vmatpush1.bf16.msra.mxu0 %v2486
    %3147 = vmatprep.subr.bf16.mxu0 %v2479
    %3148 = vmatpush1.bf16.msra.mxu0 %v2478
    %3149 = vmatprep.subr.bf16.mxu0 %v2471
    %3150 = vmatpush1.bf16.msra.mxu0 %v2470
    %3151 = vmatprep.subr.bf16.mxu0 %v2591
    %3152 = vmatpush2.bf16.msra.mxu0 %v2590
    %3153 = vmatprep.subr.bf16.mxu0 %v2583
    %3154 = vmatpush2.bf16.msra.mxu0 %v2582
    %3155 = vmatprep.subr.bf16.mxu0 %v2575
    %3156 = vmatpush2.bf16.msra.mxu0 %v2574
    %3157 = vmatprep.subr.bf16.mxu0 %v2567
    %3158 = vmatpush2.bf16.msra.mxu0 %v2566
    %3159 = vmatprep.subr.bf16.mxu0 %v2559
    %3160 = vmatpush2.bf16.msra.mxu0 %v2558
    %3161 = vmatprep.subr.bf16.mxu0 %v2551
    %3162 = vmatpush2.bf16.msra.mxu0 %v2550
    %3163 = vmatprep.subr.bf16.mxu0 %v2543
    %3164 = vmatpush2.bf16.msra.mxu0 %v2542
    %3165 = vmatprep.subr.bf16.mxu0 %v2535
    %3166 = vmatpush2.bf16.msra.mxu0 %v2534
    %3167 = vmatprep.mubr.bf16.mxu0 %v1311
    %3168 = vmatmul.mubr.bf16.gmra.mxu0 %v1310
    %v3169 = vpop.f32.mrf.mxu0
    %v3170 = vadd.f32 %v3129, %v3169
    %v3171 = vpop.f32.mrf.mxu0
    %v3172 = vadd.f32 %v3131, %v3171
    %v3173 = vpop.f32.mrf.mxu0
    %v3174 = vpop.f32.mrf.mxu0
    %3175 = vdwg.mxu0
    %v3176 = vld [vmem:[#allocation18] sm:$0xff]
    %v3177 = vld [vmem:[#allocation19] sm:$0xff]
    %v3178 = vrot.slane %v2924, 4
    %v3179 = vadd.f32 %v2924, %v3178
    %v3180 = vrot.slane %v3179, 2
    %v3181 = vadd.f32 %v3179, %v3180
    %v3182 = vrot.slane %v3181, 1
    %v3183 = vadd.f32 %v3181, %v3182
    %v3184 = vrot.slane %v2926, 4
    %v3185 = vadd.f32 %v2926, %v3184
    %v3186 = vrot.slane %v3185, 2
    %v3187 = vadd.f32 %v3185, %v3186
    %v3188 = vrot.slane %v3187, 1
    %v3189 = vadd.f32 %v3187, %v3188
    %v3190 = vrot.slane %v3006, 4
    %v3191 = vadd.f32 %v3006, %v3190
    %v3192 = vrot.slane %v3191, 2
    %v3193 = vadd.f32 %v3191, %v3192
    %v3194 = vrot.slane %v3193, 1
    %v3195 = vadd.f32 %v3193, %v3194
    %v3196 = vrot.slane %v3008, 4
    %v3197 = vadd.f32 %v3008, %v3196
    %v3198 = vrot.slane %v3197, 2
    %v3199 = vadd.f32 %v3197, %v3198
    %v3200 = vrot.slane %v3199, 1
    %v3201 = vadd.f32 %v3199, %v3200
    %v3202 = vrot.slane %v3088, 4
    %v3203 = vadd.f32 %v3088, %v3202
    %v3204 = vrot.slane %v3203, 2
    %v3205 = vadd.f32 %v3203, %v3204
    %v3206 = vrot.slane %v3205, 1
    %v3207 = vadd.f32 %v3205, %v3206
    %v3208 = vrot.slane %v3090, 4
    %v3209 = vadd.f32 %v3090, %v3208
    %v3210 = vrot.slane %v3209, 2
    %v3211 = vadd.f32 %v3209, %v3210
    %v3212 = vrot.slane %v3211, 1
    %v3213 = vadd.f32 %v3211, %v3212
    %v3214 = vrot.slane %v3170, 4
    %v3215 = vadd.f32 %v3170, %v3214
    %v3216 = vrot.slane %v3215, 2
    %v3217 = vadd.f32 %v3215, %v3216
    %v3218 = vrot.slane %v3217, 1
    %v3219 = vadd.f32 %v3217, %v3218
    %v3220 = vrot.slane %v3172, 4
    %v3221 = vadd.f32 %v3172, %v3220
    %v3222 = vrot.slane %v3221, 2
    %v3223 = vadd.f32 %v3221, %v3222
    %v3224 = vrot.slane %v3223, 1
    %v3225 = vadd.f32 %v3223, %v3224
    %v3226 = vmul.f32 %v3183, %v598
    %v3227 = vmul.f32 %v3189, %v598
    %v3228 = vmul.f32 %v3195, %v598
    %v3229 = vmul.f32 %v3201, %v598
    %v3230 = vmul.f32 %v3207, %v598
    %v3231 = vmul.f32 %v3213, %v598
    %v3232 = vmul.f32 %v3219, %v598
    %v3233 = vmul.f32 %v3225, %v598
    %v3234 = vsub.f32 %v2924, %v3226
    %v3235 = vsub.f32 %v2926, %v3227
    %v3236 = vsub.f32 %v3006, %v3228
    %v3237 = vsub.f32 %v3008, %v3229
    %v3238 = vsub.f32 %v3088, %v3230
    %v3239 = vsub.f32 %v3090, %v3231
    %v3240 = vsub.f32 %v3170, %v3232
    %v3241 = vsub.f32 %v3172, %v3233
    %v3242 = vmul.f32 %v3234, %v3234
    %v3243 = vmul.f32 %v3235, %v3235
    %v3244 = vmul.f32 %v3236, %v3236
    %v3245 = vmul.f32 %v3237, %v3237
    %v3246 = vmul.f32 %v3238, %v3238
    %v3247 = vmul.f32 %v3239, %v3239
    %v3248 = vmul.f32 %v3240, %v3240
    %v3249 = vmul.f32 %v3241, %v3241
    %v3250 = vrot.slane %v3242, 4
    %v3251 = vadd.f32 %v3242, %v3250
    %v3252 = vrot.slane %v3251, 2
    %v3253 = vadd.f32 %v3251, %v3252
    %v3254 = vrot.slane %v3253, 1
    %v3255 = vadd.f32 %v3253, %v3254
    %v3256 = vrot.slane %v3243, 4
    %v3257 = vadd.f32 %v3243, %v3256
    %v3258 = vrot.slane %v3257, 2
    %v3259 = vadd.f32 %v3257, %v3258
    %v3260 = vrot.slane %v3259, 1
    %v3261 = vadd.f32 %v3259, %v3260
    %v3262 = vrot.slane %v3244, 4
    %v3263 = vadd.f32 %v3244, %v3262
    %v3264 = vrot.slane %v3263, 2
    %v3265 = vadd.f32 %v3263, %v3264
    %v3266 = vrot.slane %v3265, 1
    %v3267 = vadd.f32 %v3265, %v3266
    %v3268 = vrot.slane %v3245, 4
    %v3269 = vadd.f32 %v3245, %v3268
    %v3270 = vrot.slane %v3269, 2
    %v3271 = vadd.f32 %v3269, %v3270
    %v3272 = vrot.slane %v3271, 1
    %v3273 = vadd.f32 %v3271, %v3272
    %v3274 = vrot.slane %v3246, 4
    %v3275 = vadd.f32 %v3246, %v3274
    %v3276 = vrot.slane %v3275, 2
    %v3277 = vadd.f32 %v3275, %v3276
    %v3278 = vrot.slane %v3277, 1
    %v3279 = vadd.f32 %v3277, %v3278
    %v3280 = vrot.slane %v3247, 4
    %v3281 = vadd.f32 %v3247, %v3280
    %v3282 = vrot.slane %v3281, 2
    %v3283 = vadd.f32 %v3281, %v3282
    %v3284 = vrot.slane %v3283, 1
    %v3285 = vadd.f32 %v3283, %v3284
    %v3286 = vrot.slane %v3248, 4
    %v3287 = vadd.f32 %v3248, %v3286
    %v3288 = vrot.slane %v3287, 2
    %v3289 = vadd.f32 %v3287, %v3288
    %v3290 = vrot.slane %v3289, 1
    %v3291 = vadd.f32 %v3289, %v3290
    %v3292 = vrot.slane %v3249, 4
    %v3293 = vadd.f32 %v3249, %v3292
    %v3294 = vrot.slane %v3293, 2
    %v3295 = vadd.f32 %v3293, %v3294
    %v3296 = vrot.slane %v3295, 1
    %v3297 = vadd.f32 %v3295, %v3296
    %v3298 = vmul.f32 %v3255, %v598
    %v3299 = vmul.f32 %v3261, %v598
    %v3300 = vmul.f32 %v3267, %v598
    %v3301 = vmul.f32 %v3273, %v598
    %v3302 = vmul.f32 %v3279, %v598
    %v3303 = vmul.f32 %v3285, %v598
    %v3304 = vmul.f32 %v3291, %v598
    %v3305 = vmul.f32 %v3297, %v598
    %v3306 = vadd.f32 %v3298, 1e-05
    %v3307 = vadd.f32 %v3299, 1e-05
    %v3308 = vadd.f32 %v3300, 1e-05
    %v3309 = vadd.f32 %v3301, 1e-05
    %v3310 = vadd.f32 %v3302, 1e-05
    %v3311 = vadd.f32 %v3303, 1e-05
    %v3312 = vadd.f32 %v3304, 1e-05
    %v3313 = vadd.f32 %v3305, 1e-05
    %v3314 = vrsqrt.pop %v3306
    %v3315 = vrsqrt.pop %v3307
    %v3316 = vrsqrt.pop %v3308
    %v3317 = vrsqrt.pop %v3309
    %v3318 = vrsqrt.pop %v3310
    %v3319 = vrsqrt.pop %v3311
    %v3320 = vrsqrt.pop %v3312
    %v3321 = vrsqrt.pop %v3313
    %v3330 = vcombine.low %v3314, %v3315
    %v3331 = vcombine.low %v3316, %v3317
    %v3332 = vcombine.low %v3318, %v3319
    %v3333 = vcombine.low %v3320, %v3321
    %v3335 = vunpack.c.l.s4 1966171168
    %v3336 = vunpack.c.0.s8 %v3335
    %v3337 = vlaneseq
    %v3338 = vshrl.u32 %v3337, 7
    %v3339 = vsub.s32 %v3336, %v3338
    %v3340 = vrot.slane %v3330, %v3339
    %v3342 = vunpack.c.l.s4 1966171168
    %v3343 = vunpack.c.0.s8 %v3342
    %v3344 = vlaneseq
    %v3345 = vshrl.u32 %v3344, 7
    %v3346 = vsub.s32 %v3343, %v3345
    %v3347 = vrot.slane %v3331, %v3346
    %v3349 = vunpack.c.l.s4 1966171168
    %v3350 = vunpack.c.0.s8 %v3349
    %v3351 = vlaneseq
    %v3352 = vshrl.u32 %v3351, 7
    %v3353 = vsub.s32 %v3350, %v3352
    %v3354 = vrot.slane %v3332, %v3353
    %v3356 = vunpack.c.l.s4 1966171168
    %v3357 = vunpack.c.0.s8 %v3356
    %v3358 = vlaneseq
    %v3359 = vshrl.u32 %v3358, 7
    %v3360 = vsub.s32 %v3357, %v3359
    %v3361 = vrot.slane %v3333, %v3360
    %v3362 = vcombine.low %v3340, %v3347
    %v3363 = vcombine.low %v3354, %v3361
    %v3365 = vunpack.c.l.s4 1966171168
    %v3366 = vunpack.c.0.s8 %v3365
    %v3367 = vlaneseq
    %v3368 = vshrl.u32 %v3367, 7
    %v3369 = vsub.s32 %v3366, %v3368
    %v3370 = vrot.slane %v3362, %v3369
    %v3372 = vunpack.c.l.s4 1966171168
    %v3373 = vunpack.c.0.s8 %v3372
    %v3374 = vlaneseq
    %v3375 = vshrl.u32 %v3374, 7
    %v3376 = vsub.s32 %v3373, %v3375
    %v3377 = vrot.slane %v3363, %v3376
    %v3378 = vcombine.low %v3370, %v3377
    %v3380 = vmul.f32 %v3176, %v3378
    %v3382 = vlaneseq
    %v3383 = vshrl.u32 %v3382, 7
    %v3384 = vsub.s32 0, %v3383
    %v3385 = vrot.slane %v3380, %v3384
    %v3386 = vlaneseq
    %v3387 = vshrl.u32 %v3386, 7
    %v3388 = vsub.s32 1, %v3387
    %v3389 = vrot.slane %v3380, %v3388
    %v3390 = vlaneseq
    %v3391 = vshrl.u32 %v3390, 7
    %v3392 = vsub.s32 2, %v3391
    %v3393 = vrot.slane %v3380, %v3392
    %v3394 = vlaneseq
    %v3395 = vshrl.u32 %v3394, 7
    %v3396 = vsub.s32 3, %v3395
    %v3397 = vrot.slane %v3380, %v3396
    %v3398 = vlaneseq
    %v3399 = vshrl.u32 %v3398, 7
    %v3400 = vsub.s32 4, %v3399
    %v3401 = vrot.slane %v3380, %v3400
    %v3402 = vlaneseq
    %v3403 = vshrl.u32 %v3402, 7
    %v3404 = vsub.s32 5, %v3403
    %v3405 = vrot.slane %v3380, %v3404
    %v3406 = vlaneseq
    %v3407 = vshrl.u32 %v3406, 7
    %v3408 = vsub.s32 6, %v3407
    %v3409 = vrot.slane %v3380, %v3408
    %v3410 = vlaneseq
    %v3411 = vshrl.u32 %v3410, 7
    %v3412 = vsub.s32 7, %v3411
    %v3413 = vrot.slane %v3380, %v3412
    %v3422 = vmul.f32 %v3234, %v3385
    %v3423 = vmul.f32 %v3235, %v3389
    %v3424 = vmul.f32 %v3236, %v3393
    %v3425 = vmul.f32 %v3237, %v3397
    %v3426 = vmul.f32 %v3238, %v3401
    %v3427 = vmul.f32 %v3239, %v3405
    %v3428 = vmul.f32 %v3240, %v3409
    %v3429 = vmul.f32 %v3241, %v3413
    %v3431 = vlaneseq
    %v3432 = vshrl.u32 %v3431, 7
    %v3433 = vsub.s32 0, %v3432
    %v3434 = vrot.slane %v3177, %v3433
    %v3435 = vlaneseq
    %v3436 = vshrl.u32 %v3435, 7
    %v3437 = vsub.s32 1, %v3436
    %v3438 = vrot.slane %v3177, %v3437
    %v3439 = vlaneseq
    %v3440 = vshrl.u32 %v3439, 7
    %v3441 = vsub.s32 2, %v3440
    %v3442 = vrot.slane %v3177, %v3441
    %v3443 = vlaneseq
    %v3444 = vshrl.u32 %v3443, 7
    %v3445 = vsub.s32 3, %v3444
    %v3446 = vrot.slane %v3177, %v3445
    %v3447 = vlaneseq
    %v3448 = vshrl.u32 %v3447, 7
    %v3449 = vsub.s32 4, %v3448
    %v3450 = vrot.slane %v3177, %v3449
    %v3451 = vlaneseq
    %v3452 = vshrl.u32 %v3451, 7
    %v3453 = vsub.s32 5, %v3452
    %v3454 = vrot.slane %v3177, %v3453
    %v3455 = vlaneseq
    %v3456 = vshrl.u32 %v3455, 7
    %v3457 = vsub.s32 6, %v3456
    %v3458 = vrot.slane %v3177, %v3457
    %v3459 = vlaneseq
    %v3460 = vshrl.u32 %v3459, 7
    %v3461 = vsub.s32 7, %v3460
    %v3462 = vrot.slane %v3177, %v3461
    %v3471 = vadd.f32 %v3422, %v3434
    %v3472 = vadd.f32 %v3423, %v3438
    %v3473 = vadd.f32 %v3424, %v3442
    %v3474 = vadd.f32 %v3425, %v3446
    %v3475 = vadd.f32 %v3426, %v3450
    %v3476 = vadd.f32 %v3427, %v3454
    %v3477 = vadd.f32 %v3428, %v3458
    %v3478 = vadd.f32 %v3429, %v3462
    %vm3479 = vcmp.gt.f32.partialorder %v3471, 0.0
    %vm3480 = vcmp.gt.f32.partialorder %v3472, 0.0
    %vm3481 = vcmp.gt.f32.partialorder %v3473, 0.0
    %vm3482 = vcmp.gt.f32.partialorder %v3474, 0.0
    %vm3483 = vcmp.gt.f32.partialorder %v3475, 0.0
    %vm3484 = vcmp.gt.f32.partialorder %v3476, 0.0
    %vm3485 = vcmp.gt.f32.partialorder %v3477, 0.0
    %vm3486 = vcmp.gt.f32.partialorder %v3478, 0.0
    %v3487 = vmul.f32 %v3471, 0.2
    %v3488 = vmul.f32 %v3472, 0.2
    %v3489 = vmul.f32 %v3473, 0.2
    %v3490 = vmul.f32 %v3474, 0.2
    %v3491 = vmul.f32 %v3475, 0.2
    %v3492 = vmul.f32 %v3476, 0.2
    %v3493 = vmul.f32 %v3477, 0.2
    %v3494 = vmul.f32 %v3478, 0.2
    %v3495 = vsel %vm3479, %v3471, %v3487
    %v3496 = vsel %vm3480, %v3472, %v3488
    %v3497 = vsel %vm3481, %v3473, %v3489
    %v3498 = vsel %vm3482, %v3474, %v3490
    %v3499 = vsel %vm3483, %v3475, %v3491
    %v3500 = vsel %vm3484, %v3476, %v3492
    %v3501 = vsel %vm3485, %v3477, %v3493
    %v3502 = vsel %vm3486, %v3478, %v3494
    %v3503 = vpack.c.bf16 %v3495, %v3495
    %v3504 = vpack.c.bf16 %v3496, %v3496
    %v3505 = vpack.c.bf16 %v3497, %v3497
    %v3506 = vpack.c.bf16 %v3498, %v3498
    %v3507 = vpack.c.bf16 %v3499, %v3499
    %v3508 = vpack.c.bf16 %v3500, %v3500
    %v3509 = vpack.c.bf16 %v3501, %v3501
    %v3510 = vpack.c.bf16 %v3502, %v3502
    %v3511 = vld [vmem:[#allocation21] sm:$0xff]
    %v3512 = vld [vmem:[#allocation21 + $0x8] sm:$0xff]
    %v3513 = vld [vmem:[#allocation21 + $0x10] sm:$0xff]
    %v3514 = vld [vmem:[#allocation21 + $0x18] sm:$0xff]
    %v3515 = vld [vmem:[#allocation21 + $0x20] sm:$0xff]
    %v3516 = vld [vmem:[#allocation21 + $0x28] sm:$0xff]
    %v3517 = vld [vmem:[#allocation21 + $0x30] sm:$0xff]
    %v3518 = vld [vmem:[#allocation21 + $0x38] sm:$0xff]
    %v3519 = vld [vmem:[#allocation21 + $0x40] sm:$0xff]
    %v3520 = vld [vmem:[#allocation21 + $0x48] sm:$0xff]
    %v3521 = vld [vmem:[#allocation21 + $0x50] sm:$0xff]
    %v3522 = vld [vmem:[#allocation21 + $0x58] sm:$0xff]
    %v3523 = vld [vmem:[#allocation21 + $0x60] sm:$0xff]
    %v3524 = vld [vmem:[#allocation21 + $0x68] sm:$0xff]
    %v3525 = vld [vmem:[#allocation21 + $0x70] sm:$0xff]
    %v3526 = vld [vmem:[#allocation21 + $0x78] sm:$0xff]
    %v3527 = vld [vmem:[#allocation21 + $0x80] sm:$0xff]
    %v3528 = vld [vmem:[#allocation21 + $0x88] sm:$0xff]
    %v3529 = vld [vmem:[#allocation21 + $0x90] sm:$0xff]
    %v3530 = vld [vmem:[#allocation21 + $0x98] sm:$0xff]
    %v3531 = vld [vmem:[#allocation21 + $0xa0] sm:$0xff]
    %v3532 = vld [vmem:[#allocation21 + $0xa8] sm:$0xff]
    %v3533 = vld [vmem:[#allocation21 + $0xb0] sm:$0xff]
    %v3534 = vld [vmem:[#allocation21 + $0xb8] sm:$0xff]
    %v3535 = vld [vmem:[#allocation21 + $0xc0] sm:$0xff]
    %v3536 = vld [vmem:[#allocation21 + $0xc8] sm:$0xff]
    %v3537 = vld [vmem:[#allocation21 + $0xd0] sm:$0xff]
    %v3538 = vld [vmem:[#allocation21 + $0xd8] sm:$0xff]
    %v3539 = vld [vmem:[#allocation21 + $0xe0] sm:$0xff]
    %v3540 = vld [vmem:[#allocation21 + $0xe8] sm:$0xff]
    %v3541 = vld [vmem:[#allocation21 + $0xf0] sm:$0xff]
    %v3542 = vld [vmem:[#allocation21 + $0xf8] sm:$0xff]
    %v3543 = vld [vmem:[#allocation21 + $0x100] sm:$0xff]
    %v3544 = vld [vmem:[#allocation21 + $0x108] sm:$0xff]
    %v3545 = vld [vmem:[#allocation21 + $0x110] sm:$0xff]
    %v3546 = vld [vmem:[#allocation21 + $0x118] sm:$0xff]
    %v3547 = vld [vmem:[#allocation21 + $0x120] sm:$0xff]
    %v3548 = vld [vmem:[#allocation21 + $0x128] sm:$0xff]
    %v3549 = vld [vmem:[#allocation21 + $0x130] sm:$0xff]
    %v3550 = vld [vmem:[#allocation21 + $0x138] sm:$0xff]
    %v3551 = vld [vmem:[#allocation21 + $0x140] sm:$0xff]
    %v3552 = vld [vmem:[#allocation21 + $0x148] sm:$0xff]
    %v3553 = vld [vmem:[#allocation21 + $0x150] sm:$0xff]
    %v3554 = vld [vmem:[#allocation21 + $0x158] sm:$0xff]
    %v3555 = vld [vmem:[#allocation21 + $0x160] sm:$0xff]
    %v3556 = vld [vmem:[#allocation21 + $0x168] sm:$0xff]
    %v3557 = vld [vmem:[#allocation21 + $0x170] sm:$0xff]
    %v3558 = vld [vmem:[#allocation21 + $0x178] sm:$0xff]
    %v3559 = vld [vmem:[#allocation21 + $0x180] sm:$0xff]
    %v3560 = vld [vmem:[#allocation21 + $0x188] sm:$0xff]
    %v3561 = vld [vmem:[#allocation21 + $0x190] sm:$0xff]
    %v3562 = vld [vmem:[#allocation21 + $0x198] sm:$0xff]
    %v3563 = vld [vmem:[#allocation21 + $0x1a0] sm:$0xff]
    %v3564 = vld [vmem:[#allocation21 + $0x1a8] sm:$0xff]
    %v3565 = vld [vmem:[#allocation21 + $0x1b0] sm:$0xff]
    %v3566 = vld [vmem:[#allocation21 + $0x1b8] sm:$0xff]
    %v3567 = vld [vmem:[#allocation21 + $0x1c0] sm:$0xff]
    %v3568 = vld [vmem:[#allocation21 + $0x1c8] sm:$0xff]
    %v3569 = vld [vmem:[#allocation21 + $0x1d0] sm:$0xff]
    %v3570 = vld [vmem:[#allocation21 + $0x1d8] sm:$0xff]
    %v3571 = vld [vmem:[#allocation21 + $0x1e0] sm:$0xff]
    %v3572 = vld [vmem:[#allocation21 + $0x1e8] sm:$0xff]
    %v3573 = vld [vmem:[#allocation21 + $0x1f0] sm:$0xff]
    %v3574 = vld [vmem:[#allocation21 + $0x1f8] sm:$0xff]
    %v3575 = vld [vmem:[#allocation21 + $0x200] sm:$0xff]
    %v3576 = vld [vmem:[#allocation21 + $0x208] sm:$0xff]
    %v3577 = vld [vmem:[#allocation21 + $0x210] sm:$0xff]
    %v3578 = vld [vmem:[#allocation21 + $0x218] sm:$0xff]
    %v3579 = vld [vmem:[#allocation21 + $0x220] sm:$0xff]
    %v3580 = vld [vmem:[#allocation21 + $0x228] sm:$0xff]
    %v3581 = vld [vmem:[#allocation21 + $0x230] sm:$0xff]
    %v3582 = vld [vmem:[#allocation21 + $0x238] sm:$0xff]
    %v3583 = vld [vmem:[#allocation21 + $0x240] sm:$0xff]
    %v3584 = vld [vmem:[#allocation21 + $0x248] sm:$0xff]
    %v3585 = vld [vmem:[#allocation21 + $0x250] sm:$0xff]
    %v3586 = vld [vmem:[#allocation21 + $0x258] sm:$0xff]
    %v3587 = vld [vmem:[#allocation21 + $0x260] sm:$0xff]
    %v3588 = vld [vmem:[#allocation21 + $0x268] sm:$0xff]
    %v3589 = vld [vmem:[#allocation21 + $0x270] sm:$0xff]
    %v3590 = vld [vmem:[#allocation21 + $0x278] sm:$0xff]
    %v3591 = vld [vmem:[#allocation21 + $0x280] sm:$0xff]
    %v3592 = vld [vmem:[#allocation21 + $0x288] sm:$0xff]
    %v3593 = vld [vmem:[#allocation21 + $0x290] sm:$0xff]
    %v3594 = vld [vmem:[#allocation21 + $0x298] sm:$0xff]
    %v3595 = vld [vmem:[#allocation21 + $0x2a0] sm:$0xff]
    %v3596 = vld [vmem:[#allocation21 + $0x2a8] sm:$0xff]
    %v3597 = vld [vmem:[#allocation21 + $0x2b0] sm:$0xff]
    %v3598 = vld [vmem:[#allocation21 + $0x2b8] sm:$0xff]
    %v3599 = vld [vmem:[#allocation21 + $0x2c0] sm:$0xff]
    %v3600 = vld [vmem:[#allocation21 + $0x2c8] sm:$0xff]
    %v3601 = vld [vmem:[#allocation21 + $0x2d0] sm:$0xff]
    %v3602 = vld [vmem:[#allocation21 + $0x2d8] sm:$0xff]
    %v3603 = vld [vmem:[#allocation21 + $0x2e0] sm:$0xff]
    %v3604 = vld [vmem:[#allocation21 + $0x2e8] sm:$0xff]
    %v3605 = vld [vmem:[#allocation21 + $0x2f0] sm:$0xff]
    %v3606 = vld [vmem:[#allocation21 + $0x2f8] sm:$0xff]
    %v3607 = vld [vmem:[#allocation21 + $0x300] sm:$0xff]
    %v3608 = vld [vmem:[#allocation21 + $0x308] sm:$0xff]
    %v3609 = vld [vmem:[#allocation21 + $0x310] sm:$0xff]
    %v3610 = vld [vmem:[#allocation21 + $0x318] sm:$0xff]
    %v3611 = vld [vmem:[#allocation21 + $0x320] sm:$0xff]
    %v3612 = vld [vmem:[#allocation21 + $0x328] sm:$0xff]
    %v3613 = vld [vmem:[#allocation21 + $0x330] sm:$0xff]
    %v3614 = vld [vmem:[#allocation21 + $0x338] sm:$0xff]
    %v3615 = vld [vmem:[#allocation21 + $0x340] sm:$0xff]
    %v3616 = vld [vmem:[#allocation21 + $0x348] sm:$0xff]
    %v3617 = vld [vmem:[#allocation21 + $0x350] sm:$0xff]
    %v3618 = vld [vmem:[#allocation21 + $0x358] sm:$0xff]
    %v3619 = vld [vmem:[#allocation21 + $0x360] sm:$0xff]
    %v3620 = vld [vmem:[#allocation21 + $0x368] sm:$0xff]
    %v3621 = vld [vmem:[#allocation21 + $0x370] sm:$0xff]
    %v3622 = vld [vmem:[#allocation21 + $0x378] sm:$0xff]
    %v3623 = vld [vmem:[#allocation21 + $0x380] sm:$0xff]
    %v3624 = vld [vmem:[#allocation21 + $0x388] sm:$0xff]
    %v3625 = vld [vmem:[#allocation21 + $0x390] sm:$0xff]
    %v3626 = vld [vmem:[#allocation21 + $0x398] sm:$0xff]
    %v3627 = vld [vmem:[#allocation21 + $0x3a0] sm:$0xff]
    %v3628 = vld [vmem:[#allocation21 + $0x3a8] sm:$0xff]
    %v3629 = vld [vmem:[#allocation21 + $0x3b0] sm:$0xff]
    %v3630 = vld [vmem:[#allocation21 + $0x3b8] sm:$0xff]
    %v3631 = vld [vmem:[#allocation21 + $0x3c0] sm:$0xff]
    %v3632 = vld [vmem:[#allocation21 + $0x3c8] sm:$0xff]
    %v3633 = vld [vmem:[#allocation21 + $0x3d0] sm:$0xff]
    %v3634 = vld [vmem:[#allocation21 + $0x3d8] sm:$0xff]
    %v3635 = vld [vmem:[#allocation21 + $0x3e0] sm:$0xff]
    %v3636 = vld [vmem:[#allocation21 + $0x3e8] sm:$0xff]
    %v3637 = vld [vmem:[#allocation21 + $0x3f0] sm:$0xff]
    %v3638 = vld [vmem:[#allocation21 + $0x3f8] sm:$0xff]
    %v3639 = vld [vmem:[#allocation22] sm:$0x3]
    %v3641 = vlaneseq
    %v3642 = vshrl.u32 %v3641, 7
    %v3643 = vsub.s32 0, %v3642
    %v3644 = vrot.slane %v3639, %v3643
    %v3645 = vlaneseq
    %v3646 = vshrl.u32 %v3645, 7
    %v3647 = vsub.s32 1, %v3646
    %v3648 = vrot.slane %v3639, %v3647
    %v3779 = vunpack.c.l.b16 %v3511
    %v3780 = vunpack.c.h.b16 %v3511
    %v3781 = vunpack.c.l.b16 %v3512
    %v3782 = vunpack.c.h.b16 %v3512
    %v3783 = vunpack.c.l.b16 %v3513
    %v3784 = vunpack.c.h.b16 %v3513
    %v3785 = vunpack.c.l.b16 %v3514
    %v3786 = vunpack.c.h.b16 %v3514
    %v3787 = vunpack.c.l.b16 %v3515
    %v3788 = vunpack.c.h.b16 %v3515
    %v3789 = vunpack.c.l.b16 %v3516
    %v3790 = vunpack.c.h.b16 %v3516
    %v3791 = vunpack.c.l.b16 %v3517
    %v3792 = vunpack.c.h.b16 %v3517
    %v3793 = vunpack.c.l.b16 %v3518
    %v3794 = vunpack.c.h.b16 %v3518
    %v3795 = vunpack.c.l.b16 %v3519
    %v3796 = vunpack.c.h.b16 %v3519
    %v3797 = vunpack.c.l.b16 %v3520
    %v3798 = vunpack.c.h.b16 %v3520
    %v3799 = vunpack.c.l.b16 %v3521
    %v3800 = vunpack.c.h.b16 %v3521
    %v3801 = vunpack.c.l.b16 %v3522
    %v3802 = vunpack.c.h.b16 %v3522
    %v3803 = vunpack.c.l.b16 %v3523
    %v3804 = vunpack.c.h.b16 %v3523
    %v3805 = vunpack.c.l.b16 %v3524
    %v3806 = vunpack.c.h.b16 %v3524
    %v3807 = vunpack.c.l.b16 %v3525
    %v3808 = vunpack.c.h.b16 %v3525
    %v3809 = vunpack.c.l.b16 %v3526
    %v3810 = vunpack.c.h.b16 %v3526
    %v3811 = vunpack.c.l.b16 %v3527
    %v3812 = vunpack.c.h.b16 %v3527
    %v3813 = vunpack.c.l.b16 %v3528
    %v3814 = vunpack.c.h.b16 %v3528
    %v3815 = vunpack.c.l.b16 %v3529
    %v3816 = vunpack.c.h.b16 %v3529
    %v3817 = vunpack.c.l.b16 %v3530
    %v3818 = vunpack.c.h.b16 %v3530
    %v3819 = vunpack.c.l.b16 %v3531
    %v3820 = vunpack.c.h.b16 %v3531
    %v3821 = vunpack.c.l.b16 %v3532
    %v3822 = vunpack.c.h.b16 %v3532
    %v3823 = vunpack.c.l.b16 %v3533
    %v3824 = vunpack.c.h.b16 %v3533
    %v3825 = vunpack.c.l.b16 %v3534
    %v3826 = vunpack.c.h.b16 %v3534
    %v3827 = vunpack.c.l.b16 %v3535
    %v3828 = vunpack.c.h.b16 %v3535
    %v3829 = vunpack.c.l.b16 %v3536
    %v3830 = vunpack.c.h.b16 %v3536
    %v3831 = vunpack.c.l.b16 %v3537
    %v3832 = vunpack.c.h.b16 %v3537
    %v3833 = vunpack.c.l.b16 %v3538
    %v3834 = vunpack.c.h.b16 %v3538
    %v3835 = vunpack.c.l.b16 %v3539
    %v3836 = vunpack.c.h.b16 %v3539
    %v3837 = vunpack.c.l.b16 %v3540
    %v3838 = vunpack.c.h.b16 %v3540
    %v3839 = vunpack.c.l.b16 %v3541
    %v3840 = vunpack.c.h.b16 %v3541
    %v3841 = vunpack.c.l.b16 %v3542
    %v3842 = vunpack.c.h.b16 %v3542
    %v3843 = vunpack.c.l.b16 %v3543
    %v3844 = vunpack.c.h.b16 %v3543
    %v3845 = vunpack.c.l.b16 %v3544
    %v3846 = vunpack.c.h.b16 %v3544
    %v3847 = vunpack.c.l.b16 %v3545
    %v3848 = vunpack.c.h.b16 %v3545
    %v3849 = vunpack.c.l.b16 %v3546
    %v3850 = vunpack.c.h.b16 %v3546
    %v3851 = vunpack.c.l.b16 %v3547
    %v3852 = vunpack.c.h.b16 %v3547
    %v3853 = vunpack.c.l.b16 %v3548
    %v3854 = vunpack.c.h.b16 %v3548
    %v3855 = vunpack.c.l.b16 %v3549
    %v3856 = vunpack.c.h.b16 %v3549
    %v3857 = vunpack.c.l.b16 %v3550
    %v3858 = vunpack.c.h.b16 %v3550
    %v3859 = vunpack.c.l.b16 %v3551
    %v3860 = vunpack.c.h.b16 %v3551
    %v3861 = vunpack.c.l.b16 %v3552
    %v3862 = vunpack.c.h.b16 %v3552
    %v3863 = vunpack.c.l.b16 %v3553
    %v3864 = vunpack.c.h.b16 %v3553
    %v3865 = vunpack.c.l.b16 %v3554
    %v3866 = vunpack.c.h.b16 %v3554
    %v3867 = vunpack.c.l.b16 %v3555
    %v3868 = vunpack.c.h.b16 %v3555
    %v3869 = vunpack.c.l.b16 %v3556
    %v3870 = vunpack.c.h.b16 %v3556
    %v3871 = vunpack.c.l.b16 %v3557
    %v3872 = vunpack.c.h.b16 %v3557
    %v3873 = vunpack.c.l.b16 %v3558
    %v3874 = vunpack.c.h.b16 %v3558
    %v3875 = vunpack.c.l.b16 %v3559
    %v3876 = vunpack.c.h.b16 %v3559
    %v3877 = vunpack.c.l.b16 %v3560
    %v3878 = vunpack.c.h.b16 %v3560
    %v3879 = vunpack.c.l.b16 %v3561
    %v3880 = vunpack.c.h.b16 %v3561
    %v3881 = vunpack.c.l.b16 %v3562
    %v3882 = vunpack.c.h.b16 %v3562
    %v3883 = vunpack.c.l.b16 %v3563
    %v3884 = vunpack.c.h.b16 %v3563
    %v3885 = vunpack.c.l.b16 %v3564
    %v3886 = vunpack.c.h.b16 %v3564
    %v3887 = vunpack.c.l.b16 %v3565
    %v3888 = vunpack.c.h.b16 %v3565
    %v3889 = vunpack.c.l.b16 %v3566
    %v3890 = vunpack.c.h.b16 %v3566
    %v3891 = vunpack.c.l.b16 %v3567
    %v3892 = vunpack.c.h.b16 %v3567
    %v3893 = vunpack.c.l.b16 %v3568
    %v3894 = vunpack.c.h.b16 %v3568
    %v3895 = vunpack.c.l.b16 %v3569
    %v3896 = vunpack.c.h.b16 %v3569
    %v3897 = vunpack.c.l.b16 %v3570
    %v3898 = vunpack.c.h.b16 %v3570
    %v3899 = vunpack.c.l.b16 %v3571
    %v3900 = vunpack.c.h.b16 %v3571
    %v3901 = vunpack.c.l.b16 %v3572
    %v3902 = vunpack.c.h.b16 %v3572
    %v3903 = vunpack.c.l.b16 %v3573
    %v3904 = vunpack.c.h.b16 %v3573
    %v3905 = vunpack.c.l.b16 %v3574
    %v3906 = vunpack.c.h.b16 %v3574
    %v3907 = vunpack.c.l.b16 %v3575
    %v3908 = vunpack.c.h.b16 %v3575
    %v3909 = vunpack.c.l.b16 %v3576
    %v3910 = vunpack.c.h.b16 %v3576
    %v3911 = vunpack.c.l.b16 %v3577
    %v3912 = vunpack.c.h.b16 %v3577
    %v3913 = vunpack.c.l.b16 %v3578
    %v3914 = vunpack.c.h.b16 %v3578
    %v3915 = vunpack.c.l.b16 %v3579
    %v3916 = vunpack.c.h.b16 %v3579
    %v3917 = vunpack.c.l.b16 %v3580
    %v3918 = vunpack.c.h.b16 %v3580
    %v3919 = vunpack.c.l.b16 %v3581
    %v3920 = vunpack.c.h.b16 %v3581
    %v3921 = vunpack.c.l.b16 %v3582
    %v3922 = vunpack.c.h.b16 %v3582
    %v3923 = vunpack.c.l.b16 %v3583
    %v3924 = vunpack.c.h.b16 %v3583
    %v3925 = vunpack.c.l.b16 %v3584
    %v3926 = vunpack.c.h.b16 %v3584
    %v3927 = vunpack.c.l.b16 %v3585
    %v3928 = vunpack.c.h.b16 %v3585
    %v3929 = vunpack.c.l.b16 %v3586
    %v3930 = vunpack.c.h.b16 %v3586
    %v3931 = vunpack.c.l.b16 %v3587
    %v3932 = vunpack.c.h.b16 %v3587
    %v3933 = vunpack.c.l.b16 %v3588
    %v3934 = vunpack.c.h.b16 %v3588
    %v3935 = vunpack.c.l.b16 %v3589
    %v3936 = vunpack.c.h.b16 %v3589
    %v3937 = vunpack.c.l.b16 %v3590
    %v3938 = vunpack.c.h.b16 %v3590
    %v3939 = vunpack.c.l.b16 %v3591
    %v3940 = vunpack.c.h.b16 %v3591
    %v3941 = vunpack.c.l.b16 %v3592
    %v3942 = vunpack.c.h.b16 %v3592
    %v3943 = vunpack.c.l.b16 %v3593
    %v3944 = vunpack.c.h.b16 %v3593
    %v3945 = vunpack.c.l.b16 %v3594
    %v3946 = vunpack.c.h.b16 %v3594
    %v3947 = vunpack.c.l.b16 %v3595
    %v3948 = vunpack.c.h.b16 %v3595
    %v3949 = vunpack.c.l.b16 %v3596
    %v3950 = vunpack.c.h.b16 %v3596
    %v3951 = vunpack.c.l.b16 %v3597
    %v3952 = vunpack.c.h.b16 %v3597
    %v3953 = vunpack.c.l.b16 %v3598
    %v3954 = vunpack.c.h.b16 %v3598
    %v3955 = vunpack.c.l.b16 %v3599
    %v3956 = vunpack.c.h.b16 %v3599
    %v3957 = vunpack.c.l.b16 %v3600
    %v3958 = vunpack.c.h.b16 %v3600
    %v3959 = vunpack.c.l.b16 %v3601
    %v3960 = vunpack.c.h.b16 %v3601
    %v3961 = vunpack.c.l.b16 %v3602
    %v3962 = vunpack.c.h.b16 %v3602
    %v3963 = vunpack.c.l.b16 %v3603
    %v3964 = vunpack.c.h.b16 %v3603
    %v3965 = vunpack.c.l.b16 %v3604
    %v3966 = vunpack.c.h.b16 %v3604
    %v3967 = vunpack.c.l.b16 %v3605
    %v3968 = vunpack.c.h.b16 %v3605
    %v3969 = vunpack.c.l.b16 %v3606
    %v3970 = vunpack.c.h.b16 %v3606
    %v3971 = vunpack.c.l.b16 %v3607
    %v3972 = vunpack.c.h.b16 %v3607
    %v3973 = vunpack.c.l.b16 %v3608
    %v3974 = vunpack.c.h.b16 %v3608
    %v3975 = vunpack.c.l.b16 %v3609
    %v3976 = vunpack.c.h.b16 %v3609
    %v3977 = vunpack.c.l.b16 %v3610
    %v3978 = vunpack.c.h.b16 %v3610
    %v3979 = vunpack.c.l.b16 %v3611
    %v3980 = vunpack.c.h.b16 %v3611
    %v3981 = vunpack.c.l.b16 %v3612
    %v3982 = vunpack.c.h.b16 %v3612
    %v3983 = vunpack.c.l.b16 %v3613
    %v3984 = vunpack.c.h.b16 %v3613
    %v3985 = vunpack.c.l.b16 %v3614
    %v3986 = vunpack.c.h.b16 %v3614
    %v3987 = vunpack.c.l.b16 %v3615
    %v3988 = vunpack.c.h.b16 %v3615
    %v3989 = vunpack.c.l.b16 %v3616
    %v3990 = vunpack.c.h.b16 %v3616
    %v3991 = vunpack.c.l.b16 %v3617
    %v3992 = vunpack.c.h.b16 %v3617
    %v3993 = vunpack.c.l.b16 %v3618
    %v3994 = vunpack.c.h.b16 %v3618
    %v3995 = vunpack.c.l.b16 %v3619
    %v3996 = vunpack.c.h.b16 %v3619
    %v3997 = vunpack.c.l.b16 %v3620
    %v3998 = vunpack.c.h.b16 %v3620
    %v3999 = vunpack.c.l.b16 %v3621
    %v4000 = vunpack.c.h.b16 %v3621
    %v4001 = vunpack.c.l.b16 %v3622
    %v4002 = vunpack.c.h.b16 %v3622
    %v4003 = vunpack.c.l.b16 %v3623
    %v4004 = vunpack.c.h.b16 %v3623
    %v4005 = vunpack.c.l.b16 %v3624
    %v4006 = vunpack.c.h.b16 %v3624
    %v4007 = vunpack.c.l.b16 %v3625
    %v4008 = vunpack.c.h.b16 %v3625
    %v4009 = vunpack.c.l.b16 %v3626
    %v4010 = vunpack.c.h.b16 %v3626
    %v4011 = vunpack.c.l.b16 %v3627
    %v4012 = vunpack.c.h.b16 %v3627
    %v4013 = vunpack.c.l.b16 %v3628
    %v4014 = vunpack.c.h.b16 %v3628
    %v4015 = vunpack.c.l.b16 %v3629
    %v4016 = vunpack.c.h.b16 %v3629
    %v4017 = vunpack.c.l.b16 %v3630
    %v4018 = vunpack.c.h.b16 %v3630
    %v4019 = vunpack.c.l.b16 %v3631
    %v4020 = vunpack.c.h.b16 %v3631
    %v4021 = vunpack.c.l.b16 %v3632
    %v4022 = vunpack.c.h.b16 %v3632
    %v4023 = vunpack.c.l.b16 %v3633
    %v4024 = vunpack.c.h.b16 %v3633
    %v4025 = vunpack.c.l.b16 %v3634
    %v4026 = vunpack.c.h.b16 %v3634
    %v4027 = vunpack.c.l.b16 %v3635
    %v4028 = vunpack.c.h.b16 %v3635
    %v4029 = vunpack.c.l.b16 %v3636
    %v4030 = vunpack.c.h.b16 %v3636
    %v4031 = vunpack.c.l.b16 %v3637
    %v4032 = vunpack.c.h.b16 %v3637
    %v4033 = vunpack.c.l.b16 %v3638
    %v4034 = vunpack.c.h.b16 %v3638
    %v4035 = vpack.c.b16 %v3781, %v3779
    %v4036 = vpack.c.b16 %v3782, %v3780
    %v4037 = vpack.c.b16 %v3785, %v3783
    %v4038 = vpack.c.b16 %v3786, %v3784
    %v4039 = vpack.c.b16 %v3789, %v3787
    %v4040 = vpack.c.b16 %v3790, %v3788
    %v4041 = vpack.c.b16 %v3793, %v3791
    %v4042 = vpack.c.b16 %v3794, %v3792
    %v4043 = vpack.c.b16 %v3797, %v3795
    %v4044 = vpack.c.b16 %v3798, %v3796
    %v4045 = vpack.c.b16 %v3801, %v3799
    %v4046 = vpack.c.b16 %v3802, %v3800
    %v4047 = vpack.c.b16 %v3805, %v3803
    %v4048 = vpack.c.b16 %v3806, %v3804
    %v4049 = vpack.c.b16 %v3809, %v3807
    %v4050 = vpack.c.b16 %v3810, %v3808
    %v4051 = vpack.c.b16 %v3813, %v3811
    %v4052 = vpack.c.b16 %v3814, %v3812
    %v4053 = vpack.c.b16 %v3817, %v3815
    %v4054 = vpack.c.b16 %v3818, %v3816
    %v4055 = vpack.c.b16 %v3821, %v3819
    %v4056 = vpack.c.b16 %v3822, %v3820
    %v4057 = vpack.c.b16 %v3825, %v3823
    %v4058 = vpack.c.b16 %v3826, %v3824
    %v4059 = vpack.c.b16 %v3829, %v3827
    %v4060 = vpack.c.b16 %v3830, %v3828
    %v4061 = vpack.c.b16 %v3833, %v3831
    %v4062 = vpack.c.b16 %v3834, %v3832
    %v4063 = vpack.c.b16 %v3837, %v3835
    %v4064 = vpack.c.b16 %v3838, %v3836
    %v4065 = vpack.c.b16 %v3841, %v3839
    %v4066 = vpack.c.b16 %v3842, %v3840
    %v4067 = vpack.c.b16 %v3845, %v3843
    %v4068 = vpack.c.b16 %v3846, %v3844
    %v4069 = vpack.c.b16 %v3849, %v3847
    %v4070 = vpack.c.b16 %v3850, %v3848
    %v4071 = vpack.c.b16 %v3853, %v3851
    %v4072 = vpack.c.b16 %v3854, %v3852
    %v4073 = vpack.c.b16 %v3857, %v3855
    %v4074 = vpack.c.b16 %v3858, %v3856
    %v4075 = vpack.c.b16 %v3861, %v3859
    %v4076 = vpack.c.b16 %v3862, %v3860
    %v4077 = vpack.c.b16 %v3865, %v3863
    %v4078 = vpack.c.b16 %v3866, %v3864
    %v4079 = vpack.c.b16 %v3869, %v3867
    %v4080 = vpack.c.b16 %v3870, %v3868
    %v4081 = vpack.c.b16 %v3873, %v3871
    %v4082 = vpack.c.b16 %v3874, %v3872
    %v4083 = vpack.c.b16 %v3877, %v3875
    %v4084 = vpack.c.b16 %v3878, %v3876
    %v4085 = vpack.c.b16 %v3881, %v3879
    %v4086 = vpack.c.b16 %v3882, %v3880
    %v4087 = vpack.c.b16 %v3885, %v3883
    %v4088 = vpack.c.b16 %v3886, %v3884
    %v4089 = vpack.c.b16 %v3889, %v3887
    %v4090 = vpack.c.b16 %v3890, %v3888
    %v4091 = vpack.c.b16 %v3893, %v3891
    %v4092 = vpack.c.b16 %v3894, %v3892
    %v4093 = vpack.c.b16 %v3897, %v3895
    %v4094 = vpack.c.b16 %v3898, %v3896
    %v4095 = vpack.c.b16 %v3901, %v3899
    %v4096 = vpack.c.b16 %v3902, %v3900
    %v4097 = vpack.c.b16 %v3905, %v3903
    %v4098 = vpack.c.b16 %v3906, %v3904
    %v4099 = vpack.c.b16 %v3909, %v3907
    %v4100 = vpack.c.b16 %v3910, %v3908
    %v4101 = vpack.c.b16 %v3913, %v3911
    %v4102 = vpack.c.b16 %v3914, %v3912
    %v4103 = vpack.c.b16 %v3917, %v3915
    %v4104 = vpack.c.b16 %v3918, %v3916
    %v4105 = vpack.c.b16 %v3921, %v3919
    %v4106 = vpack.c.b16 %v3922, %v3920
    %v4107 = vpack.c.b16 %v3925, %v3923
    %v4108 = vpack.c.b16 %v3926, %v3924
    %v4109 = vpack.c.b16 %v3929, %v3927
    %v4110 = vpack.c.b16 %v3930, %v3928
    %v4111 = vpack.c.b16 %v3933, %v3931
    %v4112 = vpack.c.b16 %v3934, %v3932
    %v4113 = vpack.c.b16 %v3937, %v3935
    %v4114 = vpack.c.b16 %v3938, %v3936
    %v4115 = vpack.c.b16 %v3941, %v3939
    %v4116 = vpack.c.b16 %v3942, %v3940
    %v4117 = vpack.c.b16 %v3945, %v3943
    %v4118 = vpack.c.b16 %v3946, %v3944
    %v4119 = vpack.c.b16 %v3949, %v3947
    %v4120 = vpack.c.b16 %v3950, %v3948
    %v4121 = vpack.c.b16 %v3953, %v3951
    %v4122 = vpack.c.b16 %v3954, %v3952
    %v4123 = vpack.c.b16 %v3957, %v3955
    %v4124 = vpack.c.b16 %v3958, %v3956
    %v4125 = vpack.c.b16 %v3961, %v3959
    %v4126 = vpack.c.b16 %v3962, %v3960
    %v4127 = vpack.c.b16 %v3965, %v3963
    %v4128 = vpack.c.b16 %v3966, %v3964
    %v4129 = vpack.c.b16 %v3969, %v3967
    %v4130 = vpack.c.b16 %v3970, %v3968
    %v4131 = vpack.c.b16 %v3973, %v3971
    %v4132 = vpack.c.b16 %v3974, %v3972
    %v4133 = vpack.c.b16 %v3977, %v3975
    %v4134 = vpack.c.b16 %v3978, %v3976
    %v4135 = vpack.c.b16 %v3981, %v3979
    %v4136 = vpack.c.b16 %v3982, %v3980
    %v4137 = vpack.c.b16 %v3985, %v3983
    %v4138 = vpack.c.b16 %v3986, %v3984
    %v4139 = vpack.c.b16 %v3989, %v3987
    %v4140 = vpack.c.b16 %v3990, %v3988
    %v4141 = vpack.c.b16 %v3993, %v3991
    %v4142 = vpack.c.b16 %v3994, %v3992
    %v4143 = vpack.c.b16 %v3997, %v3995
    %v4144 = vpack.c.b16 %v3998, %v3996
    %v4145 = vpack.c.b16 %v4001, %v3999
    %v4146 = vpack.c.b16 %v4002, %v4000
    %v4147 = vpack.c.b16 %v4005, %v4003
    %v4148 = vpack.c.b16 %v4006, %v4004
    %v4149 = vpack.c.b16 %v4009, %v4007
    %v4150 = vpack.c.b16 %v4010, %v4008
    %v4151 = vpack.c.b16 %v4013, %v4011
    %v4152 = vpack.c.b16 %v4014, %v4012
    %v4153 = vpack.c.b16 %v4017, %v4015
    %v4154 = vpack.c.b16 %v4018, %v4016
    %v4155 = vpack.c.b16 %v4021, %v4019
    %v4156 = vpack.c.b16 %v4022, %v4020
    %v4157 = vpack.c.b16 %v4025, %v4023
    %v4158 = vpack.c.b16 %v4026, %v4024
    %v4159 = vpack.c.b16 %v4029, %v4027
    %v4160 = vpack.c.b16 %v4030, %v4028
    %v4161 = vpack.c.b16 %v4033, %v4031
    %v4162 = vpack.c.b16 %v4034, %v4032
    %4291 = vmatprep.subr.bf16.mxu0 %v4050
    %4292 = vmatpush1.bf16.msra.mxu0 %v4049
    %4293 = vmatprep.subr.bf16.mxu0 %v4048
    %4294 = vmatpush1.bf16.msra.mxu0 %v4047
    %4295 = vmatprep.subr.bf16.mxu0 %v4046
    %4296 = vmatpush1.bf16.msra.mxu0 %v4045
    %4297 = vmatprep.subr.bf16.mxu0 %v4044
    %4298 = vmatpush1.bf16.msra.mxu0 %v4043
    %4299 = vmatprep.subr.bf16.mxu0 %v4042
    %4300 = vmatpush1.bf16.msra.mxu0 %v4041
    %4301 = vmatprep.subr.bf16.mxu0 %v4040
    %4302 = vmatpush1.bf16.msra.mxu0 %v4039
    %4303 = vmatprep.subr.bf16.mxu0 %v4038
    %4304 = vmatpush1.bf16.msra.mxu0 %v4037
    %4305 = vmatprep.subr.bf16.mxu0 %v4036
    %4306 = vmatpush1.bf16.msra.mxu0 %v4035
    %4307 = vmatprep.subr.bf16.mxu0 %v4066
    %4308 = vmatpush2.bf16.msra.mxu0 %v4065
    %4309 = vmatprep.subr.bf16.mxu0 %v4064
    %4310 = vmatpush2.bf16.msra.mxu0 %v4063
    %4311 = vmatprep.subr.bf16.mxu0 %v4062
    %4312 = vmatpush2.bf16.msra.mxu0 %v4061
    %4313 = vmatprep.subr.bf16.mxu0 %v4060
    %4314 = vmatpush2.bf16.msra.mxu0 %v4059
    %4315 = vmatprep.subr.bf16.mxu0 %v4058
    %4316 = vmatpush2.bf16.msra.mxu0 %v4057
    %4317 = vmatprep.subr.bf16.mxu0 %v4056
    %4318 = vmatpush2.bf16.msra.mxu0 %v4055
    %4319 = vmatprep.subr.bf16.mxu0 %v4054
    %4320 = vmatpush2.bf16.msra.mxu0 %v4053
    %4321 = vmatprep.subr.bf16.mxu0 %v4052
    %4322 = vmatpush2.bf16.msra.mxu0 %v4051
    %4323 = vmatprep.mubr.bf16.mxu0 %v3504
    %4324 = vmatmul.mubr.bf16.gmra.mxu0 %v3503
    %v4325 = vpop.f32.mrf.mxu0
    %v4326 = vadd.f32 %v3644, %v4325
    %v4327 = vpop.f32.mrf.mxu0
    %v4328 = vadd.f32 %v3648, %v4327
    %v4329 = vpop.f32.mrf.mxu0
    %v4330 = vpop.f32.mrf.mxu0
    %4331 = vdwg.mxu0
    %4332 = vmatprep.subr.bf16.mxu0 %v4082
    %4333 = vmatpush1.bf16.msra.mxu0 %v4081
    %4334 = vmatprep.subr.bf16.mxu0 %v4080
    %4335 = vmatpush1.bf16.msra.mxu0 %v4079
    %4336 = vmatprep.subr.bf16.mxu0 %v4078
    %4337 = vmatpush1.bf16.msra.mxu0 %v4077
    %4338 = vmatprep.subr.bf16.mxu0 %v4076
    %4339 = vmatpush1.bf16.msra.mxu0 %v4075
    %4340 = vmatprep.subr.bf16.mxu0 %v4074
    %4341 = vmatpush1.bf16.msra.mxu0 %v4073
    %4342 = vmatprep.subr.bf16.mxu0 %v4072
    %4343 = vmatpush1.bf16.msra.mxu0 %v4071
    %4344 = vmatprep.subr.bf16.mxu0 %v4070
    %4345 = vmatpush1.bf16.msra.mxu0 %v4069
    %4346 = vmatprep.subr.bf16.mxu0 %v4068
    %4347 = vmatpush1.bf16.msra.mxu0 %v4067
    %4348 = vmatprep.subr.bf16.mxu0 %v4098
    %4349 = vmatpush2.bf16.msra.mxu0 %v4097
    %4350 = vmatprep.subr.bf16.mxu0 %v4096
    %4351 = vmatpush2.bf16.msra.mxu0 %v4095
    %4352 = vmatprep.subr.bf16.mxu0 %v4094
    %4353 = vmatpush2.bf16.msra.mxu0 %v4093
    %4354 = vmatprep.subr.bf16.mxu0 %v4092
    %4355 = vmatpush2.bf16.msra.mxu0 %v4091
    %4356 = vmatprep.subr.bf16.mxu0 %v4090
    %4357 = vmatpush2.bf16.msra.mxu0 %v4089
    %4358 = vmatprep.subr.bf16.mxu0 %v4088
    %4359 = vmatpush2.bf16.msra.mxu0 %v4087
    %4360 = vmatprep.subr.bf16.mxu0 %v4086
    %4361 = vmatpush2.bf16.msra.mxu0 %v4085
    %4362 = vmatprep.subr.bf16.mxu0 %v4084
    %4363 = vmatpush2.bf16.msra.mxu0 %v4083
    %4364 = vmatprep.mubr.bf16.mxu0 %v3506
    %4365 = vmatmul.mubr.bf16.gmra.mxu0 %v3505
    %v4366 = vpop.f32.mrf.mxu0
    %v4367 = vadd.f32 %v4326, %v4366
    %v4368 = vpop.f32.mrf.mxu0
    %v4369 = vadd.f32 %v4328, %v4368
    %v4370 = vpop.f32.mrf.mxu0
    %v4371 = vpop.f32.mrf.mxu0
    %4372 = vdwg.mxu0
    %4373 = vmatprep.subr.bf16.mxu0 %v4114
    %4374 = vmatpush1.bf16.msra.mxu0 %v4113
    %4375 = vmatprep.subr.bf16.mxu0 %v4112
    %4376 = vmatpush1.bf16.msra.mxu0 %v4111
    %4377 = vmatprep.subr.bf16.mxu0 %v4110
    %4378 = vmatpush1.bf16.msra.mxu0 %v4109
    %4379 = vmatprep.subr.bf16.mxu0 %v4108
    %4380 = vmatpush1.bf16.msra.mxu0 %v4107
    %4381 = vmatprep.subr.bf16.mxu0 %v4106
    %4382 = vmatpush1.bf16.msra.mxu0 %v4105
    %4383 = vmatprep.subr.bf16.mxu0 %v4104
    %4384 = vmatpush1.bf16.msra.mxu0 %v4103
    %4385 = vmatprep.subr.bf16.mxu0 %v4102
    %4386 = vmatpush1.bf16.msra.mxu0 %v4101
    %4387 = vmatprep.subr.bf16.mxu0 %v4100
    %4388 = vmatpush1.bf16.msra.mxu0 %v4099
    %4389 = vmatprep.subr.bf16.mxu0 %v4130
    %4390 = vmatpush2.bf16.msra.mxu0 %v4129
    %4391 = vmatprep.subr.bf16.mxu0 %v4128
    %4392 = vmatpush2.bf16.msra.mxu0 %v4127
    %4393 = vmatprep.subr.bf16.mxu0 %v4126
    %4394 = vmatpush2.bf16.msra.mxu0 %v4125
    %4395 = vmatprep.subr.bf16.mxu0 %v4124
    %4396 = vmatpush2.bf16.msra.mxu0 %v4123
    %4397 = vmatprep.subr.bf16.mxu0 %v4122
    %4398 = vmatpush2.bf16.msra.mxu0 %v4121
    %4399 = vmatprep.subr.bf16.mxu0 %v4120
    %4400 = vmatpush2.bf16.msra.mxu0 %v4119
    %4401 = vmatprep.subr.bf16.mxu0 %v4118
    %4402 = vmatpush2.bf16.msra.mxu0 %v4117
    %4403 = vmatprep.subr.bf16.mxu0 %v4116
    %4404 = vmatpush2.bf16.msra.mxu0 %v4115
    %4405 = vmatprep.mubr.bf16.mxu0 %v3508
    %4406 = vmatmul.mubr.bf16.gmra.mxu0 %v3507
    %v4407 = vpop.f32.mrf.mxu0
    %v4408 = vadd.f32 %v4367, %v4407
    %v4409 = vpop.f32.mrf.mxu0
    %v4410 = vadd.f32 %v4369, %v4409
    %v4411 = vpop.f32.mrf.mxu0
    %v4412 = vpop.f32.mrf.mxu0
    %4413 = vdwg.mxu0
    %4414 = vmatprep.subr.bf16.mxu0 %v4146
    %4415 = vmatpush1.bf16.msra.mxu0 %v4145
    %4416 = vmatprep.subr.bf16.mxu0 %v4144
    %4417 = vmatpush1.bf16.msra.mxu0 %v4143
    %4418 = vmatprep.subr.bf16.mxu0 %v4142
    %4419 = vmatpush1.bf16.msra.mxu0 %v4141
    %4420 = vmatprep.subr.bf16.mxu0 %v4140
    %4421 = vmatpush1.bf16.msra.mxu0 %v4139
    %4422 = vmatprep.subr.bf16.mxu0 %v4138
    %4423 = vmatpush1.bf16.msra.mxu0 %v4137
    %4424 = vmatprep.subr.bf16.mxu0 %v4136
    %4425 = vmatpush1.bf16.msra.mxu0 %v4135
    %4426 = vmatprep.subr.bf16.mxu0 %v4134
    %4427 = vmatpush1.bf16.msra.mxu0 %v4133
    %4428 = vmatprep.subr.bf16.mxu0 %v4132
    %4429 = vmatpush1.bf16.msra.mxu0 %v4131
    %4430 = vmatprep.subr.bf16.mxu0 %v4162
    %4431 = vmatpush2.bf16.msra.mxu0 %v4161
    %4432 = vmatprep.subr.bf16.mxu0 %v4160
    %4433 = vmatpush2.bf16.msra.mxu0 %v4159
    %4434 = vmatprep.subr.bf16.mxu0 %v4158
    %4435 = vmatpush2.bf16.msra.mxu0 %v4157
    %4436 = vmatprep.subr.bf16.mxu0 %v4156
    %4437 = vmatpush2.bf16.msra.mxu0 %v4155
    %4438 = vmatprep.subr.bf16.mxu0 %v4154
    %4439 = vmatpush2.bf16.msra.mxu0 %v4153
    %4440 = vmatprep.subr.bf16.mxu0 %v4152
    %4441 = vmatpush2.bf16.msra.mxu0 %v4151
    %4442 = vmatprep.subr.bf16.mxu0 %v4150
    %4443 = vmatpush2.bf16.msra.mxu0 %v4149
    %4444 = vmatprep.subr.bf16.mxu0 %v4148
    %4445 = vmatpush2.bf16.msra.mxu0 %v4147
    %4446 = vmatprep.mubr.bf16.mxu0 %v3510
    %4447 = vmatmul.mubr.bf16.gmra.mxu0 %v3509
    %v4448 = vpop.f32.mrf.mxu0
    %v4449 = vadd.f32 %v4408, %v4448
    %v4450 = vpop.f32.mrf.mxu0
    %v4451 = vadd.f32 %v4410, %v4450
    %v4452 = vpop.f32.mrf.mxu0
    %v4453 = vpop.f32.mrf.mxu0
    %4454 = vdwg.mxu0
    %v4455 = vtanh.pop %v4449
    %v4456 = vtanh.pop %v4451
    %4457 = vst [vmem:[%s17] sm:$0xff] %v4455
    %4458 = vst [vmem:[%s17 + $0x8] sm:$0xff] %v4456
    // Predicated region
    $region126: #{generator_forward.1} parent=1 // pred_check
      _
    $region127: #{generator_forward.1} parent=1 // pred_check_branch
      %4460 = sbr.rel (0) target = $region129
    $region128: #{generator_forward.1} parent=1 // pred_region
      _
    $region129: #{generator_forward.1} parent=1 // pred_fallthru
      _
    // Predicated region
    $region130: #{generator_forward.1} parent=1 // pred_check
      _
    $region131: #{generator_forward.1} parent=1 // pred_check_branch
      %4462 = sbr.rel (0) target = $region133
    $region132: #{generator_forward.1} parent=1 // pred_region
      _
    $region133: #{generator_forward.1} parent=1 // pred_fallthru
      _
    %4463 = vsyncpa [#allocation3], 1
    %4464 = vsyncpa [#allocation5], 1
    %4465 = vsyncpa [#allocation8], 1
    %4466 = vsyncpa [#allocation11], 1
    %4467 = vsyncpa [#allocation14], 1
    %4468 = vsyncpa [#allocation17], 1
    %4469 = vsyncpa [#allocation20], 1
    %4470 = vsyncpa [#allocation23], 1

</llo_original>
